<compile_context>
chip_gen: v7x
topology: tpu7x:2x2x1
jax: 0.10.0
libtpu: 0.0.40
codegen_flags: <defaults>
</compile_context>

<pallas_src>
import functools

import jax
import jax.numpy as jnp
from jax import lax
from jax.experimental import pallas as pl
from jax.experimental.pallas import tpu as pltpu


LN_EPS = 1e-5
_VMEM_LIMIT = 64 * 1024 * 1024  # explicit scoped-VMEM limit; re-derive for v7x / prod shapes


# ----------------------------- in-kernel helpers ----------------------------

def _mm_bias(x, w_ref, b_ref):
    """(M, K) @ (K, N) + (1, N). bf16 MXU inputs, f32 accumulation."""
    return jnp.dot(x.astype(jnp.bfloat16), w_ref[...],
                   preferred_element_type=jnp.float32) + b_ref[...]


def _layernorm(x, g, b):
    mu = jnp.mean(x, axis=-1, keepdims=True)
    var = jnp.mean(jnp.square(x - mu), axis=-1, keepdims=True)
    return (x - mu) * lax.rsqrt(var + LN_EPS) * g + b


def _attention(q, k, v):
    """Single-head SDPA on one batch element.
    q: (Tq, D) f32; k, v: (Tk, D) f32 or bf16 -> (Tq, D) f32."""
    scale = 1.0 / jnp.sqrt(jnp.float32(q.shape[-1]))
    qb = (q * scale).astype(jnp.bfloat16)          # fold scale into Q
    kb = k.astype(jnp.bfloat16)
    # contract last dims -> no explicit transpose on the critical path
    s = lax.dot_general(qb, kb, (((1,), (1,)), ((), ())),
                        preferred_element_type=jnp.float32)
    s = s - jnp.max(s, axis=-1, keepdims=True)
    p = jnp.exp(s)
    p = p * pl.reciprocal(jnp.sum(p, axis=-1, keepdims=True), approx=True)
    return jnp.dot(p.astype(jnp.bfloat16), v.astype(jnp.bfloat16),
                   preferred_element_type=jnp.float32)


# ------------------------------- fused kernels -------------------------------

def _encoder_kernel(chunks_ref, pe_ref, wave_w_ref, wave_b_ref,
                    wq_ref, bq_ref, wk_ref, bk_ref, wv_ref, bv_ref,
                    wo_ref, bo_ref, ln1_g_ref, ln1_b_ref,
                    w1_ref, b1_ref, w2_ref, b2_ref, ln2_g_ref, ln2_b_ref,
                    c_wk_ref, c_bk_ref, c_wv_ref, c_bv_ref,
                    k_mem_ref, v_mem_ref):
    """One batch element: wave projection + PE + encoder layer + cross K/V."""
    # Wave2Chunk linear projection + positional encoding (PE broadcast in-kernel).
    x = _mm_bias(chunks_ref[0], wave_w_ref, wave_b_ref) + pe_ref[...]   # (Tw, D)

    # Self-attention (separate Q/K/V matmuls: no sub-lane slicing of a fused buffer).
    q = _mm_bias(x, wq_ref, bq_ref)
    k = _mm_bias(x, wk_ref, bk_ref)
    v = _mm_bias(x, wv_ref, bv_ref)
    a = _mm_bias(_attention(q, k, v), wo_ref, bo_ref)
    x1 = _layernorm(x + a, ln1_g_ref[...], ln1_b_ref[...])

    # FFN.
    f = jnp.maximum(_mm_bias(x1, w1_ref, b1_ref), 0.0)
    f = _mm_bias(f, w2_ref, b2_ref)
    x2 = _layernorm(x1 + f, ln2_g_ref[...], ln2_b_ref[...])

    # Hoisted cross-attention K/V projection of the encoder memory, stored bf16
    # (shared by every decoder head; halves HBM writeback / per-head re-read).
    k_mem_ref[0] = _mm_bias(x2, c_wk_ref, c_bk_ref).astype(jnp.bfloat16)
    v_mem_ref[0] = _mm_bias(x2, c_wv_ref, c_bv_ref).astype(jnp.bfloat16)


def _decoder_kernel(y_ref, k_mem_ref, v_mem_ref,
                    s_wq_ref, s_bq_ref, s_wk_ref, s_bk_ref, s_wv_ref, s_bv_ref,
                    s_wo_ref, s_bo_ref, ln1_g_ref, ln1_b_ref,
                    c_wq_ref, c_bq_ref, c_wo_ref, c_bo_ref, ln2_g_ref, ln2_b_ref,
                    w1_ref, b1_ref, w2_ref, b2_ref, ln3_g_ref, ln3_b_ref,
                    head_w_ref, head_b_ref,
                    logits_ref,
                    y3_sc):
    """Grid = (batch, vocab_tile).  Decoder layer computed once per batch element
    (vocab tile 0) into VMEM scratch; every vocab tile does a lane-dense head
    matmul + store."""
    @pl.when(pl.program_id(1) == 0)
    def _():
        y = y_ref[0]                                                      # (Tt, D)

        # Self-attention.
        # TODO(synk): Decoder definition is not provided; self-attention is left
        # unmasked (the reference forward never applies look_ahead_mask).
        q = _mm_bias(y, s_wq_ref, s_bq_ref)
        k = _mm_bias(y, s_wk_ref, s_bk_ref)
        v = _mm_bias(y, s_wv_ref, s_bv_ref)
        a = _mm_bias(_attention(q, k, v), s_wo_ref, s_bo_ref)
        y1 = _layernorm(y + a, ln1_g_ref[...], ln1_b_ref[...])

        # Cross-attention against the precomputed bf16 memory K/V.
        qc = _mm_bias(y1, c_wq_ref, c_bq_ref)
        ac = _attention(qc, k_mem_ref[0], v_mem_ref[0])
        ac = _mm_bias(ac, c_wo_ref, c_bo_ref)
        y2 = _layernorm(y1 + ac, ln2_g_ref[...], ln2_b_ref[...])

        # FFN.
        f = jnp.maximum(_mm_bias(y2, w1_ref, b1_ref), 0.0)
        f = _mm_bias(f, w2_ref, b2_ref)
        y3_sc[...] = _layernorm(y2 + f, ln3_g_ref[...], ln3_b_ref[...])

    # Output head for the current vocab tile (lane-dense, multiple of 128).
    logits_ref[0] = _mm_bias(y3_sc[...], head_w_ref, head_b_ref)


# --------------------------------- wrappers ----------------------------------

def _const_spec(shape):
    zeros = (0,) * len(shape)
    return pl.BlockSpec(shape, lambda *_: zeros)   # block index never changes -> resident


def _encoder_call(params, chunks, pe, B, Tw):
    enc, dec = params["enc"], params["dec"]
    D = params["cfg"]["d_model"]
    chunk = params["cfg"]["chunk"]
    weights = (params["wave_w"], params["wave_b"],
               enc["wq"], enc["bq"], enc["wk"], enc["bk"], enc["wv"], enc["bv"],
               enc["wo"], enc["bo"], enc["ln1_g"], enc["ln1_b"],
               enc["w1"], enc["b1"], enc["w2"], enc["b2"],
               enc["ln2_g"], enc["ln2_b"],
               dec["c_wk"], dec["c_bk"], dec["c_wv"], dec["c_bv"])
    in_specs = ([pl.BlockSpec((1, Tw, chunk), lambda b: (b, 0, 0)),
                 _const_spec(pe.shape)]
                + [_const_spec(w.shape) for w in weights])
    out_specs = [pl.BlockSpec((1, Tw, D), lambda b: (b, 0, 0)),
                 pl.BlockSpec((1, Tw, D), lambda b: (b, 0, 0))]
    out_shape = [jax.ShapeDtypeStruct((B, Tw, D), jnp.bfloat16),
                 jax.ShapeDtypeStruct((B, Tw, D), jnp.bfloat16)]
    k_mem, v_mem = pl.pallas_call(
        _encoder_kernel,
        out_shape=out_shape,
        grid=(B,),
        in_specs=in_specs,
        out_specs=out_specs,
        compiler_params=pltpu.CompilerParams(
            dimension_semantics=("parallel",),
            vmem_limit_bytes=_VMEM_LIMIT),
    )(chunks, pe, *weights)
    return k_mem, v_mem


def _decoder_call(params, hp, y, k_mem, v_mem, B, Tt, Tw):
    dec = params["dec"]
    D = params["cfg"]["d_model"]
    vt = hp["vt"]
    voc_p = hp["head_w"].shape[1]
    n_v = voc_p // vt
    weights = (dec["s_wq"], dec["s_bq"], dec["s_wk"], dec["s_bk"],
               dec["s_wv"], dec["s_bv"], dec["s_wo"], dec["s_bo"],
               dec["ln1_g"], dec["ln1_b"],
               dec["c_wq"], dec["c_bq"], dec["c_wo"], dec["c_bo"],
               dec["ln2_g"], dec["ln2_b"],
               dec["w1"], dec["b1"], dec["w2"], dec["b2"],
               dec["ln3_g"], dec["ln3_b"])
    in_specs = ([pl.BlockSpec((1, Tt, D), lambda b, j: (b, 0, 0)),
                 pl.BlockSpec((1, Tw, D), lambda b, j: (b, 0, 0)),
                 pl.BlockSpec((1, Tw, D), lambda b, j: (b, 0, 0))]
                + [_const_spec(w.shape) for w in weights]
                + [pl.BlockSpec((D, vt), lambda b, j: (0, j)),     # head weight: vocab-tiled
                   pl.BlockSpec((1, vt), lambda b, j: (0, j))])
    out_specs = pl.BlockSpec((1, Tt, vt), lambda b, j: (b, 0, j))
    out_shape = jax.ShapeDtypeStruct((B, Tt, voc_p), jnp.float32)
    return pl.pallas_call(
        _decoder_kernel,
        out_shape=out_shape,
        grid=(B, n_v),
        in_specs=in_specs,
        out_specs=out_specs,
        scratch_shapes=[pltpu.VMEM((Tt, D), jnp.float32)],
        compiler_params=pltpu.CompilerParams(
            dimension_semantics=("parallel", "arbitrary"),
            vmem_limit_bytes=_VMEM_LIMIT),
    )(y, k_mem, v_mem, *weights, hp["head_w"], hp["head_b"])


# --------------------------- model building blocks --------------------------

def positional_encoding(length, depth, n=10000):
    """Exact port of Model.pe(): sin on even columns, cos on odd columns of
    the same angle matrix."""
    positions = jnp.arange(length, dtype=jnp.float32)[:, None]
    depths = jnp.arange(depth, dtype=jnp.float32)[None, :] / float(depth)
    angle_rates = 1.0 / jnp.power(float(n), depths)
    angle_rads = positions * angle_rates
    even = (jnp.arange(depth) % 2 == 0)[None, :]
    return jnp.where(even, jnp.sin(angle_rads), jnp.cos(angle_rads)).astype(
        jnp.float32
    )


def model_forward(params, wave, target):
    """wave: (B, L) f32; target: dict head_name -> (B, Tt) int32.
    Returns {head: {'predection': (B, Tt, voc_size) f32}}."""
    cfg = params["cfg"]
    D = cfg["d_model"]
    chunk = cfg["chunk"]

    # Wave2Chunk framing (plain reshape); PE passed once as (Tw, D).
    B, L = wave.shape
    Tw = L // chunk
    chunks = wave.reshape(B, Tw, chunk)
    pe_enc = positional_encoding(Tw, D)

    # Fused: wave projection + PE + encoder layer + cross-attn K/V (bf16) of memory.
    k_mem, v_mem = _encoder_call(params, chunks, pe_enc, B, Tw)

    # TODO(synk): with several heads of identical Tt/vocab, stack them on the
    # batch grid axis so decoder weights / memory are DMA'd once, not per head.
    model_output = {}
    for h in cfg["head_names"]:
        ids = target[h]
        if ids.ndim < 2:
            ids = ids.reshape(1, -1)
        hp = params["heads"][h]
        emb = hp["emb"][ids]                                     # (B, Tt, D) gather (plain JAX)
        Bt, Tt, _ = emb.shape
        y = emb + positional_encoding(Tt, D)[None, :, :]

        # Fused decoder layer + vocab-tiled output head (padding sliced off here).
        logits_p = _decoder_call(params, hp, y, k_mem, v_mem, Bt, Tt, Tw)
        model_output[h] = {"predection": logits_p[:, :, :hp["voc_size"]]}
    return model_output


# ------------------------------ parameter init ------------------------------

def init_params(key, *, d_model, chunk, d_ff, head_names, head_params):
    keys = iter(jax.random.split(key, 64))

    def dense(k_in, k_out, scale=0.02):
        w = scale * jax.random.normal(next(keys), (k_in, k_out), jnp.float32)
        return w.astype(jnp.bfloat16), jnp.zeros((1, k_out), jnp.float32)

    def ln():
        return (jnp.ones((1, d_model), jnp.float32),
                jnp.zeros((1, d_model), jnp.float32))

    wave_w, wave_b = dense(chunk, d_model)

    enc = {}
    enc["wq"], enc["bq"] = dense(d_model, d_model)
    enc["wk"], enc["bk"] = dense(d_model, d_model)
    enc["wv"], enc["bv"] = dense(d_model, d_model)
    enc["wo"], enc["bo"] = dense(d_model, d_model)
    enc["w1"], enc["b1"] = dense(d_model, d_ff)
    enc["w2"], enc["b2"] = dense(d_ff, d_model)
    enc["ln1_g"], enc["ln1_b"] = ln()
    enc["ln2_g"], enc["ln2_b"] = ln()

    dec = {}
    dec["s_wq"], dec["s_bq"] = dense(d_model, d_model)
    dec["s_wk"], dec["s_bk"] = dense(d_model, d_model)
    dec["s_wv"], dec["s_bv"] = dense(d_model, d_model)
    dec["s_wo"], dec["s_bo"] = dense(d_model, d_model)
    dec["c_wq"], dec["c_bq"] = dense(d_model, d_model)
    dec["c_wk"], dec["c_bk"] = dense(d_model, d_model)
    dec["c_wv"], dec["c_bv"] = dense(d_model, d_model)
    dec["c_wo"], dec["c_bo"] = dense(d_model, d_model)
    dec["w1"], dec["b1"] = dense(d_model, d_ff)
    dec["w2"], dec["b2"] = dense(d_ff, d_model)
    dec["ln1_g"], dec["ln1_b"] = ln()
    dec["ln2_g"], dec["ln2_b"] = ln()
    dec["ln3_g"], dec["ln3_b"] = ln()

    heads = {}
    for h, pad_idx in head_names.items():
        voc = head_params[h]["voc_size"]
        vt = min(2048, ((voc + 127) // 128) * 128)   # vocab tile: 128-lane multiple
        voc_p = ((voc + vt - 1) // vt) * vt          # pad vocab to a whole number of tiles
        emb = 0.02 * jax.random.normal(next(keys), (voc, d_model), jnp.float32)
        emb = emb.at[pad_idx].set(0.0)               # nn.Embedding padding_idx semantics
        hw = 0.02 * jax.random.normal(next(keys), (d_model, voc), jnp.float32)
        hw = jnp.pad(hw, ((0, 0), (0, voc_p - voc))).astype(jnp.bfloat16)
        hb = jnp.zeros((1, voc_p), jnp.float32)
        heads[h] = {"emb": emb, "head_w": hw, "head_b": hb,
                    "voc_size": voc, "vt": vt}

    return {
        "cfg": {"d_model": d_model, "chunk": chunk, "head_names": head_names},
        "wave_w": wave_w,
        "wave_b": wave_b,
        "enc": enc,
        "dec": dec,
        "heads": heads,
    }


# ----------------------------------- main -----------------------------------

if __name__ == "__main__":
    B = 2
    L = 128          # raw waveform length
    CHUNK = 16       # Wave2Chunk chunk size -> Tw = 8
    D_MODEL = 32
    D_FF = 64
    T_TGT = 8
    VOC = 50
    head_names = {"text": 0}  # head name -> padding idx
    head_params = {"text": {"voc_size": VOC, "d_model": D_MODEL}}

    key = jax.random.PRNGKey(0)
    k_param, k_wave, k_tgt = jax.random.split(key, 3)

    params = init_params(
        k_param,
        d_model=D_MODEL,
        chunk=CHUNK,
        d_ff=D_FF,
        head_names=head_names,
        head_params=head_params,
    )

    wave = jax.random.normal(k_wave, (B, L), jnp.float32)
    target = {"text": jax.random.randint(k_tgt, (B, T_TGT), 0, VOC, jnp.int32)}

    fwd = jax.jit(functools.partial(model_forward, params))
    out = fwd(wave, target)
    jax.block_until_ready(out)

    pred = out["text"]["predection"]
    assert pred.shape == (B, T_TGT, VOC), pred.shape
    assert pred.dtype == jnp.float32
    assert bool(jnp.all(jnp.isfinite(pred)))
    print("KERNEL_OK")
</pallas_src>

<mosaic_0001>
module attributes {stable_mosaic.version = 11 : i64} {
  func.func @_encoder_kernel(%arg0: i32, %arg1: memref<1x8x16xf32, #tpu.memory_space<vmem>>, %arg2: memref<8x32xf32, #tpu.memory_space<vmem>>, %arg3: memref<16x32xbf16, #tpu.memory_space<vmem>>, %arg4: memref<1x32xf32, #tpu.memory_space<vmem>>, %arg5: memref<32x32xbf16, #tpu.memory_space<vmem>>, %arg6: memref<1x32xf32, #tpu.memory_space<vmem>>, %arg7: memref<32x32xbf16, #tpu.memory_space<vmem>>, %arg8: memref<1x32xf32, #tpu.memory_space<vmem>>, %arg9: memref<32x32xbf16, #tpu.memory_space<vmem>>, %arg10: memref<1x32xf32, #tpu.memory_space<vmem>>, %arg11: memref<32x32xbf16, #tpu.memory_space<vmem>>, %arg12: memref<1x32xf32, #tpu.memory_space<vmem>>, %arg13: memref<1x32xf32, #tpu.memory_space<vmem>>, %arg14: memref<1x32xf32, #tpu.memory_space<vmem>>, %arg15: memref<32x64xbf16, #tpu.memory_space<vmem>>, %arg16: memref<1x64xf32, #tpu.memory_space<vmem>>, %arg17: memref<64x32xbf16, #tpu.memory_space<vmem>>, %arg18: memref<1x32xf32, #tpu.memory_space<vmem>>, %arg19: memref<1x32xf32, #tpu.memory_space<vmem>>, %arg20: memref<1x32xf32, #tpu.memory_space<vmem>>, %arg21: memref<32x32xbf16, #tpu.memory_space<vmem>>, %arg22: memref<1x32xf32, #tpu.memory_space<vmem>>, %arg23: memref<32x32xbf16, #tpu.memory_space<vmem>>, %arg24: memref<1x32xf32, #tpu.memory_space<vmem>>, %arg25: memref<1x8x32xbf16, #tpu.memory_space<vmem>>, %arg26: memref<1x8x32xbf16, #tpu.memory_space<vmem>>) attributes {dimension_semantics = [#tpu.dimension_semantics<parallel>], iteration_bounds = array<i64: 2>, scalar_prefetch = 0 : i64, scratch_operands = 0 : i64, tpu.core_type = #tpu.core_type<tc>, window_params = [{transform_indices = @transform_0, window_bounds = array<i64: 1, 8, 16>}, {pipeline_mode = #tpu.pipeline_mode<synchronous>, transform_indices = @transform_1, window_bounds = array<i64: 8, 32>}, {pipeline_mode = #tpu.pipeline_mode<synchronous>, transform_indices = @transform_2, window_bounds = array<i64: 16, 32>}, {pipeline_mode = #tpu.pipeline_mode<synchronous>, transform_indices = @transform_3, window_bounds = array<i64: 1, 32>}, {pipeline_mode = #tpu.pipeline_mode<synchronous>, transform_indices = @transform_4, window_bounds = array<i64: 32, 32>}, {pipeline_mode = #tpu.pipeline_mode<synchronous>, transform_indices = @transform_5, window_bounds = array<i64: 1, 32>}, {pipeline_mode = #tpu.pipeline_mode<synchronous>, transform_indices = @transform_6, window_bounds = array<i64: 32, 32>}, {pipeline_mode = #tpu.pipeline_mode<synchronous>, transform_indices = @transform_7, window_bounds = array<i64: 1, 32>}, {pipeline_mode = #tpu.pipeline_mode<synchronous>, transform_indices = @transform_8, window_bounds = array<i64: 32, 32>}, {pipeline_mode = #tpu.pipeline_mode<synchronous>, transform_indices = @transform_9, window_bounds = array<i64: 1, 32>}, {pipeline_mode = #tpu.pipeline_mode<synchronous>, transform_indices = @transform_10, window_bounds = array<i64: 32, 32>}, {pipeline_mode = #tpu.pipeline_mode<synchronous>, transform_indices = @transform_11, window_bounds = array<i64: 1, 32>}, {pipeline_mode = #tpu.pipeline_mode<synchronous>, transform_indices = @transform_12, window_bounds = array<i64: 1, 32>}, {pipeline_mode = #tpu.pipeline_mode<synchronous>, transform_indices = @transform_13, window_bounds = array<i64: 1, 32>}, {pipeline_mode = #tpu.pipeline_mode<synchronous>, transform_indices = @transform_14, window_bounds = array<i64: 32, 64>}, {pipeline_mode = #tpu.pipeline_mode<synchronous>, transform_indices = @transform_15, window_bounds = array<i64: 1, 64>}, {pipeline_mode = #tpu.pipeline_mode<synchronous>, transform_indices = @transform_16, window_bounds = array<i64: 64, 32>}, {pipeline_mode = #tpu.pipeline_mode<synchronous>, transform_indices = @transform_17, window_bounds = array<i64: 1, 32>}, {pipeline_mode = #tpu.pipeline_mode<synchronous>, transform_indices = @transform_18, window_bounds = array<i64: 1, 32>}, {pipeline_mode = #tpu.pipeline_mode<synchronous>, transform_indices = @transform_19, window_bounds = array<i64: 1, 32>}, {pipeline_mode = #tpu.pipeline_mode<synchronous>, transform_indices = @transform_20, window_bounds = array<i64: 32, 32>}, {pipeline_mode = #tpu.pipeline_mode<synchronous>, transform_indices = @transform_21, window_bounds = array<i64: 1, 32>}, {pipeline_mode = #tpu.pipeline_mode<synchronous>, transform_indices = @transform_22, window_bounds = array<i64: 32, 32>}, {pipeline_mode = #tpu.pipeline_mode<synchronous>, transform_indices = @transform_23, window_bounds = array<i64: 1, 32>}, {transform_indices = @transform_24, window_bounds = array<i64: 1, 8, 32>}, {transform_indices = @transform_25, window_bounds = array<i64: 1, 8, 32>}]} {
    %c0 = arith.constant 0 : index
    %c0_0 = arith.constant 0 : index
    %c0_1 = arith.constant 0 : index
    %0 = vector.load %arg1[%c0, %c0_0, %c0_1] : memref<1x8x16xf32, #tpu.memory_space<vmem>>, vector<1x8x16xf32>
    %1 = vector.shape_cast %0 : vector<1x8x16xf32> to vector<8x16xf32>
    %2 = arith.truncf %1 : vector<8x16xf32> to vector<8x16xbf16>
    %c0_2 = arith.constant 0 : index
    %c0_3 = arith.constant 0 : index
    %3 = vector.load %arg3[%c0_2, %c0_3] : memref<16x32xbf16, #tpu.memory_space<vmem>>, vector<16x32xbf16>
    %cst = arith.constant dense<0.000000e+00> : vector<8x32xf32>
    %4 = tpu.matmul %2, %3, %cst {dimension_numbers = #tpu.dot_dimension_numbers<[1], [0], [0], [1], [0, 0, 1, 1], [], []>} : vector<8x16xbf16>, vector<16x32xbf16>, vector<8x32xf32> -> vector<8x32xf32>
    %c0_4 = arith.constant 0 : index
    %c0_5 = arith.constant 0 : index
    %5 = vector.load %arg4[%c0_4, %c0_5] : memref<1x32xf32, #tpu.memory_space<vmem>>, vector<1x32xf32>
    %6 = vector.broadcast %5 : vector<1x32xf32> to vector<8x32xf32>
    %7 = arith.addf %4, %6 : vector<8x32xf32>
    %c0_6 = arith.constant 0 : index
    %c0_7 = arith.constant 0 : index
    %8 = vector.load %arg2[%c0_6, %c0_7] : memref<8x32xf32, #tpu.memory_space<vmem>>, vector<8x32xf32>
    %9 = arith.addf %7, %8 : vector<8x32xf32>
    %10 = arith.truncf %9 : vector<8x32xf32> to vector<8x32xbf16>
    %c0_8 = arith.constant 0 : index
    %c0_9 = arith.constant 0 : index
    %11 = vector.load %arg5[%c0_8, %c0_9] : memref<32x32xbf16, #tpu.memory_space<vmem>>, vector<32x32xbf16>
    %cst_10 = arith.constant dense<0.000000e+00> : vector<8x32xf32>
    %12 = tpu.matmul %10, %11, %cst_10 {dimension_numbers = #tpu.dot_dimension_numbers<[1], [0], [0], [1], [0, 0, 1, 1], [], []>} : vector<8x32xbf16>, vector<32x32xbf16>, vector<8x32xf32> -> vector<8x32xf32>
    %c0_11 = arith.constant 0 : index
    %c0_12 = arith.constant 0 : index
    %13 = vector.load %arg6[%c0_11, %c0_12] : memref<1x32xf32, #tpu.memory_space<vmem>>, vector<1x32xf32>
    %14 = vector.broadcast %13 : vector<1x32xf32> to vector<8x32xf32>
    %15 = arith.addf %12, %14 : vector<8x32xf32>
    %16 = arith.truncf %9 : vector<8x32xf32> to vector<8x32xbf16>
    %c0_13 = arith.constant 0 : index
    %c0_14 = arith.constant 0 : index
    %17 = vector.load %arg7[%c0_13, %c0_14] : memref<32x32xbf16, #tpu.memory_space<vmem>>, vector<32x32xbf16>
    %cst_15 = arith.constant dense<0.000000e+00> : vector<8x32xf32>
    %18 = tpu.matmul %16, %17, %cst_15 {dimension_numbers = #tpu.dot_dimension_numbers<[1], [0], [0], [1], [0, 0, 1, 1], [], []>} : vector<8x32xbf16>, vector<32x32xbf16>, vector<8x32xf32> -> vector<8x32xf32>
    %c0_16 = arith.constant 0 : index
    %c0_17 = arith.constant 0 : index
    %19 = vector.load %arg8[%c0_16, %c0_17] : memref<1x32xf32, #tpu.memory_space<vmem>>, vector<1x32xf32>
    %20 = vector.broadcast %19 : vector<1x32xf32> to vector<8x32xf32>
    %21 = arith.addf %18, %20 : vector<8x32xf32>
    %22 = arith.truncf %9 : vector<8x32xf32> to vector<8x32xbf16>
    %c0_18 = arith.constant 0 : index
    %c0_19 = arith.constant 0 : index
    %23 = vector.load %arg9[%c0_18, %c0_19] : memref<32x32xbf16, #tpu.memory_space<vmem>>, vector<32x32xbf16>
    %cst_20 = arith.constant dense<0.000000e+00> : vector<8x32xf32>
    %24 = tpu.matmul %22, %23, %cst_20 {dimension_numbers = #tpu.dot_dimension_numbers<[1], [0], [0], [1], [0, 0, 1, 1], [], []>} : vector<8x32xbf16>, vector<32x32xbf16>, vector<8x32xf32> -> vector<8x32xf32>
    %c0_21 = arith.constant 0 : index
    %c0_22 = arith.constant 0 : index
    %25 = vector.load %arg10[%c0_21, %c0_22] : memref<1x32xf32, #tpu.memory_space<vmem>>, vector<1x32xf32>
    %26 = vector.broadcast %25 : vector<1x32xf32> to vector<8x32xf32>
    %27 = arith.addf %24, %26 : vector<8x32xf32>
    %cst_23 = arith.constant 3.200000e+01 : f32
    %28 = math.sqrt %cst_23 : f32
    %cst_24 = arith.constant 1.000000e+00 : f32
    %29 = arith.divf %cst_24, %28 : f32
    %30 = vector.broadcast %29 : f32 to vector<8x32xf32>
    %31 = arith.mulf %15, %30 : vector<8x32xf32>
    %32 = arith.truncf %31 : vector<8x32xf32> to vector<8x32xbf16>
    %33 = arith.truncf %21 : vector<8x32xf32> to vector<8x32xbf16>
    %cst_25 = arith.constant dense<0.000000e+00> : vector<8x8xf32>
    %34 = tpu.matmul %32, %33, %cst_25 {dimension_numbers = #tpu.dot_dimension_numbers<[1], [1], [0], [0], [0, 0, 1, 0], [], []>} : vector<8x32xbf16>, vector<8x32xbf16>, vector<8x8xf32> -> vector<8x8xf32>
    %cst_26 = arith.constant dense<0xFF800000> : vector<8xf32>
    %35 = vector.multi_reduction <maximumf>, %34, %cst_26 [1] : vector<8x8xf32> to vector<8xf32>
    %36 = vector.shape_cast %35 : vector<8xf32> to vector<8x1xf32>
    %37 = vector.broadcast %36 : vector<8x1xf32> to vector<8x8xf32>
    %38 = arith.subf %34, %37 : vector<8x8xf32>
    %39 = math.exp %38 : vector<8x8xf32>
    %cst_27 = arith.constant dense<0.000000e+00> : vector<8xf32>
    %40 = vector.multi_reduction <add>, %39, %cst_27 [1] : vector<8x8xf32> to vector<8xf32>
    %41 = vector.shape_cast %40 : vector<8xf32> to vector<8x1xf32>
    %42 = tpu.reciprocal %41 {approx = true} : vector<8x1xf32> -> vector<8x1xf32>
    %43 = vector.broadcast %42 : vector<8x1xf32> to vector<8x8xf32>
    %44 = arith.mulf %39, %43 : vector<8x8xf32>
    %45 = arith.truncf %44 : vector<8x8xf32> to vector<8x8xbf16>
    %46 = arith.truncf %27 : vector<8x32xf32> to vector<8x32xbf16>
    %cst_28 = arith.constant dense<0.000000e+00> : vector<8x32xf32>
    %47 = tpu.matmul %45, %46, %cst_28 {dimension_numbers = #tpu.dot_dimension_numbers<[1], [0], [0], [1], [0, 0, 1, 1], [], []>} : vector<8x8xbf16>, vector<8x32xbf16>, vector<8x32xf32> -> vector<8x32xf32>
    %48 = arith.truncf %47 : vector<8x32xf32> to vector<8x32xbf16>
    %c0_29 = arith.constant 0 : index
    %c0_30 = arith.constant 0 : index
    %49 = vector.load %arg11[%c0_29, %c0_30] : memref<32x32xbf16, #tpu.memory_space<vmem>>, vector<32x32xbf16>
    %cst_31 = arith.constant dense<0.000000e+00> : vector<8x32xf32>
    %50 = tpu.matmul %48, %49, %cst_31 {dimension_numbers = #tpu.dot_dimension_numbers<[1], [0], [0], [1], [0, 0, 1, 1], [], []>} : vector<8x32xbf16>, vector<32x32xbf16>, vector<8x32xf32> -> vector<8x32xf32>
    %c0_32 = arith.constant 0 : index
    %c0_33 = arith.constant 0 : index
    %51 = vector.load %arg12[%c0_32, %c0_33] : memref<1x32xf32, #tpu.memory_space<vmem>>, vector<1x32xf32>
    %52 = vector.broadcast %51 : vector<1x32xf32> to vector<8x32xf32>
    %53 = arith.addf %50, %52 : vector<8x32xf32>
    %54 = arith.addf %9, %53 : vector<8x32xf32>
    %c0_34 = arith.constant 0 : index
    %c0_35 = arith.constant 0 : index
    %55 = vector.load %arg13[%c0_34, %c0_35] : memref<1x32xf32, #tpu.memory_space<vmem>>, vector<1x32xf32>
    %c0_36 = arith.constant 0 : index
    %c0_37 = arith.constant 0 : index
    %56 = vector.load %arg14[%c0_36, %c0_37] : memref<1x32xf32, #tpu.memory_space<vmem>>, vector<1x32xf32>
    %cst_38 = arith.constant dense<0.000000e+00> : vector<8xf32>
    %57 = vector.multi_reduction <add>, %54, %cst_38 [1] : vector<8x32xf32> to vector<8xf32>
    %58 = vector.shape_cast %57 : vector<8xf32> to vector<8x1xf32>
    %cst_39 = arith.constant 3.200000e+01 : f32
    %59 = vector.broadcast %cst_39 : f32 to vector<8x1xf32>
    %60 = arith.divf %58, %59 : vector<8x1xf32>
    %61 = vector.broadcast %60 : vector<8x1xf32> to vector<8x32xf32>
    %62 = arith.subf %54, %61 : vector<8x32xf32>
    %63 = arith.mulf %62, %62 : vector<8x32xf32>
    %cst_40 = arith.constant dense<0.000000e+00> : vector<8xf32>
    %64 = vector.multi_reduction <add>, %63, %cst_40 [1] : vector<8x32xf32> to vector<8xf32>
    %65 = vector.shape_cast %64 : vector<8xf32> to vector<8x1xf32>
    %cst_41 = arith.constant 3.200000e+01 : f32
    %66 = vector.broadcast %cst_41 : f32 to vector<8x1xf32>
    %67 = arith.divf %65, %66 : vector<8x1xf32>
    %68 = vector.broadcast %60 : vector<8x1xf32> to vector<8x32xf32>
    %69 = arith.subf %54, %68 : vector<8x32xf32>
    %cst_42 = arith.constant 9.99999974E-6 : f32
    %70 = vector.broadcast %cst_42 : f32 to vector<8x1xf32>
    %71 = arith.addf %67, %70 : vector<8x1xf32>
    %72 = math.rsqrt %71 : vector<8x1xf32>
    %73 = vector.broadcast %72 : vector<8x1xf32> to vector<8x32xf32>
    %74 = arith.mulf %69, %73 : vector<8x32xf32>
    %75 = vector.broadcast %55 : vector<1x32xf32> to vector<8x32xf32>
    %76 = arith.mulf %74, %75 : vector<8x32xf32>
    %77 = vector.broadcast %56 : vector<1x32xf32> to vector<8x32xf32>
    %78 = arith.addf %76, %77 : vector<8x32xf32>
    %79 = arith.truncf %78 : vector<8x32xf32> to vector<8x32xbf16>
    %c0_43 = arith.constant 0 : index
    %c0_44 = arith.constant 0 : index
    %80 = vector.load %arg15[%c0_43, %c0_44] : memref<32x64xbf16, #tpu.memory_space<vmem>>, vector<32x64xbf16>
    %cst_45 = arith.constant dense<0.000000e+00> : vector<8x64xf32>
    %81 = tpu.matmul %79, %80, %cst_45 {dimension_numbers = #tpu.dot_dimension_numbers<[1], [0], [0], [1], [0, 0, 1, 1], [], []>} : vector<8x32xbf16>, vector<32x64xbf16>, vector<8x64xf32> -> vector<8x64xf32>
    %c0_46 = arith.constant 0 : index
    %c0_47 = arith.constant 0 : index
    %82 = vector.load %arg16[%c0_46, %c0_47] : memref<1x64xf32, #tpu.memory_space<vmem>>, vector<1x64xf32>
    %83 = vector.broadcast %82 : vector<1x64xf32> to vector<8x64xf32>
    %84 = arith.addf %81, %83 : vector<8x64xf32>
    %cst_48 = arith.constant 0.000000e+00 : f32
    %85 = vector.broadcast %cst_48 : f32 to vector<8x64xf32>
    %86 = arith.maximumf %84, %85 : vector<8x64xf32>
    %87 = arith.truncf %86 : vector<8x64xf32> to vector<8x64xbf16>
    %c0_49 = arith.constant 0 : index
    %c0_50 = arith.constant 0 : index
    %88 = vector.load %arg17[%c0_49, %c0_50] : memref<64x32xbf16, #tpu.memory_space<vmem>>, vector<64x32xbf16>
    %cst_51 = arith.constant dense<0.000000e+00> : vector<8x32xf32>
    %89 = tpu.matmul %87, %88, %cst_51 {dimension_numbers = #tpu.dot_dimension_numbers<[1], [0], [0], [1], [0, 0, 1, 1], [], []>} : vector<8x64xbf16>, vector<64x32xbf16>, vector<8x32xf32> -> vector<8x32xf32>
    %c0_52 = arith.constant 0 : index
    %c0_53 = arith.constant 0 : index
    %90 = vector.load %arg18[%c0_52, %c0_53] : memref<1x32xf32, #tpu.memory_space<vmem>>, vector<1x32xf32>
    %91 = vector.broadcast %90 : vector<1x32xf32> to vector<8x32xf32>
    %92 = arith.addf %89, %91 : vector<8x32xf32>
    %93 = arith.addf %78, %92 : vector<8x32xf32>
    %c0_54 = arith.constant 0 : index
    %c0_55 = arith.constant 0 : index
    %94 = vector.load %arg19[%c0_54, %c0_55] : memref<1x32xf32, #tpu.memory_space<vmem>>, vector<1x32xf32>
    %c0_56 = arith.constant 0 : index
    %c0_57 = arith.constant 0 : index
    %95 = vector.load %arg20[%c0_56, %c0_57] : memref<1x32xf32, #tpu.memory_space<vmem>>, vector<1x32xf32>
    %cst_58 = arith.constant dense<0.000000e+00> : vector<8xf32>
    %96 = vector.multi_reduction <add>, %93, %cst_58 [1] : vector<8x32xf32> to vector<8xf32>
    %97 = vector.shape_cast %96 : vector<8xf32> to vector<8x1xf32>
    %cst_59 = arith.constant 3.200000e+01 : f32
    %98 = vector.broadcast %cst_59 : f32 to vector<8x1xf32>
    %99 = arith.divf %97, %98 : vector<8x1xf32>
    %100 = vector.broadcast %99 : vector<8x1xf32> to vector<8x32xf32>
    %101 = arith.subf %93, %100 : vector<8x32xf32>
    %102 = arith.mulf %101, %101 : vector<8x32xf32>
    %cst_60 = arith.constant dense<0.000000e+00> : vector<8xf32>
    %103 = vector.multi_reduction <add>, %102, %cst_60 [1] : vector<8x32xf32> to vector<8xf32>
    %104 = vector.shape_cast %103 : vector<8xf32> to vector<8x1xf32>
    %cst_61 = arith.constant 3.200000e+01 : f32
    %105 = vector.broadcast %cst_61 : f32 to vector<8x1xf32>
    %106 = arith.divf %104, %105 : vector<8x1xf32>
    %107 = vector.broadcast %99 : vector<8x1xf32> to vector<8x32xf32>
    %108 = arith.subf %93, %107 : vector<8x32xf32>
    %cst_62 = arith.constant 9.99999974E-6 : f32
    %109 = vector.broadcast %cst_62 : f32 to vector<8x1xf32>
    %110 = arith.addf %106, %109 : vector<8x1xf32>
    %111 = math.rsqrt %110 : vector<8x1xf32>
    %112 = vector.broadcast %111 : vector<8x1xf32> to vector<8x32xf32>
    %113 = arith.mulf %108, %112 : vector<8x32xf32>
    %114 = vector.broadcast %94 : vector<1x32xf32> to vector<8x32xf32>
    %115 = arith.mulf %113, %114 : vector<8x32xf32>
    %116 = vector.broadcast %95 : vector<1x32xf32> to vector<8x32xf32>
    %117 = arith.addf %115, %116 : vector<8x32xf32>
    %118 = arith.truncf %117 : vector<8x32xf32> to vector<8x32xbf16>
    %c0_63 = arith.constant 0 : index
    %c0_64 = arith.constant 0 : index
    %119 = vector.load %arg21[%c0_63, %c0_64] : memref<32x32xbf16, #tpu.memory_space<vmem>>, vector<32x32xbf16>
    %cst_65 = arith.constant dense<0.000000e+00> : vector<8x32xf32>
    %120 = tpu.matmul %118, %119, %cst_65 {dimension_numbers = #tpu.dot_dimension_numbers<[1], [0], [0], [1], [0, 0, 1, 1], [], []>} : vector<8x32xbf16>, vector<32x32xbf16>, vector<8x32xf32> -> vector<8x32xf32>
    %c0_66 = arith.constant 0 : index
    %c0_67 = arith.constant 0 : index
    %121 = vector.load %arg22[%c0_66, %c0_67] : memref<1x32xf32, #tpu.memory_space<vmem>>, vector<1x32xf32>
    %122 = vector.broadcast %121 : vector<1x32xf32> to vector<8x32xf32>
    %123 = arith.addf %120, %122 : vector<8x32xf32>
    %124 = arith.truncf %123 : vector<8x32xf32> to vector<8x32xbf16>
    %c0_68 = arith.constant 0 : index
    %c0_69 = arith.constant 0 : index
    %c0_70 = arith.constant 0 : index
    %125 = vector.load %arg25[%c0_68, %c0_69, %c0_70] : memref<1x8x32xbf16, #tpu.memory_space<vmem>>, vector<1x8x32xbf16>
    %126 = vector.shape_cast %125 : vector<1x8x32xbf16> to vector<8x32xbf16>
    %127 = vector.shape_cast %124 : vector<8x32xbf16> to vector<1x8x32xbf16>
    tpu.vector_store %arg25[%c0_68, %c0_69, %c0_70], %127 {strides = array<i32>} : memref<1x8x32xbf16, #tpu.memory_space<vmem>>, vector<1x8x32xbf16>,
    %128 = arith.truncf %117 : vector<8x32xf32> to vector<8x32xbf16>
    %c0_71 = arith.constant 0 : index
    %c0_72 = arith.constant 0 : index
    %129 = vector.load %arg23[%c0_71, %c0_72] : memref<32x32xbf16, #tpu.memory_space<vmem>>, vector<32x32xbf16>
    %cst_73 = arith.constant dense<0.000000e+00> : vector<8x32xf32>
    %130 = tpu.matmul %128, %129, %cst_73 {dimension_numbers = #tpu.dot_dimension_numbers<[1], [0], [0], [1], [0, 0, 1, 1], [], []>} : vector<8x32xbf16>, vector<32x32xbf16>, vector<8x32xf32> -> vector<8x32xf32>
    %c0_74 = arith.constant 0 : index
    %c0_75 = arith.constant 0 : index
    %131 = vector.load %arg24[%c0_74, %c0_75] : memref<1x32xf32, #tpu.memory_space<vmem>>, vector<1x32xf32>
    %132 = vector.broadcast %131 : vector<1x32xf32> to vector<8x32xf32>
    %133 = arith.addf %130, %132 : vector<8x32xf32>
    %134 = arith.truncf %133 : vector<8x32xf32> to vector<8x32xbf16>
    %c0_76 = arith.constant 0 : index
    %c0_77 = arith.constant 0 : index
    %c0_78 = arith.constant 0 : index
    %135 = vector.load %arg26[%c0_76, %c0_77, %c0_78] : memref<1x8x32xbf16, #tpu.memory_space<vmem>>, vector<1x8x32xbf16>
    %136 = vector.shape_cast %135 : vector<1x8x32xbf16> to vector<8x32xbf16>
    %137 = vector.shape_cast %134 : vector<8x32xbf16> to vector<1x8x32xbf16>
    tpu.vector_store %arg26[%c0_76, %c0_77, %c0_78], %137 {strides = array<i32>} : memref<1x8x32xbf16, #tpu.memory_space<vmem>>, vector<1x8x32xbf16>,
    return
  }
  func.func @transform_0(%arg0: i32) -> (i32, i32, i32) {
    %c0_i32 = arith.constant 0 : i32
    %c0_i32_0 = arith.constant 0 : i32
    %c0_i32_1 = arith.constant 0 : i32
    return %arg0, %c0_i32, %c0_i32_0 : i32, i32, i32
  }
  func.func @transform_1(%arg0: i32) -> (i32, i32) {
    %c0_i32 = arith.constant 0 : i32
    %c0_i32_0 = arith.constant 0 : i32
    %c0_i32_1 = arith.constant 0 : i32
    return %c0_i32, %c0_i32_0 : i32, i32
  }
  func.func @transform_2(%arg0: i32) -> (i32, i32) {
    %c0_i32 = arith.constant 0 : i32
    %c0_i32_0 = arith.constant 0 : i32
    %c0_i32_1 = arith.constant 0 : i32
    return %c0_i32, %c0_i32_0 : i32, i32
  }
  func.func @transform_3(%arg0: i32) -> (i32, i32) {
    %c0_i32 = arith.constant 0 : i32
    %c0_i32_0 = arith.constant 0 : i32
    %c0_i32_1 = arith.constant 0 : i32
    return %c0_i32, %c0_i32_0 : i32, i32
  }
  func.func @transform_4(%arg0: i32) -> (i32, i32) {
    %c0_i32 = arith.constant 0 : i32
    %c0_i32_0 = arith.constant 0 : i32
    %c0_i32_1 = arith.constant 0 : i32
    return %c0_i32, %c0_i32_0 : i32, i32
  }
  func.func @transform_5(%arg0: i32) -> (i32, i32) {
    %c0_i32 = arith.constant 0 : i32
    %c0_i32_0 = arith.constant 0 : i32
    %c0_i32_1 = arith.constant 0 : i32
    return %c0_i32, %c0_i32_0 : i32, i32
  }
  func.func @transform_6(%arg0: i32) -> (i32, i32) {
    %c0_i32 = arith.constant 0 : i32
    %c0_i32_0 = arith.constant 0 : i32
    %c0_i32_1 = arith.constant 0 : i32
    return %c0_i32, %c0_i32_0 : i32, i32
  }
  func.func @transform_7(%arg0: i32) -> (i32, i32) {
    %c0_i32 = arith.constant 0 : i32
    %c0_i32_0 = arith.constant 0 : i32
    %c0_i32_1 = arith.constant 0 : i32
    return %c0_i32, %c0_i32_0 : i32, i32
  }
  func.func @transform_8(%arg0: i32) -> (i32, i32) {
    %c0_i32 = arith.constant 0 : i32
    %c0_i32_0 = arith.constant 0 : i32
    %c0_i32_1 = arith.constant 0 : i32
    return %c0_i32, %c0_i32_0 : i32, i32
  }
  func.func @transform_9(%arg0: i32) -> (i32, i32) {
    %c0_i32 = arith.constant 0 : i32
    %c0_i32_0 = arith.constant 0 : i32
    %c0_i32_1 = arith.constant 0 : i32
    return %c0_i32, %c0_i32_0 : i32, i32
  }
  func.func @transform_10(%arg0: i32) -> (i32, i32) {
    %c0_i32 = arith.constant 0 : i32
    %c0_i32_0 = arith.constant 0 : i32
    %c0_i32_1 = arith.constant 0 : i32
    return %c0_i32, %c0_i32_0 : i32, i32
  }
  func.func @transform_11(%arg0: i32) -> (i32, i32) {
    %c0_i32 = arith.constant 0 : i32
    %c0_i32_0 = arith.constant 0 : i32
    %c0_i32_1 = arith.constant 0 : i32
    return %c0_i32, %c0_i32_0 : i32, i32
  }
  func.func @transform_12(%arg0: i32) -> (i32, i32) {
    %c0_i32 = arith.constant 0 : i32
    %c0_i32_0 = arith.constant 0 : i32
    %c0_i32_1 = arith.constant 0 : i32
    return %c0_i32, %c0_i32_0 : i32, i32
  }
  func.func @transform_13(%arg0: i32) -> (i32, i32) {
    %c0_i32 = arith.constant 0 : i32
    %c0_i32_0 = arith.constant 0 : i32
    %c0_i32_1 = arith.constant 0 : i32
    return %c0_i32, %c0_i32_0 : i32, i32
  }
  func.func @transform_14(%arg0: i32) -> (i32, i32) {
    %c0_i32 = arith.constant 0 : i32
    %c0_i32_0 = arith.constant 0 : i32
    %c0_i32_1 = arith.constant 0 : i32
    return %c0_i32, %c0_i32_0 : i32, i32
  }
  func.func @transform_15(%arg0: i32) -> (i32, i32) {
    %c0_i32 = arith.constant 0 : i32
    %c0_i32_0 = arith.constant 0 : i32
    %c0_i32_1 = arith.constant 0 : i32
    return %c0_i32, %c0_i32_0 : i32, i32
  }
  func.func @transform_16(%arg0: i32) -> (i32, i32) {
    %c0_i32 = arith.constant 0 : i32
    %c0_i32_0 = arith.constant 0 : i32
    %c0_i32_1 = arith.constant 0 : i32
    return %c0_i32, %c0_i32_0 : i32, i32
  }
  func.func @transform_17(%arg0: i32) -> (i32, i32) {
    %c0_i32 = arith.constant 0 : i32
    %c0_i32_0 = arith.constant 0 : i32
    %c0_i32_1 = arith.constant 0 : i32
    return %c0_i32, %c0_i32_0 : i32, i32
  }
  func.func @transform_18(%arg0: i32) -> (i32, i32) {
    %c0_i32 = arith.constant 0 : i32
    %c0_i32_0 = arith.constant 0 : i32
    %c0_i32_1 = arith.constant 0 : i32
    return %c0_i32, %c0_i32_0 : i32, i32
  }
  func.func @transform_19(%arg0: i32) -> (i32, i32) {
    %c0_i32 = arith.constant 0 : i32
    %c0_i32_0 = arith.constant 0 : i32
    %c0_i32_1 = arith.constant 0 : i32
    return %c0_i32, %c0_i32_0 : i32, i32
  }
  func.func @transform_20(%arg0: i32) -> (i32, i32) {
    %c0_i32 = arith.constant 0 : i32
    %c0_i32_0 = arith.constant 0 : i32
    %c0_i32_1 = arith.constant 0 : i32
    return %c0_i32, %c0_i32_0 : i32, i32
  }
  func.func @transform_21(%arg0: i32) -> (i32, i32) {
    %c0_i32 = arith.constant 0 : i32
    %c0_i32_0 = arith.constant 0 : i32
    %c0_i32_1 = arith.constant 0 : i32
    return %c0_i32, %c0_i32_0 : i32, i32
  }
  func.func @transform_22(%arg0: i32) -> (i32, i32) {
    %c0_i32 = arith.constant 0 : i32
    %c0_i32_0 = arith.constant 0 : i32
    %c0_i32_1 = arith.constant 0 : i32
    return %c0_i32, %c0_i32_0 : i32, i32
  }
  func.func @transform_23(%arg0: i32) -> (i32, i32) {
    %c0_i32 = arith.constant 0 : i32
    %c0_i32_0 = arith.constant 0 : i32
    %c0_i32_1 = arith.constant 0 : i32
    return %c0_i32, %c0_i32_0 : i32, i32
  }
  func.func @transform_24(%arg0: i32) -> (i32, i32, i32) {
    %c0_i32 = arith.constant 0 : i32
    %c0_i32_0 = arith.constant 0 : i32
    %c0_i32_1 = arith.constant 0 : i32
    return %arg0, %c0_i32, %c0_i32_0 : i32, i32, i32
  }
  func.func @transform_25(%arg0: i32) -> (i32, i32, i32) {
    %c0_i32 = arith.constant 0 : i32
    %c0_i32_0 = arith.constant 0 : i32
    %c0_i32_1 = arith.constant 0 : i32
    return %arg0, %c0_i32, %c0_i32_0 : i32, i32, i32
  }
}

module attributes {stable_mosaic.version = 11 : i64} {
  func.func @_decoder_kernel(%arg0: i32, %arg1: i32, %arg2: memref<1x8x32xf32, #tpu.memory_space<vmem>>, %arg3: memref<1x8x32xbf16, #tpu.memory_space<vmem>>, %arg4: memref<1x8x32xbf16, #tpu.memory_space<vmem>>, %arg5: memref<32x32xbf16, #tpu.memory_space<vmem>>, %arg6: memref<1x32xf32, #tpu.memory_space<vmem>>, %arg7: memref<32x32xbf16, #tpu.memory_space<vmem>>, %arg8: memref<1x32xf32, #tpu.memory_space<vmem>>, %arg9: memref<32x32xbf16, #tpu.memory_space<vmem>>, %arg10: memref<1x32xf32, #tpu.memory_space<vmem>>, %arg11: memref<32x32xbf16, #tpu.memory_space<vmem>>, %arg12: memref<1x32xf32, #tpu.memory_space<vmem>>, %arg13: memref<1x32xf32, #tpu.memory_space<vmem>>, %arg14: memref<1x32xf32, #tpu.memory_space<vmem>>, %arg15: memref<32x32xbf16, #tpu.memory_space<vmem>>, %arg16: memref<1x32xf32, #tpu.memory_space<vmem>>, %arg17: memref<32x32xbf16, #tpu.memory_space<vmem>>, %arg18: memref<1x32xf32, #tpu.memory_space<vmem>>, %arg19: memref<1x32xf32, #tpu.memory_space<vmem>>, %arg20: memref<1x32xf32, #tpu.memory_space<vmem>>, %arg21: memref<32x64xbf16, #tpu.memory_space<vmem>>, %arg22: memref<1x64xf32, #tpu.memory_space<vmem>>, %arg23: memref<64x32xbf16, #tpu.memory_space<vmem>>, %arg24: memref<1x32xf32, #tpu.memory_space<vmem>>, %arg25: memref<1x32xf32, #tpu.memory_space<vmem>>, %arg26: memref<1x32xf32, #tpu.memory_space<vmem>>, %arg27: memref<32x128xbf16, #tpu.memory_space<vmem>>, %arg28: memref<1x128xf32, #tpu.memory_space<vmem>>, %arg29: memref<1x8x128xf32, #tpu.memory_space<vmem>>, %arg30: memref<8x32xf32, #tpu.memory_space<vmem>>) attributes {dimension_semantics = [#tpu.dimension_semantics<parallel>, #tpu.dimension_semantics<arbitrary>], iteration_bounds = array<i64: 2, 1>, scalar_prefetch = 0 : i64, scratch_operands = 1 : i64, tpu.core_type = #tpu.core_type<tc>, window_params = [{transform_indices = @transform_0, window_bounds = array<i64: 1, 8, 32>}, {transform_indices = @transform_1, window_bounds = array<i64: 1, 8, 32>}, {transform_indices = @transform_2, window_bounds = array<i64: 1, 8, 32>}, {pipeline_mode = #tpu.pipeline_mode<synchronous>, transform_indices = @transform_3, window_bounds = array<i64: 32, 32>}, {pipeline_mode = #tpu.pipeline_mode<synchronous>, transform_indices = @transform_4, window_bounds = array<i64: 1, 32>}, {pipeline_mode = #tpu.pipeline_mode<synchronous>, transform_indices = @transform_5, window_bounds = array<i64: 32, 32>}, {pipeline_mode = #tpu.pipeline_mode<synchronous>, transform_indices = @transform_6, window_bounds = array<i64: 1, 32>}, {pipeline_mode = #tpu.pipeline_mode<synchronous>, transform_indices = @transform_7, window_bounds = array<i64: 32, 32>}, {pipeline_mode = #tpu.pipeline_mode<synchronous>, transform_indices = @transform_8, window_bounds = array<i64: 1, 32>}, {pipeline_mode = #tpu.pipeline_mode<synchronous>, transform_indices = @transform_9, window_bounds = array<i64: 32, 32>}, {pipeline_mode = #tpu.pipeline_mode<synchronous>, transform_indices = @transform_10, window_bounds = array<i64: 1, 32>}, {pipeline_mode = #tpu.pipeline_mode<synchronous>, transform_indices = @transform_11, window_bounds = array<i64: 1, 32>}, {pipeline_mode = #tpu.pipeline_mode<synchronous>, transform_indices = @transform_12, window_bounds = array<i64: 1, 32>}, {pipeline_mode = #tpu.pipeline_mode<synchronous>, transform_indices = @transform_13, window_bounds = array<i64: 32, 32>}, {pipeline_mode = #tpu.pipeline_mode<synchronous>, transform_indices = @transform_14, window_bounds = array<i64: 1, 32>}, {pipeline_mode = #tpu.pipeline_mode<synchronous>, transform_indices = @transform_15, window_bounds = array<i64: 32, 32>}, {pipeline_mode = #tpu.pipeline_mode<synchronous>, transform_indices = @transform_16, window_bounds = array<i64: 1, 32>}, {pipeline_mode = #tpu.pipeline_mode<synchronous>, transform_indices = @transform_17, window_bounds = array<i64: 1, 32>}, {pipeline_mode = #tpu.pipeline_mode<synchronous>, transform_indices = @transform_18, window_bounds = array<i64: 1, 32>}, {pipeline_mode = #tpu.pipeline_mode<synchronous>, transform_indices = @transform_19, window_bounds = array<i64: 32, 64>}, {pipeline_mode = #tpu.pipeline_mode<synchronous>, transform_indices = @transform_20, window_bounds = array<i64: 1, 64>}, {pipeline_mode = #tpu.pipeline_mode<synchronous>, transform_indices = @transform_21, window_bounds = array<i64: 64, 32>}, {pipeline_mode = #tpu.pipeline_mode<synchronous>, transform_indices = @transform_22, window_bounds = array<i64: 1, 32>}, {pipeline_mode = #tpu.pipeline_mode<synchronous>, transform_indices = @transform_23, window_bounds = array<i64: 1, 32>}, {pipeline_mode = #tpu.pipeline_mode<synchronous>, transform_indices = @transform_24, window_bounds = array<i64: 1, 32>}, {transform_indices = @transform_25, window_bounds = array<i64: 32, 128>}, {transform_indices = @transform_26, window_bounds = array<i64: 1, 128>}, {transform_indices = @transform_27, window_bounds = array<i64: 1, 8, 128>}]} {
    %c0_i32 = arith.constant 0 : i32
    %0 = arith.cmpi eq, %arg1, %c0_i32 : i32
    %1 = arith.extui %0 : i1 to i32
    %c0_i32_0 = arith.constant 0 : i32
    %2 = arith.cmpi ne, %1, %c0_i32_0 : i32
    scf.if %2 {
      %c0_9 = arith.constant 0 : index
      %c0_10 = arith.constant 0 : index
      %c0_11 = arith.constant 0 : index
      %13 = vector.load %arg2[%c0_9, %c0_10, %c0_11] : memref<1x8x32xf32, #tpu.memory_space<vmem>>, vector<1x8x32xf32>
      %14 = vector.shape_cast %13 : vector<1x8x32xf32> to vector<8x32xf32>
      %15 = arith.truncf %14 : vector<8x32xf32> to vector<8x32xbf16>
      %c0_12 = arith.constant 0 : index
      %c0_13 = arith.constant 0 : index
      %16 = vector.load %arg5[%c0_12, %c0_13] : memref<32x32xbf16, #tpu.memory_space<vmem>>, vector<32x32xbf16>
      %cst_14 = arith.constant dense<0.000000e+00> : vector<8x32xf32>
      %17 = tpu.matmul %15, %16, %cst_14 {dimension_numbers = #tpu.dot_dimension_numbers<[1], [0], [0], [1], [0, 0, 1, 1], [], []>} : vector<8x32xbf16>, vector<32x32xbf16>, vector<8x32xf32> -> vector<8x32xf32>
      %c0_15 = arith.constant 0 : index
      %c0_16 = arith.constant 0 : index
      %18 = vector.load %arg6[%c0_15, %c0_16] : memref<1x32xf32, #tpu.memory_space<vmem>>, vector<1x32xf32>
      %19 = vector.broadcast %18 : vector<1x32xf32> to vector<8x32xf32>
      %20 = arith.addf %17, %19 : vector<8x32xf32>
      %21 = arith.truncf %14 : vector<8x32xf32> to vector<8x32xbf16>
      %c0_17 = arith.constant 0 : index
      %c0_18 = arith.constant 0 : index
      %22 = vector.load %arg7[%c0_17, %c0_18] : memref<32x32xbf16, #tpu.memory_space<vmem>>, vector<32x32xbf16>
      %cst_19 = arith.constant dense<0.000000e+00> : vector<8x32xf32>
      %23 = tpu.matmul %21, %22, %cst_19 {dimension_numbers = #tpu.dot_dimension_numbers<[1], [0], [0], [1], [0, 0, 1, 1], [], []>} : vector<8x32xbf16>, vector<32x32xbf16>, vector<8x32xf32> -> vector<8x32xf32>
      %c0_20 = arith.constant 0 : index
      %c0_21 = arith.constant 0 : index
      %24 = vector.load %arg8[%c0_20, %c0_21] : memref<1x32xf32, #tpu.memory_space<vmem>>, vector<1x32xf32>
      %25 = vector.broadcast %24 : vector<1x32xf32> to vector<8x32xf32>
      %26 = arith.addf %23, %25 : vector<8x32xf32>
      %27 = arith.truncf %14 : vector<8x32xf32> to vector<8x32xbf16>
      %c0_22 = arith.constant 0 : index
      %c0_23 = arith.constant 0 : index
      %28 = vector.load %arg9[%c0_22, %c0_23] : memref<32x32xbf16, #tpu.memory_space<vmem>>, vector<32x32xbf16>
      %cst_24 = arith.constant dense<0.000000e+00> : vector<8x32xf32>
      %29 = tpu.matmul %27, %28, %cst_24 {dimension_numbers = #tpu.dot_dimension_numbers<[1], [0], [0], [1], [0, 0, 1, 1], [], []>} : vector<8x32xbf16>, vector<32x32xbf16>, vector<8x32xf32> -> vector<8x32xf32>
      %c0_25 = arith.constant 0 : index
      %c0_26 = arith.constant 0 : index
      %30 = vector.load %arg10[%c0_25, %c0_26] : memref<1x32xf32, #tpu.memory_space<vmem>>, vector<1x32xf32>
      %31 = vector.broadcast %30 : vector<1x32xf32> to vector<8x32xf32>
      %32 = arith.addf %29, %31 : vector<8x32xf32>
      %cst_27 = arith.constant 3.200000e+01 : f32
      %33 = math.sqrt %cst_27 : f32
      %cst_28 = arith.constant 1.000000e+00 : f32
      %34 = arith.divf %cst_28, %33 : f32
      %35 = vector.broadcast %34 : f32 to vector<8x32xf32>
      %36 = arith.mulf %20, %35 : vector<8x32xf32>
      %37 = arith.truncf %36 : vector<8x32xf32> to vector<8x32xbf16>
      %38 = arith.truncf %26 : vector<8x32xf32> to vector<8x32xbf16>
      %cst_29 = arith.constant dense<0.000000e+00> : vector<8x8xf32>
      %39 = tpu.matmul %37, %38, %cst_29 {dimension_numbers = #tpu.dot_dimension_numbers<[1], [1], [0], [0], [0, 0, 1, 0], [], []>} : vector<8x32xbf16>, vector<8x32xbf16>, vector<8x8xf32> -> vector<8x8xf32>
      %cst_30 = arith.constant dense<0xFF800000> : vector<8xf32>
      %40 = vector.multi_reduction <maximumf>, %39, %cst_30 [1] : vector<8x8xf32> to vector<8xf32>
      %41 = vector.shape_cast %40 : vector<8xf32> to vector<8x1xf32>
      %42 = vector.broadcast %41 : vector<8x1xf32> to vector<8x8xf32>
      %43 = arith.subf %39, %42 : vector<8x8xf32>
      %44 = math.exp %43 : vector<8x8xf32>
      %cst_31 = arith.constant dense<0.000000e+00> : vector<8xf32>
      %45 = vector.multi_reduction <add>, %44, %cst_31 [1] : vector<8x8xf32> to vector<8xf32>
      %46 = vector.shape_cast %45 : vector<8xf32> to vector<8x1xf32>
      %47 = tpu.reciprocal %46 {approx = true} : vector<8x1xf32> -> vector<8x1xf32>
      %48 = vector.broadcast %47 : vector<8x1xf32> to vector<8x8xf32>
      %49 = arith.mulf %44, %48 : vector<8x8xf32>
      %50 = arith.truncf %49 : vector<8x8xf32> to vector<8x8xbf16>
      %51 = arith.truncf %32 : vector<8x32xf32> to vector<8x32xbf16>
      %cst_32 = arith.constant dense<0.000000e+00> : vector<8x32xf32>
      %52 = tpu.matmul %50, %51, %cst_32 {dimension_numbers = #tpu.dot_dimension_numbers<[1], [0], [0], [1], [0, 0, 1, 1], [], []>} : vector<8x8xbf16>, vector<8x32xbf16>, vector<8x32xf32> -> vector<8x32xf32>
      %53 = arith.truncf %52 : vector<8x32xf32> to vector<8x32xbf16>
      %c0_33 = arith.constant 0 : index
      %c0_34 = arith.constant 0 : index
      %54 = vector.load %arg11[%c0_33, %c0_34] : memref<32x32xbf16, #tpu.memory_space<vmem>>, vector<32x32xbf16>
      %cst_35 = arith.constant dense<0.000000e+00> : vector<8x32xf32>
      %55 = tpu.matmul %53, %54, %cst_35 {dimension_numbers = #tpu.dot_dimension_numbers<[1], [0], [0], [1], [0, 0, 1, 1], [], []>} : vector<8x32xbf16>, vector<32x32xbf16>, vector<8x32xf32> -> vector<8x32xf32>
      %c0_36 = arith.constant 0 : index
      %c0_37 = arith.constant 0 : index
      %56 = vector.load %arg12[%c0_36, %c0_37] : memref<1x32xf32, #tpu.memory_space<vmem>>, vector<1x32xf32>
      %57 = vector.broadcast %56 : vector<1x32xf32> to vector<8x32xf32>
      %58 = arith.addf %55, %57 : vector<8x32xf32>
      %59 = arith.addf %14, %58 : vector<8x32xf32>
      %c0_38 = arith.constant 0 : index
      %c0_39 = arith.constant 0 : index
      %60 = vector.load %arg13[%c0_38, %c0_39] : memref<1x32xf32, #tpu.memory_space<vmem>>, vector<1x32xf32>
      %c0_40 = arith.constant 0 : index
      %c0_41 = arith.constant 0 : index
      %61 = vector.load %arg14[%c0_40, %c0_41] : memref<1x32xf32, #tpu.memory_space<vmem>>, vector<1x32xf32>
      %cst_42 = arith.constant dense<0.000000e+00> : vector<8xf32>
      %62 = vector.multi_reduction <add>, %59, %cst_42 [1] : vector<8x32xf32> to vector<8xf32>
      %63 = vector.shape_cast %62 : vector<8xf32> to vector<8x1xf32>
      %cst_43 = arith.constant 3.200000e+01 : f32
      %64 = vector.broadcast %cst_43 : f32 to vector<8x1xf32>
      %65 = arith.divf %63, %64 : vector<8x1xf32>
      %66 = vector.broadcast %65 : vector<8x1xf32> to vector<8x32xf32>
      %67 = arith.subf %59, %66 : vector<8x32xf32>
      %68 = arith.mulf %67, %67 : vector<8x32xf32>
      %cst_44 = arith.constant dense<0.000000e+00> : vector<8xf32>
      %69 = vector.multi_reduction <add>, %68, %cst_44 [1] : vector<8x32xf32> to vector<8xf32>
      %70 = vector.shape_cast %69 : vector<8xf32> to vector<8x1xf32>
      %cst_45 = arith.constant 3.200000e+01 : f32
      %71 = vector.broadcast %cst_45 : f32 to vector<8x1xf32>
      %72 = arith.divf %70, %71 : vector<8x1xf32>
      %73 = vector.broadcast %65 : vector<8x1xf32> to vector<8x32xf32>
      %74 = arith.subf %59, %73 : vector<8x32xf32>
      %cst_46 = arith.constant 9.99999974E-6 : f32
      %75 = vector.broadcast %cst_46 : f32 to vector<8x1xf32>
      %76 = arith.addf %72, %75 : vector<8x1xf32>
      %77 = math.rsqrt %76 : vector<8x1xf32>
      %78 = vector.broadcast %77 : vector<8x1xf32> to vector<8x32xf32>
      %79 = arith.mulf %74, %78 : vector<8x32xf32>
      %80 = vector.broadcast %60 : vector<1x32xf32> to vector<8x32xf32>
      %81 = arith.mulf %79, %80 : vector<8x32xf32>
      %82 = vector.broadcast %61 : vector<1x32xf32> to vector<8x32xf32>
      %83 = arith.addf %81, %82 : vector<8x32xf32>
      %84 = arith.truncf %83 : vector<8x32xf32> to vector<8x32xbf16>
      %c0_47 = arith.constant 0 : index
      %c0_48 = arith.constant 0 : index
      %85 = vector.load %arg15[%c0_47, %c0_48] : memref<32x32xbf16, #tpu.memory_space<vmem>>, vector<32x32xbf16>
      %cst_49 = arith.constant dense<0.000000e+00> : vector<8x32xf32>
      %86 = tpu.matmul %84, %85, %cst_49 {dimension_numbers = #tpu.dot_dimension_numbers<[1], [0], [0], [1], [0, 0, 1, 1], [], []>} : vector<8x32xbf16>, vector<32x32xbf16>, vector<8x32xf32> -> vector<8x32xf32>
      %c0_50 = arith.constant 0 : index
      %c0_51 = arith.constant 0 : index
      %87 = vector.load %arg16[%c0_50, %c0_51] : memref<1x32xf32, #tpu.memory_space<vmem>>, vector<1x32xf32>
      %88 = vector.broadcast %87 : vector<1x32xf32> to vector<8x32xf32>
      %89 = arith.addf %86, %88 : vector<8x32xf32>
      %c0_52 = arith.constant 0 : index
      %c0_53 = arith.constant 0 : index
      %c0_54 = arith.constant 0 : index
      %90 = vector.load %arg3[%c0_52, %c0_53, %c0_54] : memref<1x8x32xbf16, #tpu.memory_space<vmem>>, vector<1x8x32xbf16>
      %91 = vector.shape_cast %90 : vector<1x8x32xbf16> to vector<8x32xbf16>
      %c0_55 = arith.constant 0 : index
      %c0_56 = arith.constant 0 : index
      %c0_57 = arith.constant 0 : index
      %92 = vector.load %arg4[%c0_55, %c0_56, %c0_57] : memref<1x8x32xbf16, #tpu.memory_space<vmem>>, vector<1x8x32xbf16>
      %93 = vector.shape_cast %92 : vector<1x8x32xbf16> to vector<8x32xbf16>
      %cst_58 = arith.constant 3.200000e+01 : f32
      %94 = math.sqrt %cst_58 : f32
      %cst_59 = arith.constant 1.000000e+00 : f32
      %95 = arith.divf %cst_59, %94 : f32
      %96 = vector.broadcast %95 : f32 to vector<8x32xf32>
      %97 = arith.mulf %89, %96 : vector<8x32xf32>
      %98 = arith.truncf %97 : vector<8x32xf32> to vector<8x32xbf16>
      %cst_60 = arith.constant dense<0.000000e+00> : vector<8x8xf32>
      %99 = tpu.matmul %98, %91, %cst_60 {dimension_numbers = #tpu.dot_dimension_numbers<[1], [1], [0], [0], [0, 0, 1, 0], [], []>} : vector<8x32xbf16>, vector<8x32xbf16>, vector<8x8xf32> -> vector<8x8xf32>
      %cst_61 = arith.constant dense<0xFF800000> : vector<8xf32>
      %100 = vector.multi_reduction <maximumf>, %99, %cst_61 [1] : vector<8x8xf32> to vector<8xf32>
      %101 = vector.shape_cast %100 : vector<8xf32> to vector<8x1xf32>
      %102 = vector.broadcast %101 : vector<8x1xf32> to vector<8x8xf32>
      %103 = arith.subf %99, %102 : vector<8x8xf32>
      %104 = math.exp %103 : vector<8x8xf32>
      %cst_62 = arith.constant dense<0.000000e+00> : vector<8xf32>
      %105 = vector.multi_reduction <add>, %104, %cst_62 [1] : vector<8x8xf32> to vector<8xf32>
      %106 = vector.shape_cast %105 : vector<8xf32> to vector<8x1xf32>
      %107 = tpu.reciprocal %106 {approx = true} : vector<8x1xf32> -> vector<8x1xf32>
      %108 = vector.broadcast %107 : vector<8x1xf32> to vector<8x8xf32>
      %109 = arith.mulf %104, %108 : vector<8x8xf32>
      %110 = arith.truncf %109 : vector<8x8xf32> to vector<8x8xbf16>
      %cst_63 = arith.constant dense<0.000000e+00> : vector<8x32xf32>
      %111 = tpu.matmul %110, %93, %cst_63 {dimension_numbers = #tpu.dot_dimension_numbers<[1], [0], [0], [1], [0, 0, 1, 1], [], []>} : vector<8x8xbf16>, vector<8x32xbf16>, vector<8x32xf32> -> vector<8x32xf32>
      %112 = arith.truncf %111 : vector<8x32xf32> to vector<8x32xbf16>
      %c0_64 = arith.constant 0 : index
      %c0_65 = arith.constant 0 : index
      %113 = vector.load %arg17[%c0_64, %c0_65] : memref<32x32xbf16, #tpu.memory_space<vmem>>, vector<32x32xbf16>
      %cst_66 = arith.constant dense<0.000000e+00> : vector<8x32xf32>
      %114 = tpu.matmul %112, %113, %cst_66 {dimension_numbers = #tpu.dot_dimension_numbers<[1], [0], [0], [1], [0, 0, 1, 1], [], []>} : vector<8x32xbf16>, vector<32x32xbf16>, vector<8x32xf32> -> vector<8x32xf32>
      %c0_67 = arith.constant 0 : index
      %c0_68 = arith.constant 0 : index
      %115 = vector.load %arg18[%c0_67, %c0_68] : memref<1x32xf32, #tpu.memory_space<vmem>>, vector<1x32xf32>
      %116 = vector.broadcast %115 : vector<1x32xf32> to vector<8x32xf32>
      %117 = arith.addf %114, %116 : vector<8x32xf32>
      %118 = arith.addf %83, %117 : vector<8x32xf32>
      %c0_69 = arith.constant 0 : index
      %c0_70 = arith.constant 0 : index
      %119 = vector.load %arg19[%c0_69, %c0_70] : memref<1x32xf32, #tpu.memory_space<vmem>>, vector<1x32xf32>
      %c0_71 = arith.constant 0 : index
      %c0_72 = arith.constant 0 : index
      %120 = vector.load %arg20[%c0_71, %c0_72] : memref<1x32xf32, #tpu.memory_space<vmem>>, vector<1x32xf32>
      %cst_73 = arith.constant dense<0.000000e+00> : vector<8xf32>
      %121 = vector.multi_reduction <add>, %118, %cst_73 [1] : vector<8x32xf32> to vector<8xf32>
      %122 = vector.shape_cast %121 : vector<8xf32> to vector<8x1xf32>
      %cst_74 = arith.constant 3.200000e+01 : f32
      %123 = vector.broadcast %cst_74 : f32 to vector<8x1xf32>
      %124 = arith.divf %122, %123 : vector<8x1xf32>
      %125 = vector.broadcast %124 : vector<8x1xf32> to vector<8x32xf32>
      %126 = arith.subf %118, %125 : vector<8x32xf32>
      %127 = arith.mulf %126, %126 : vector<8x32xf32>
      %cst_75 = arith.constant dense<0.000000e+00> : vector<8xf32>
      %128 = vector.multi_reduction <add>, %127, %cst_75 [1] : vector<8x32xf32> to vector<8xf32>
      %129 = vector.shape_cast %128 : vector<8xf32> to vector<8x1xf32>
      %cst_76 = arith.constant 3.200000e+01 : f32
      %130 = vector.broadcast %cst_76 : f32 to vector<8x1xf32>
      %131 = arith.divf %129, %130 : vector<8x1xf32>
      %132 = vector.broadcast %124 : vector<8x1xf32> to vector<8x32xf32>
      %133 = arith.subf %118, %132 : vector<8x32xf32>
      %cst_77 = arith.constant 9.99999974E-6 : f32
      %134 = vector.broadcast %cst_77 : f32 to vector<8x1xf32>
      %135 = arith.addf %131, %134 : vector<8x1xf32>
      %136 = math.rsqrt %135 : vector<8x1xf32>
      %137 = vector.broadcast %136 : vector<8x1xf32> to vector<8x32xf32>
      %138 = arith.mulf %133, %137 : vector<8x32xf32>
      %139 = vector.broadcast %119 : vector<1x32xf32> to vector<8x32xf32>
      %140 = arith.mulf %138, %139 : vector<8x32xf32>
      %141 = vector.broadcast %120 : vector<1x32xf32> to vector<8x32xf32>
      %142 = arith.addf %140, %141 : vector<8x32xf32>
      %143 = arith.truncf %142 : vector<8x32xf32> to vector<8x32xbf16>
      %c0_78 = arith.constant 0 : index
      %c0_79 = arith.constant 0 : index
      %144 = vector.load %arg21[%c0_78, %c0_79] : memref<32x64xbf16, #tpu.memory_space<vmem>>, vector<32x64xbf16>
      %cst_80 = arith.constant dense<0.000000e+00> : vector<8x64xf32>
      %145 = tpu.matmul %143, %144, %cst_80 {dimension_numbers = #tpu.dot_dimension_numbers<[1], [0], [0], [1], [0, 0, 1, 1], [], []>} : vector<8x32xbf16>, vector<32x64xbf16>, vector<8x64xf32> -> vector<8x64xf32>
      %c0_81 = arith.constant 0 : index
      %c0_82 = arith.constant 0 : index
      %146 = vector.load %arg22[%c0_81, %c0_82] : memref<1x64xf32, #tpu.memory_space<vmem>>, vector<1x64xf32>
      %147 = vector.broadcast %146 : vector<1x64xf32> to vector<8x64xf32>
      %148 = arith.addf %145, %147 : vector<8x64xf32>
      %cst_83 = arith.constant 0.000000e+00 : f32
      %149 = vector.broadcast %cst_83 : f32 to vector<8x64xf32>
      %150 = arith.maximumf %148, %149 : vector<8x64xf32>
      %151 = arith.truncf %150 : vector<8x64xf32> to vector<8x64xbf16>
      %c0_84 = arith.constant 0 : index
      %c0_85 = arith.constant 0 : index
      %152 = vector.load %arg23[%c0_84, %c0_85] : memref<64x32xbf16, #tpu.memory_space<vmem>>, vector<64x32xbf16>
      %cst_86 = arith.constant dense<0.000000e+00> : vector<8x32xf32>
      %153 = tpu.matmul %151, %152, %cst_86 {dimension_numbers = #tpu.dot_dimension_numbers<[1], [0], [0], [1], [0, 0, 1, 1], [], []>} : vector<8x64xbf16>, vector<64x32xbf16>, vector<8x32xf32> -> vector<8x32xf32>
      %c0_87 = arith.constant 0 : index
      %c0_88 = arith.constant 0 : index
      %154 = vector.load %arg24[%c0_87, %c0_88] : memref<1x32xf32, #tpu.memory_space<vmem>>, vector<1x32xf32>
      %155 = vector.broadcast %154 : vector<1x32xf32> to vector<8x32xf32>
      %156 = arith.addf %153, %155 : vector<8x32xf32>
      %157 = arith.addf %142, %156 : vector<8x32xf32>
      %c0_89 = arith.constant 0 : index
      %c0_90 = arith.constant 0 : index
      %158 = vector.load %arg25[%c0_89, %c0_90] : memref<1x32xf32, #tpu.memory_space<vmem>>, vector<1x32xf32>
      %c0_91 = arith.constant 0 : index
      %c0_92 = arith.constant 0 : index
      %159 = vector.load %arg26[%c0_91, %c0_92] : memref<1x32xf32, #tpu.memory_space<vmem>>, vector<1x32xf32>
      %cst_93 = arith.constant dense<0.000000e+00> : vector<8xf32>
      %160 = vector.multi_reduction <add>, %157, %cst_93 [1] : vector<8x32xf32> to vector<8xf32>
      %161 = vector.shape_cast %160 : vector<8xf32> to vector<8x1xf32>
      %cst_94 = arith.constant 3.200000e+01 : f32
      %162 = vector.broadcast %cst_94 : f32 to vector<8x1xf32>
      %163 = arith.divf %161, %162 : vector<8x1xf32>
      %164 = vector.broadcast %163 : vector<8x1xf32> to vector<8x32xf32>
      %165 = arith.subf %157, %164 : vector<8x32xf32>
      %166 = arith.mulf %165, %165 : vector<8x32xf32>
      %cst_95 = arith.constant dense<0.000000e+00> : vector<8xf32>
      %167 = vector.multi_reduction <add>, %166, %cst_95 [1] : vector<8x32xf32> to vector<8xf32>
      %168 = vector.shape_cast %167 : vector<8xf32> to vector<8x1xf32>
      %cst_96 = arith.constant 3.200000e+01 : f32
      %169 = vector.broadcast %cst_96 : f32 to vector<8x1xf32>
      %170 = arith.divf %168, %169 : vector<8x1xf32>
      %171 = vector.broadcast %163 : vector<8x1xf32> to vector<8x32xf32>
      %172 = arith.subf %157, %171 : vector<8x32xf32>
      %cst_97 = arith.constant 9.99999974E-6 : f32
      %173 = vector.broadcast %cst_97 : f32 to vector<8x1xf32>
      %174 = arith.addf %170, %173 : vector<8x1xf32>
      %175 = math.rsqrt %174 : vector<8x1xf32>
      %176 = vector.broadcast %175 : vector<8x1xf32> to vector<8x32xf32>
      %177 = arith.mulf %172, %176 : vector<8x32xf32>
      %178 = vector.broadcast %158 : vector<1x32xf32> to vector<8x32xf32>
      %179 = arith.mulf %177, %178 : vector<8x32xf32>
      %180 = vector.broadcast %159 : vector<1x32xf32> to vector<8x32xf32>
      %181 = arith.addf %179, %180 : vector<8x32xf32>
      %c0_98 = arith.constant 0 : index
      %c0_99 = arith.constant 0 : index
      %182 = vector.load %arg30[%c0_98, %c0_99] : memref<8x32xf32, #tpu.memory_space<vmem>>, vector<8x32xf32>
      tpu.vector_store %arg30[%c0_98, %c0_99], %181 {strides = array<i32>} : memref<8x32xf32, #tpu.memory_space<vmem>>, vector<8x32xf32>,
    } else {
    }
    %c0 = arith.constant 0 : index
    %c0_1 = arith.constant 0 : index
    %3 = vector.load %arg30[%c0, %c0_1] : memref<8x32xf32, #tpu.memory_space<vmem>>, vector<8x32xf32>
    %4 = arith.truncf %3 : vector<8x32xf32> to vector<8x32xbf16>
    %c0_2 = arith.constant 0 : index
    %c0_3 = arith.constant 0 : index
    %5 = vector.load %arg27[%c0_2, %c0_3] : memref<32x128xbf16, #tpu.memory_space<vmem>>, vector<32x128xbf16>
    %cst = arith.constant dense<0.000000e+00> : vector<8x128xf32>
    %6 = tpu.matmul %4, %5, %cst {dimension_numbers = #tpu.dot_dimension_numbers<[1], [0], [0], [1], [0, 0, 1, 1], [], []>} : vector<8x32xbf16>, vector<32x128xbf16>, vector<8x128xf32> -> vector<8x128xf32>
    %c0_4 = arith.constant 0 : index
    %c0_5 = arith.constant 0 : index
    %7 = vector.load %arg28[%c0_4, %c0_5] : memref<1x128xf32, #tpu.memory_space<vmem>>, vector<1x128xf32>
    %8 = vector.broadcast %7 : vector<1x128xf32> to vector<8x128xf32>
    %9 = arith.addf %6, %8 : vector<8x128xf32>
    %c0_6 = arith.constant 0 : index
    %c0_7 = arith.constant 0 : index
    %c0_8 = arith.constant 0 : index
    %10 = vector.load %arg29[%c0_6, %c0_7, %c0_8] : memref<1x8x128xf32, #tpu.memory_space<vmem>>, vector<1x8x128xf32>
    %11 = vector.shape_cast %10 : vector<1x8x128xf32> to vector<8x128xf32>
    %12 = vector.shape_cast %9 : vector<8x128xf32> to vector<1x8x128xf32>
    tpu.vector_store %arg29[%c0_6, %c0_7, %c0_8], %12 {strides = array<i32>} : memref<1x8x128xf32, #tpu.memory_space<vmem>>, vector<1x8x128xf32>,
    return
  }
  func.func @transform_0(%arg0: i32, %arg1: i32) -> (i32, i32, i32) {
    %c0_i32 = arith.constant 0 : i32
    %c0_i32_0 = arith.constant 0 : i32
    %c0_i32_1 = arith.constant 0 : i32
    return %arg0, %c0_i32, %c0_i32_0 : i32, i32, i32
  }
  func.func @transform_1(%arg0: i32, %arg1: i32) -> (i32, i32, i32) {
    %c0_i32 = arith.constant 0 : i32
    %c0_i32_0 = arith.constant 0 : i32
    %c0_i32_1 = arith.constant 0 : i32
    return %arg0, %c0_i32, %c0_i32_0 : i32, i32, i32
  }
  func.func @transform_2(%arg0: i32, %arg1: i32) -> (i32, i32, i32) {
    %c0_i32 = arith.constant 0 : i32
    %c0_i32_0 = arith.constant 0 : i32
    %c0_i32_1 = arith.constant 0 : i32
    return %arg0, %c0_i32, %c0_i32_0 : i32, i32, i32
  }
  func.func @transform_3(%arg0: i32, %arg1: i32) -> (i32, i32) {
    %c0_i32 = arith.constant 0 : i32
    %c0_i32_0 = arith.constant 0 : i32
    %c0_i32_1 = arith.constant 0 : i32
    return %c0_i32, %c0_i32_0 : i32, i32
  }
  func.func @transform_4(%arg0: i32, %arg1: i32) -> (i32, i32) {
    %c0_i32 = arith.constant 0 : i32
    %c0_i32_0 = arith.constant 0 : i32
    %c0_i32_1 = arith.constant 0 : i32
    return %c0_i32, %c0_i32_0 : i32, i32
  }
  func.func @transform_5(%arg0: i32, %arg1: i32) -> (i32, i32) {
    %c0_i32 = arith.constant 0 : i32
    %c0_i32_0 = arith.constant 0 : i32
    %c0_i32_1 = arith.constant 0 : i32
    return %c0_i32, %c0_i32_0 : i32, i32
  }
  func.func @transform_6(%arg0: i32, %arg1: i32) -> (i32, i32) {
    %c0_i32 = arith.constant 0 : i32
    %c0_i32_0 = arith.constant 0 : i32
    %c0_i32_1 = arith.constant 0 : i32
    return %c0_i32, %c0_i32_0 : i32, i32
  }
  func.func @transform_7(%arg0: i32, %arg1: i32) -> (i32, i32) {
    %c0_i32 = arith.constant 0 : i32
    %c0_i32_0 = arith.constant 0 : i32
    %c0_i32_1 = arith.constant 0 : i32
    return %c0_i32, %c0_i32_0 : i32, i32
  }
  func.func @transform_8(%arg0: i32, %arg1: i32) -> (i32, i32) {
    %c0_i32 = arith.constant 0 : i32
    %c0_i32_0 = arith.constant 0 : i32
    %c0_i32_1 = arith.constant 0 : i32
    return %c0_i32, %c0_i32_0 : i32, i32
  }
  func.func @transform_9(%arg0: i32, %arg1: i32) -> (i32, i32) {
    %c0_i32 = arith.constant 0 : i32
    %c0_i32_0 = arith.constant 0 : i32
    %c0_i32_1 = arith.constant 0 : i32
    return %c0_i32, %c0_i32_0 : i32, i32
  }
  func.func @transform_10(%arg0: i32, %arg1: i32) -> (i32, i32) {
    %c0_i32 = arith.constant 0 : i32
    %c0_i32_0 = arith.constant 0 : i32
    %c0_i32_1 = arith.constant 0 : i32
    return %c0_i32, %c0_i32_0 : i32, i32
  }
  func.func @transform_11(%arg0: i32, %arg1: i32) -> (i32, i32) {
    %c0_i32 = arith.constant 0 : i32
    %c0_i32_0 = arith.constant 0 : i32
    %c0_i32_1 = arith.constant 0 : i32
    return %c0_i32, %c0_i32_0 : i32, i32
  }
  func.func @transform_12(%arg0: i32, %arg1: i32) -> (i32, i32) {
    %c0_i32 = arith.constant 0 : i32
    %c0_i32_0 = arith.constant 0 : i32
    %c0_i32_1 = arith.constant 0 : i32
    return %c0_i32, %c0_i32_0 : i32, i32
  }
  func.func @transform_13(%arg0: i32, %arg1: i32) -> (i32, i32) {
    %c0_i32 = arith.constant 0 : i32
    %c0_i32_0 = arith.constant 0 : i32
    %c0_i32_1 = arith.constant 0 : i32
    return %c0_i32, %c0_i32_0 : i32, i32
  }
  func.func @transform_14(%arg0: i32, %arg1: i32) -> (i32, i32) {
    %c0_i32 = arith.constant 0 : i32
    %c0_i32_0 = arith.constant 0 : i32
    %c0_i32_1 = arith.constant 0 : i32
    return %c0_i32, %c0_i32_0 : i32, i32
  }
  func.func @transform_15(%arg0: i32, %arg1: i32) -> (i32, i32) {
    %c0_i32 = arith.constant 0 : i32
    %c0_i32_0 = arith.constant 0 : i32
    %c0_i32_1 = arith.constant 0 : i32
    return %c0_i32, %c0_i32_0 : i32, i32
  }
  func.func @transform_16(%arg0: i32, %arg1: i32) -> (i32, i32) {
    %c0_i32 = arith.constant 0 : i32
    %c0_i32_0 = arith.constant 0 : i32
    %c0_i32_1 = arith.constant 0 : i32
    return %c0_i32, %c0_i32_0 : i32, i32
  }
  func.func @transform_17(%arg0: i32, %arg1: i32) -> (i32, i32) {
    %c0_i32 = arith.constant 0 : i32
    %c0_i32_0 = arith.constant 0 : i32
    %c0_i32_1 = arith.constant 0 : i32
    return %c0_i32, %c0_i32_0 : i32, i32
  }
  func.func @transform_18(%arg0: i32, %arg1: i32) -> (i32, i32) {
    %c0_i32 = arith.constant 0 : i32
    %c0_i32_0 = arith.constant 0 : i32
    %c0_i32_1 = arith.constant 0 : i32
    return %c0_i32, %c0_i32_0 : i32, i32
  }
  func.func @transform_19(%arg0: i32, %arg1: i32) -> (i32, i32) {
    %c0_i32 = arith.constant 0 : i32
    %c0_i32_0 = arith.constant 0 : i32
    %c0_i32_1 = arith.constant 0 : i32
    return %c0_i32, %c0_i32_0 : i32, i32
  }
  func.func @transform_20(%arg0: i32, %arg1: i32) -> (i32, i32) {
    %c0_i32 = arith.constant 0 : i32
    %c0_i32_0 = arith.constant 0 : i32
    %c0_i32_1 = arith.constant 0 : i32
    return %c0_i32, %c0_i32_0 : i32, i32
  }
  func.func @transform_21(%arg0: i32, %arg1: i32) -> (i32, i32) {
    %c0_i32 = arith.constant 0 : i32
    %c0_i32_0 = arith.constant 0 : i32
    %c0_i32_1 = arith.constant 0 : i32
    return %c0_i32, %c0_i32_0 : i32, i32
  }
  func.func @transform_22(%arg0: i32, %arg1: i32) -> (i32, i32) {
    %c0_i32 = arith.constant 0 : i32
    %c0_i32_0 = arith.constant 0 : i32
    %c0_i32_1 = arith.constant 0 : i32
    return %c0_i32, %c0_i32_0 : i32, i32
  }
  func.func @transform_23(%arg0: i32, %arg1: i32) -> (i32, i32) {
    %c0_i32 = arith.constant 0 : i32
    %c0_i32_0 = arith.constant 0 : i32
    %c0_i32_1 = arith.constant 0 : i32
    return %c0_i32, %c0_i32_0 : i32, i32
  }
  func.func @transform_24(%arg0: i32, %arg1: i32) -> (i32, i32) {
    %c0_i32 = arith.constant 0 : i32
    %c0_i32_0 = arith.constant 0 : i32
    %c0_i32_1 = arith.constant 0 : i32
    return %c0_i32, %c0_i32_0 : i32, i32
  }
  func.func @transform_25(%arg0: i32, %arg1: i32) -> (i32, i32) {
    %c0_i32 = arith.constant 0 : i32
    %c0_i32_0 = arith.constant 0 : i32
    return %c0_i32, %arg1 : i32, i32
  }
  func.func @transform_26(%arg0: i32, %arg1: i32) -> (i32, i32) {
    %c0_i32 = arith.constant 0 : i32
    %c0_i32_0 = arith.constant 0 : i32
    return %c0_i32, %arg1 : i32, i32
  }
  func.func @transform_27(%arg0: i32, %arg1: i32) -> (i32, i32, i32) {
    %c0_i32 = arith.constant 0 : i32
    %c0_i32_0 = arith.constant 0 : i32
    return %arg0, %c0_i32, %arg1 : i32, i32, i32
  }
}

</mosaic_0001>

<llo_original>
// kernel: model_forward.3
$region0: #{model_forward.3}
  #allocation0 [shape = 'u32[]', space=smem, size = 0x4, offset = 0x4, fixed_abs, tag = 'smem constant byte address 0x4 - core index']
  #allocation1 [shape = 'u32[144,128]{1,0:T(1,128)}', space=vmem, size = 0x12000, scoped, tag = 'internal scratch']
  #allocation2 [shape = 'f32[8,32]{1,0:T(8,128)}', space=vmem, size = 0x1000, scoped, tag = 'scratch operand']
  %s0 = inlined_call_operand.hbm [shape: f32[2,8,32], index: 0, kind: input, shape index: {}]
  %s1 = inlined_call_operand.hbm [shape: bf16[2,8,32], index: 1, kind: input, shape index: {}]
  %s2 = inlined_call_operand.hbm [shape: bf16[2,8,32], index: 2, kind: input, shape index: {}]
  %s3 = inlined_call_operand.hbm [shape: bf16[32,32], index: 3, kind: input, shape index: {}]
  %s4 = inlined_call_operand.hbm [shape: f32[1,32], index: 4, kind: input, shape index: {}, may-alias: {4,6,8,10,12,14,16,18,22,24}]
  %s5 = inlined_call_operand.hbm [shape: bf16[32,32], index: 5, kind: input, shape index: {}]
  %s6 = inlined_call_operand.hbm [shape: f32[1,32], index: 6, kind: input, shape index: {}, may-alias: {4,6,8,10,12,14,16,18,22,24}]
  %s7 = inlined_call_operand.hbm [shape: bf16[32,32], index: 7, kind: input, shape index: {}]
  %s8 = inlined_call_operand.hbm [shape: f32[1,32], index: 8, kind: input, shape index: {}, may-alias: {4,6,8,10,12,14,16,18,22,24}]
  %s9 = inlined_call_operand.hbm [shape: bf16[32,32], index: 9, kind: input, shape index: {}]
  %s10 = inlined_call_operand.hbm [shape: f32[1,32], index: 10, kind: input, shape index: {}, may-alias: {4,6,8,10,12,14,16,18,22,24}]
  %s11 = inlined_call_operand.hbm [shape: f32[1,32], index: 11, kind: input, shape index: {}, may-alias: {11,17,23}]
  %s12 = inlined_call_operand.hbm [shape: f32[1,32], index: 12, kind: input, shape index: {}, may-alias: {4,6,8,10,12,14,16,18,22,24}]
  %s13 = inlined_call_operand.hbm [shape: bf16[32,32], index: 13, kind: input, shape index: {}]
  %s14 = inlined_call_operand.hbm [shape: f32[1,32], index: 14, kind: input, shape index: {}, may-alias: {4,6,8,10,12,14,16,18,22,24}]
  %s15 = inlined_call_operand.hbm [shape: bf16[32,32], index: 15, kind: input, shape index: {}]
  %s16 = inlined_call_operand.hbm [shape: f32[1,32], index: 16, kind: input, shape index: {}, may-alias: {4,6,8,10,12,14,16,18,22,24}]
  %s17 = inlined_call_operand.hbm [shape: f32[1,32], index: 17, kind: input, shape index: {}, may-alias: {11,17,23}]
  %s18 = inlined_call_operand.hbm [shape: f32[1,32], index: 18, kind: input, shape index: {}, may-alias: {4,6,8,10,12,14,16,18,22,24}]
  %s19 = inlined_call_operand.hbm [shape: bf16[32,64], index: 19, kind: input, shape index: {}]
  %s20 = inlined_call_operand.hbm [shape: f32[1,64], index: 20, kind: input, shape index: {}]
  %s21 = inlined_call_operand.hbm [shape: bf16[64,32], index: 21, kind: input, shape index: {}]
  %s22 = inlined_call_operand.hbm [shape: f32[1,32], index: 22, kind: input, shape index: {}, may-alias: {4,6,8,10,12,14,16,18,22,24}]
  %s23 = inlined_call_operand.hbm [shape: f32[1,32], index: 23, kind: input, shape index: {}, may-alias: {11,17,23}]
  %s24 = inlined_call_operand.hbm [shape: f32[1,32], index: 24, kind: input, shape index: {}, may-alias: {4,6,8,10,12,14,16,18,22,24}]
  %s25 = inlined_call_operand.hbm [shape: bf16[32,128], index: 25, kind: input, shape index: {}]
  %s26 = inlined_call_operand.hbm [shape: f32[1,128], index: 26, kind: input, shape index: {}]
  %s27 = inlined_call_operand.hbm [shape: f32[2,8,128], index: 27, kind: output, shape index: {}]
  %s28 = sld [smem:[#allocation0]]
  $region253: #{model_forward.3} parent=0
    _
  %s30 = ssub.s32 1, %s28
  %s31 = scalar_select 0, %s30, %s28
  $region1: #{model_forward.3} parent=0
    #allocation3 [shape = 'u8[8192]{0}', space=vmem, size = 0x2000, scoped, tag = 'input window, operand 0']
    #allocation4 [shape = 's32[2]{0}', space=sflag, size = 0x8, scoped, tag = 'scoped memory for model_forward.3']
    #allocation5 [shape = 's32[2]{0}', space=sflag, size = 0x8, scoped, tag = 'scoped memory for model_forward.3']
    #allocation6 [shape = 'u8[4096]{0}', space=vmem, size = 0x1000, scoped, tag = 'input window, operand 1']
    #allocation7 [shape = 's32[2]{0}', space=sflag, size = 0x8, scoped, tag = 'scoped memory for model_forward.3']
    #allocation8 [shape = 'u8[4096]{0}', space=vmem, size = 0x1000, scoped, tag = 'input window, operand 2']
    #allocation9 [shape = 'u8[8192]{0}', space=vmem, size = 0x2000, scoped, tag = 'input window, operand 3, single buffered']
    #allocation10 [shape = 's32[1]{0}', space=sflag, size = 0x4, scoped, tag = 'scoped memory for model_forward.3']
    #allocation11 [shape = 'u8[512]{0}', space=vmem, size = 0x400, scoped, tag = 'input window, operand 4, single buffered']
    #allocation12 [shape = 'u8[8192]{0}', space=vmem, size = 0x2000, scoped, tag = 'input window, operand 5, single buffered']
    #allocation13 [shape = 's32[1]{0}', space=sflag, size = 0x4, scoped, tag = 'scoped memory for model_forward.3']
    #allocation14 [shape = 'u8[512]{0}', space=vmem, size = 0x400, scoped, tag = 'input window, operand 6, single buffered']
    #allocation15 [shape = 'u8[8192]{0}', space=vmem, size = 0x2000, scoped, tag = 'input window, operand 7, single buffered']
    #allocation16 [shape = 's32[1]{0}', space=sflag, size = 0x4, scoped, tag = 'scoped memory for model_forward.3']
    #allocation17 [shape = 'u8[512]{0}', space=vmem, size = 0x400, scoped, tag = 'input window, operand 8, single buffered']
    #allocation18 [shape = 'u8[8192]{0}', space=vmem, size = 0x2000, scoped, tag = 'input window, operand 9, single buffered']
    #allocation19 [shape = 's32[1]{0}', space=sflag, size = 0x4, scoped, tag = 'scoped memory for model_forward.3']
    #allocation20 [shape = 'u8[512]{0}', space=vmem, size = 0x400, scoped, tag = 'input window, operand 10, single buffered']
    #allocation21 [shape = 'u8[512]{0}', space=vmem, size = 0x400, scoped, tag = 'input window, operand 11, single buffered']
    #allocation22 [shape = 's32[1]{0}', space=sflag, size = 0x4, scoped, tag = 'scoped memory for model_forward.3']
    #allocation23 [shape = 'u8[512]{0}', space=vmem, size = 0x400, scoped, tag = 'input window, operand 12, single buffered']
    #allocation24 [shape = 'u8[8192]{0}', space=vmem, size = 0x2000, scoped, tag = 'input window, operand 13, single buffered']
    #allocation25 [shape = 's32[1]{0}', space=sflag, size = 0x4, scoped, tag = 'scoped memory for model_forward.3']
    #allocation26 [shape = 'u8[512]{0}', space=vmem, size = 0x400, scoped, tag = 'input window, operand 14, single buffered']
    #allocation27 [shape = 'u8[8192]{0}', space=vmem, size = 0x2000, scoped, tag = 'input window, operand 15, single buffered']
    #allocation28 [shape = 's32[1]{0}', space=sflag, size = 0x4, scoped, tag = 'scoped memory for model_forward.3']
    #allocation29 [shape = 'u8[512]{0}', space=vmem, size = 0x400, scoped, tag = 'input window, operand 16, single buffered']
    #allocation30 [shape = 'u8[512]{0}', space=vmem, size = 0x400, scoped, tag = 'input window, operand 17, single buffered']
    #allocation31 [shape = 's32[1]{0}', space=sflag, size = 0x4, scoped, tag = 'scoped memory for model_forward.3']
    #allocation32 [shape = 'u8[512]{0}', space=vmem, size = 0x400, scoped, tag = 'input window, operand 18, single buffered']
    #allocation33 [shape = 'u8[8192]{0}', space=vmem, size = 0x2000, scoped, tag = 'input window, operand 19, single buffered']
    #allocation34 [shape = 's32[1]{0}', space=sflag, size = 0x4, scoped, tag = 'scoped memory for model_forward.3']
    #allocation35 [shape = 'u8[512]{0}', space=vmem, size = 0x400, scoped, tag = 'input window, operand 20, single buffered']
    #allocation36 [shape = 'u8[16384]{0}', space=vmem, size = 0x4000, scoped, tag = 'input window, operand 21, single buffered']
    #allocation37 [shape = 's32[1]{0}', space=sflag, size = 0x4, scoped, tag = 'scoped memory for model_forward.3']
    #allocation38 [shape = 'u8[512]{0}', space=vmem, size = 0x400, scoped, tag = 'input window, operand 22, single buffered']
    #allocation39 [shape = 'u8[512]{0}', space=vmem, size = 0x400, scoped, tag = 'input window, operand 23, single buffered']
    #allocation40 [shape = 's32[1]{0}', space=sflag, size = 0x4, scoped, tag = 'scoped memory for model_forward.3']
    #allocation41 [shape = 'u8[512]{0}', space=vmem, size = 0x400, scoped, tag = 'input window, operand 24, single buffered']
    #allocation42 [shape = 'u8[8192]{0}', space=vmem, size = 0x2000, scoped, tag = 'input window, operand 25, single buffered']
    #allocation43 [shape = 's32[1]{0}', space=sflag, size = 0x4, scoped, tag = 'scoped memory for model_forward.3']
    #allocation44 [shape = 'u8[512]{0}', space=vmem, size = 0x400, scoped, tag = 'input window, operand 26, single buffered']
    #allocation45 [shape = 'u8[8192]{0}', space=vmem, size = 0x2000, scoped, tag = 'output window, operand 0']
    %32 = vsyncpa [#allocation4], 0
    %s33 = scalar_lea.sflag [#allocation4], 1
    %34 = vsyncpa %s33, 0
    %35 = vsyncpa [#allocation7], 0
    %s36 = scalar_lea.sflag [#allocation7], 1
    %37 = vsyncpa %s36, 0
    %38 = vsyncpa [#allocation10], 0
    %39 = vsyncpa [#allocation13], 0
    %40 = vsyncpa [#allocation16], 0
    %41 = vsyncpa [#allocation19], 0
    %42 = vsyncpa [#allocation22], 0
    %43 = vsyncpa [#allocation25], 0
    %44 = vsyncpa [#allocation28], 0
    %45 = vsyncpa [#allocation31], 0
    %46 = vsyncpa [#allocation34], 0
    %47 = vsyncpa [#allocation37], 0
    %48 = vsyncpa [#allocation40], 0
    %49 = vsyncpa [#allocation43], 0
    %50 = vsyncpa [#allocation5], 0
    %s51 = scalar_lea.sflag [#allocation5], 1
    %52 = vsyncpa %s51, 0
    loop: start=0, step=1, limit=4
    $region2: #{model_forward.3} parent=1 // loop_pre_header
      _
    $region3: #{model_forward.3} parent=1 // loop_header
      %s54 = sphi 0, %s58
      %p55 = scmp.ge.s32.totalorder %s54, 4
      %s61 = sphi 0, %s73
      %s62 = sphi 0, %s69
      %s63 = sphi 0, %s61
      %s64 = sphi 0, %s62
      %s65 = sphi 0, %s63
      %s66 = sphi 0, %s64
      %s76 = sphi 0, %s78
      %s79 = sphi 0, %s76
      %s80 = sphi 0, %s79
      %s96 = sphi 0, %s80
      %s102 = sphi 0, %s104
      %s105 = sphi 0, %s102
      %s106 = sphi 0, %s105
      %s122 = sphi 0, %s106
      %s128 = sphi 0, %s130
      %s131 = sphi 0, %s128
      %s132 = sphi 0, %s131
      %s148 = sphi 0, %s132
      %s152 = sphi 0, %s152
      %s154 = sphi 0, %s152
      %s155 = sphi 0, %s154
      %s169 = sphi 0, %s155
      %s173 = sphi 0, %s173
      %s175 = sphi 0, %s173
      %s176 = sphi 0, %s175
      %s190 = sphi 0, %s176
      %s194 = sphi 0, %s194
      %s196 = sphi 0, %s194
      %s197 = sphi 0, %s196
      %s211 = sphi 0, %s197
      %s215 = sphi 0, %s215
      %s217 = sphi 0, %s215
      %s218 = sphi 0, %s217
      %s232 = sphi 0, %s218
      %s236 = sphi 0, %s236
      %s238 = sphi 0, %s236
      %s239 = sphi 0, %s238
      %s253 = sphi 0, %s239
      %s257 = sphi 0, %s257
      %s259 = sphi 0, %s257
      %s260 = sphi 0, %s259
      %s274 = sphi 0, %s260
      %s278 = sphi 0, %s278
      %s280 = sphi 0, %s278
      %s281 = sphi 0, %s280
      %s295 = sphi 0, %s281
      %s299 = sphi 0, %s299
      %s301 = sphi 0, %s299
      %s302 = sphi 0, %s301
      %s316 = sphi 0, %s302
      %s320 = sphi 0, %s320
      %s322 = sphi 0, %s320
      %s323 = sphi 0, %s322
      %s337 = sphi 0, %s323
      %s341 = sphi 0, %s341
      %s343 = sphi 0, %s341
      %s344 = sphi 0, %s343
      %s358 = sphi 0, %s344
      %s362 = sphi 0, %s362
      %s364 = sphi 0, %s362
      %s365 = sphi 0, %s364
      %s379 = sphi 0, %s365
      %s383 = sphi 0, %s383
      %s385 = sphi 0, %s383
      %s386 = sphi 0, %s385
      %s400 = sphi 0, %s386
      %s404 = sphi 0, %s404
      %s406 = sphi 0, %s404
      %s407 = sphi 0, %s406
      %s421 = sphi 0, %s407
      %s425 = sphi 0, %s425
      %s427 = sphi 0, %s425
      %s428 = sphi 0, %s427
      %s442 = sphi 0, %s428
      %s446 = sphi 0, %s446
      %s448 = sphi 0, %s446
      %s449 = sphi 0, %s448
      %s463 = sphi 0, %s449
      %s467 = sphi 0, %s467
      %s469 = sphi 0, %s467
      %s470 = sphi 0, %s469
      %s484 = sphi 0, %s470
      %s488 = sphi 0, %s488
      %s490 = sphi 0, %s488
      %s491 = sphi 0, %s490
      %s505 = sphi 0, %s491
      %s509 = sphi 0, %s509
      %s511 = sphi 0, %s509
      %s512 = sphi 0, %s511
      %s526 = sphi 0, %s512
      %s530 = sphi 0, %s530
      %s532 = sphi 0, %s530
      %s533 = sphi 0, %s532
      %s547 = sphi 0, %s533
      %s551 = sphi 0, %s551
      %s553 = sphi 0, %s551
      %s554 = sphi 0, %s553
      %s568 = sphi 0, %s554
      %s572 = sphi 0, %s572
      %s574 = sphi 0, %s572
      %s575 = sphi 0, %s574
      %s589 = sphi 0, %s575
      %s593 = sphi 0, %s593
      %s595 = sphi 0, %s593
      %s596 = sphi 0, %s595
      %s610 = sphi 0, %s596
      %s616 = sphi 0, %s618
      %s619 = sphi 0, %s616
      %s620 = sphi 0, %s619
      %s636 = sphi 0, %s620
      %s642 = sphi 0, %s644
      %s645 = sphi 0, %s642
      %s646 = sphi 0, %s645
      %s662 = sphi 0, %s646
      %s670 = sphi 0, %s672
      %s673 = sphi 0, %s670
      %s674 = sphi 0, %s673
      %s690 = sphi 0, %s674
    $region4: #{model_forward.3} parent=1 // loop_header_branch
      %57 = sbr.rel (%p55) target = $region8
    $region5: #{model_forward.3} parent=1 // loop_body
      %s59 = ssub.s32 %s54, 1
      %s60 = ssub.s32 %s54, 2
      %s67 = sadd.s32 1, %s62
      %p68 = scmp.ge.s32.totalorder %s67, 1
      %s69 = scalar_select %p68, 0, %s67
      %s70 = sadd.s32 1, %s61
      %s71 = scalar_select %p68, %s70, %s61
      %p72 = scmp.ge.s32.totalorder %s71, 2
      %s73 = scalar_select %p72, 0, %s71
      %s74 = ssub.s32 %s61, %s73
      %p75 = scmp.eq.s32.totalorder %s74, 0
      %s77 = sadd.s32 %s76, 1
      %s78 = scalar_select %p75, %s76, %s77
      %p81 = pneg %p75
      %p82 = scmp.eq.s32.totalorder %s54, 1
      %p83 = por %p81, %p82
      %p84 = scmp.ne.s32.totalorder %s76, %s79
      %p85 = scmp.eq.s32.totalorder %s54, 0
      %p86 = por %p84, %p85
      %p87 = scmp.ne.s32.totalorder %s76, %s79
      %p88 = scmp.eq.s32.totalorder %s59, 1
      %p89 = por %p87, %p88
      %p90 = scmp.ne.s32.totalorder %s79, %s80
      %p91 = scmp.eq.s32.totalorder %s59, 0
      %p92 = por %p90, %p91
      %p93 = scmp.ne.s32.totalorder %s79, %s80
      %p94 = scmp.eq.s32.totalorder %s60, 1
      %p95 = por %p93, %p94
      %p97 = scmp.ne.s32.totalorder %s80, %s96
      %p98 = scmp.eq.s32.totalorder %s60, 0
      %p99 = por %p97, %p98
      %s100 = ssub.s32 %s61, %s73
      %p101 = scmp.eq.s32.totalorder %s100, 0
      %s103 = sadd.s32 %s102, 1
      %s104 = scalar_select %p101, %s102, %s103
      %p107 = pneg %p101
      %p108 = scmp.eq.s32.totalorder %s54, 1
      %p109 = por %p107, %p108
      %p110 = scmp.ne.s32.totalorder %s102, %s105
      %p111 = scmp.eq.s32.totalorder %s54, 0
      %p112 = por %p110, %p111
      %p113 = scmp.ne.s32.totalorder %s102, %s105
      %p114 = scmp.eq.s32.totalorder %s59, 1
      %p115 = por %p113, %p114
      %p116 = scmp.ne.s32.totalorder %s105, %s106
      %p117 = scmp.eq.s32.totalorder %s59, 0
      %p118 = por %p116, %p117
      %p119 = scmp.ne.s32.totalorder %s105, %s106
      %p120 = scmp.eq.s32.totalorder %s60, 1
      %p121 = por %p119, %p120
      %p123 = scmp.ne.s32.totalorder %s106, %s122
      %p124 = scmp.eq.s32.totalorder %s60, 0
      %p125 = por %p123, %p124
      %s126 = ssub.s32 %s61, %s73
      %p127 = scmp.eq.s32.totalorder %s126, 0
      %s129 = sadd.s32 %s128, 1
      %s130 = scalar_select %p127, %s128, %s129
      %p133 = pneg %p127
      %p134 = scmp.eq.s32.totalorder %s54, 1
      %p135 = por %p133, %p134
      %p136 = scmp.ne.s32.totalorder %s128, %s131
      %p137 = scmp.eq.s32.totalorder %s54, 0
      %p138 = por %p136, %p137
      %p139 = scmp.ne.s32.totalorder %s128, %s131
      %p140 = scmp.eq.s32.totalorder %s59, 1
      %p141 = por %p139, %p140
      %p142 = scmp.ne.s32.totalorder %s131, %s132
      %p143 = scmp.eq.s32.totalorder %s59, 0
      %p144 = por %p142, %p143
      %p145 = scmp.ne.s32.totalorder %s131, %s132
      %p146 = scmp.eq.s32.totalorder %s60, 1
      %p147 = por %p145, %p146
      %p149 = scmp.ne.s32.totalorder %s132, %s148
      %p150 = scmp.eq.s32.totalorder %s60, 0
      %p151 = por %p149, %p150
      %s153 = sadd.s32 %s152, 1
      %p156 = scmp.eq.s32.totalorder %s54, 1
      %p157 = scmp.ne.s32.totalorder %s152, %s154
      %p158 = scmp.eq.s32.totalorder %s54, 0
      %p159 = por %p157, %p158
      %p160 = scmp.ne.s32.totalorder %s152, %s154
      %p161 = scmp.eq.s32.totalorder %s59, 1
      %p162 = por %p160, %p161
      %p163 = scmp.ne.s32.totalorder %s154, %s155
      %p164 = scmp.eq.s32.totalorder %s59, 0
      %p165 = por %p163, %p164
      %p166 = scmp.ne.s32.totalorder %s154, %s155
      %p167 = scmp.eq.s32.totalorder %s60, 1
      %p168 = por %p166, %p167
      %p170 = scmp.ne.s32.totalorder %s155, %s169
      %p171 = scmp.eq.s32.totalorder %s60, 0
      %p172 = por %p170, %p171
      %s174 = sadd.s32 %s173, 1
      %p177 = scmp.eq.s32.totalorder %s54, 1
      %p178 = scmp.ne.s32.totalorder %s173, %s175
      %p179 = scmp.eq.s32.totalorder %s54, 0
      %p180 = por %p178, %p179
      %p181 = scmp.ne.s32.totalorder %s173, %s175
      %p182 = scmp.eq.s32.totalorder %s59, 1
      %p183 = por %p181, %p182
      %p184 = scmp.ne.s32.totalorder %s175, %s176
      %p185 = scmp.eq.s32.totalorder %s59, 0
      %p186 = por %p184, %p185
      %p187 = scmp.ne.s32.totalorder %s175, %s176
      %p188 = scmp.eq.s32.totalorder %s60, 1
      %p189 = por %p187, %p188
      %p191 = scmp.ne.s32.totalorder %s176, %s190
      %p192 = scmp.eq.s32.totalorder %s60, 0
      %p193 = por %p191, %p192
      %s195 = sadd.s32 %s194, 1
      %p198 = scmp.eq.s32.totalorder %s54, 1
      %p199 = scmp.ne.s32.totalorder %s194, %s196
      %p200 = scmp.eq.s32.totalorder %s54, 0
      %p201 = por %p199, %p200
      %p202 = scmp.ne.s32.totalorder %s194, %s196
      %p203 = scmp.eq.s32.totalorder %s59, 1
      %p204 = por %p202, %p203
      %p205 = scmp.ne.s32.totalorder %s196, %s197
      %p206 = scmp.eq.s32.totalorder %s59, 0
      %p207 = por %p205, %p206
      %p208 = scmp.ne.s32.totalorder %s196, %s197
      %p209 = scmp.eq.s32.totalorder %s60, 1
      %p210 = por %p208, %p209
      %p212 = scmp.ne.s32.totalorder %s197, %s211
      %p213 = scmp.eq.s32.totalorder %s60, 0
      %p214 = por %p212, %p213
      %s216 = sadd.s32 %s215, 1
      %p219 = scmp.eq.s32.totalorder %s54, 1
      %p220 = scmp.ne.s32.totalorder %s215, %s217
      %p221 = scmp.eq.s32.totalorder %s54, 0
      %p222 = por %p220, %p221
      %p223 = scmp.ne.s32.totalorder %s215, %s217
      %p224 = scmp.eq.s32.totalorder %s59, 1
      %p225 = por %p223, %p224
      %p226 = scmp.ne.s32.totalorder %s217, %s218
      %p227 = scmp.eq.s32.totalorder %s59, 0
      %p228 = por %p226, %p227
      %p229 = scmp.ne.s32.totalorder %s217, %s218
      %p230 = scmp.eq.s32.totalorder %s60, 1
      %p231 = por %p229, %p230
      %p233 = scmp.ne.s32.totalorder %s218, %s232
      %p234 = scmp.eq.s32.totalorder %s60, 0
      %p235 = por %p233, %p234
      %s237 = sadd.s32 %s236, 1
      %p240 = scmp.eq.s32.totalorder %s54, 1
      %p241 = scmp.ne.s32.totalorder %s236, %s238
      %p242 = scmp.eq.s32.totalorder %s54, 0
      %p243 = por %p241, %p242
      %p244 = scmp.ne.s32.totalorder %s236, %s238
      %p245 = scmp.eq.s32.totalorder %s59, 1
      %p246 = por %p244, %p245
      %p247 = scmp.ne.s32.totalorder %s238, %s239
      %p248 = scmp.eq.s32.totalorder %s59, 0
      %p249 = por %p247, %p248
      %p250 = scmp.ne.s32.totalorder %s238, %s239
      %p251 = scmp.eq.s32.totalorder %s60, 1
      %p252 = por %p250, %p251
      %p254 = scmp.ne.s32.totalorder %s239, %s253
      %p255 = scmp.eq.s32.totalorder %s60, 0
      %p256 = por %p254, %p255
      %s258 = sadd.s32 %s257, 1
      %p261 = scmp.eq.s32.totalorder %s54, 1
      %p262 = scmp.ne.s32.totalorder %s257, %s259
      %p263 = scmp.eq.s32.totalorder %s54, 0
      %p264 = por %p262, %p263
      %p265 = scmp.ne.s32.totalorder %s257, %s259
      %p266 = scmp.eq.s32.totalorder %s59, 1
      %p267 = por %p265, %p266
      %p268 = scmp.ne.s32.totalorder %s259, %s260
      %p269 = scmp.eq.s32.totalorder %s59, 0
      %p270 = por %p268, %p269
      %p271 = scmp.ne.s32.totalorder %s259, %s260
      %p272 = scmp.eq.s32.totalorder %s60, 1
      %p273 = por %p271, %p272
      %p275 = scmp.ne.s32.totalorder %s260, %s274
      %p276 = scmp.eq.s32.totalorder %s60, 0
      %p277 = por %p275, %p276
      %s279 = sadd.s32 %s278, 1
      %p282 = scmp.eq.s32.totalorder %s54, 1
      %p283 = scmp.ne.s32.totalorder %s278, %s280
      %p284 = scmp.eq.s32.totalorder %s54, 0
      %p285 = por %p283, %p284
      %p286 = scmp.ne.s32.totalorder %s278, %s280
      %p287 = scmp.eq.s32.totalorder %s59, 1
      %p288 = por %p286, %p287
      %p289 = scmp.ne.s32.totalorder %s280, %s281
      %p290 = scmp.eq.s32.totalorder %s59, 0
      %p291 = por %p289, %p290
      %p292 = scmp.ne.s32.totalorder %s280, %s281
      %p293 = scmp.eq.s32.totalorder %s60, 1
      %p294 = por %p292, %p293
      %p296 = scmp.ne.s32.totalorder %s281, %s295
      %p297 = scmp.eq.s32.totalorder %s60, 0
      %p298 = por %p296, %p297
      %s300 = sadd.s32 %s299, 1
      %p303 = scmp.eq.s32.totalorder %s54, 1
      %p304 = scmp.ne.s32.totalorder %s299, %s301
      %p305 = scmp.eq.s32.totalorder %s54, 0
      %p306 = por %p304, %p305
      %p307 = scmp.ne.s32.totalorder %s299, %s301
      %p308 = scmp.eq.s32.totalorder %s59, 1
      %p309 = por %p307, %p308
      %p310 = scmp.ne.s32.totalorder %s301, %s302
      %p311 = scmp.eq.s32.totalorder %s59, 0
      %p312 = por %p310, %p311
      %p313 = scmp.ne.s32.totalorder %s301, %s302
      %p314 = scmp.eq.s32.totalorder %s60, 1
      %p315 = por %p313, %p314
      %p317 = scmp.ne.s32.totalorder %s302, %s316
      %p318 = scmp.eq.s32.totalorder %s60, 0
      %p319 = por %p317, %p318
      %s321 = sadd.s32 %s320, 1
      %p324 = scmp.eq.s32.totalorder %s54, 1
      %p325 = scmp.ne.s32.totalorder %s320, %s322
      %p326 = scmp.eq.s32.totalorder %s54, 0
      %p327 = por %p325, %p326
      %p328 = scmp.ne.s32.totalorder %s320, %s322
      %p329 = scmp.eq.s32.totalorder %s59, 1
      %p330 = por %p328, %p329
      %p331 = scmp.ne.s32.totalorder %s322, %s323
      %p332 = scmp.eq.s32.totalorder %s59, 0
      %p333 = por %p331, %p332
      %p334 = scmp.ne.s32.totalorder %s322, %s323
      %p335 = scmp.eq.s32.totalorder %s60, 1
      %p336 = por %p334, %p335
      %p338 = scmp.ne.s32.totalorder %s323, %s337
      %p339 = scmp.eq.s32.totalorder %s60, 0
      %p340 = por %p338, %p339
      %s342 = sadd.s32 %s341, 1
      %p345 = scmp.eq.s32.totalorder %s54, 1
      %p346 = scmp.ne.s32.totalorder %s341, %s343
      %p347 = scmp.eq.s32.totalorder %s54, 0
      %p348 = por %p346, %p347
      %p349 = scmp.ne.s32.totalorder %s341, %s343
      %p350 = scmp.eq.s32.totalorder %s59, 1
      %p351 = por %p349, %p350
      %p352 = scmp.ne.s32.totalorder %s343, %s344
      %p353 = scmp.eq.s32.totalorder %s59, 0
      %p354 = por %p352, %p353
      %p355 = scmp.ne.s32.totalorder %s343, %s344
      %p356 = scmp.eq.s32.totalorder %s60, 1
      %p357 = por %p355, %p356
      %p359 = scmp.ne.s32.totalorder %s344, %s358
      %p360 = scmp.eq.s32.totalorder %s60, 0
      %p361 = por %p359, %p360
      %s363 = sadd.s32 %s362, 1
      %p366 = scmp.eq.s32.totalorder %s54, 1
      %p367 = scmp.ne.s32.totalorder %s362, %s364
      %p368 = scmp.eq.s32.totalorder %s54, 0
      %p369 = por %p367, %p368
      %p370 = scmp.ne.s32.totalorder %s362, %s364
      %p371 = scmp.eq.s32.totalorder %s59, 1
      %p372 = por %p370, %p371
      %p373 = scmp.ne.s32.totalorder %s364, %s365
      %p374 = scmp.eq.s32.totalorder %s59, 0
      %p375 = por %p373, %p374
      %p376 = scmp.ne.s32.totalorder %s364, %s365
      %p377 = scmp.eq.s32.totalorder %s60, 1
      %p378 = por %p376, %p377
      %p380 = scmp.ne.s32.totalorder %s365, %s379
      %p381 = scmp.eq.s32.totalorder %s60, 0
      %p382 = por %p380, %p381
      %s384 = sadd.s32 %s383, 1
      %p387 = scmp.eq.s32.totalorder %s54, 1
      %p388 = scmp.ne.s32.totalorder %s383, %s385
      %p389 = scmp.eq.s32.totalorder %s54, 0
      %p390 = por %p388, %p389
      %p391 = scmp.ne.s32.totalorder %s383, %s385
      %p392 = scmp.eq.s32.totalorder %s59, 1
      %p393 = por %p391, %p392
      %p394 = scmp.ne.s32.totalorder %s385, %s386
      %p395 = scmp.eq.s32.totalorder %s59, 0
      %p396 = por %p394, %p395
      %p397 = scmp.ne.s32.totalorder %s385, %s386
      %p398 = scmp.eq.s32.totalorder %s60, 1
      %p399 = por %p397, %p398
      %p401 = scmp.ne.s32.totalorder %s386, %s400
      %p402 = scmp.eq.s32.totalorder %s60, 0
      %p403 = por %p401, %p402
      %s405 = sadd.s32 %s404, 1
      %p408 = scmp.eq.s32.totalorder %s54, 1
      %p409 = scmp.ne.s32.totalorder %s404, %s406
      %p410 = scmp.eq.s32.totalorder %s54, 0
      %p411 = por %p409, %p410
      %p412 = scmp.ne.s32.totalorder %s404, %s406
      %p413 = scmp.eq.s32.totalorder %s59, 1
      %p414 = por %p412, %p413
      %p415 = scmp.ne.s32.totalorder %s406, %s407
      %p416 = scmp.eq.s32.totalorder %s59, 0
      %p417 = por %p415, %p416
      %p418 = scmp.ne.s32.totalorder %s406, %s407
      %p419 = scmp.eq.s32.totalorder %s60, 1
      %p420 = por %p418, %p419
      %p422 = scmp.ne.s32.totalorder %s407, %s421
      %p423 = scmp.eq.s32.totalorder %s60, 0
      %p424 = por %p422, %p423
      %s426 = sadd.s32 %s425, 1
      %p429 = scmp.eq.s32.totalorder %s54, 1
      %p430 = scmp.ne.s32.totalorder %s425, %s427
      %p431 = scmp.eq.s32.totalorder %s54, 0
      %p432 = por %p430, %p431
      %p433 = scmp.ne.s32.totalorder %s425, %s427
      %p434 = scmp.eq.s32.totalorder %s59, 1
      %p435 = por %p433, %p434
      %p436 = scmp.ne.s32.totalorder %s427, %s428
      %p437 = scmp.eq.s32.totalorder %s59, 0
      %p438 = por %p436, %p437
      %p439 = scmp.ne.s32.totalorder %s427, %s428
      %p440 = scmp.eq.s32.totalorder %s60, 1
      %p441 = por %p439, %p440
      %p443 = scmp.ne.s32.totalorder %s428, %s442
      %p444 = scmp.eq.s32.totalorder %s60, 0
      %p445 = por %p443, %p444
      %s447 = sadd.s32 %s446, 1
      %p450 = scmp.eq.s32.totalorder %s54, 1
      %p451 = scmp.ne.s32.totalorder %s446, %s448
      %p452 = scmp.eq.s32.totalorder %s54, 0
      %p453 = por %p451, %p452
      %p454 = scmp.ne.s32.totalorder %s446, %s448
      %p455 = scmp.eq.s32.totalorder %s59, 1
      %p456 = por %p454, %p455
      %p457 = scmp.ne.s32.totalorder %s448, %s449
      %p458 = scmp.eq.s32.totalorder %s59, 0
      %p459 = por %p457, %p458
      %p460 = scmp.ne.s32.totalorder %s448, %s449
      %p461 = scmp.eq.s32.totalorder %s60, 1
      %p462 = por %p460, %p461
      %p464 = scmp.ne.s32.totalorder %s449, %s463
      %p465 = scmp.eq.s32.totalorder %s60, 0
      %p466 = por %p464, %p465
      %s468 = sadd.s32 %s467, 1
      %p471 = scmp.eq.s32.totalorder %s54, 1
      %p472 = scmp.ne.s32.totalorder %s467, %s469
      %p473 = scmp.eq.s32.totalorder %s54, 0
      %p474 = por %p472, %p473
      %p475 = scmp.ne.s32.totalorder %s467, %s469
      %p476 = scmp.eq.s32.totalorder %s59, 1
      %p477 = por %p475, %p476
      %p478 = scmp.ne.s32.totalorder %s469, %s470
      %p479 = scmp.eq.s32.totalorder %s59, 0
      %p480 = por %p478, %p479
      %p481 = scmp.ne.s32.totalorder %s469, %s470
      %p482 = scmp.eq.s32.totalorder %s60, 1
      %p483 = por %p481, %p482
      %p485 = scmp.ne.s32.totalorder %s470, %s484
      %p486 = scmp.eq.s32.totalorder %s60, 0
      %p487 = por %p485, %p486
      %s489 = sadd.s32 %s488, 1
      %p492 = scmp.eq.s32.totalorder %s54, 1
      %p493 = scmp.ne.s32.totalorder %s488, %s490
      %p494 = scmp.eq.s32.totalorder %s54, 0
      %p495 = por %p493, %p494
      %p496 = scmp.ne.s32.totalorder %s488, %s490
      %p497 = scmp.eq.s32.totalorder %s59, 1
      %p498 = por %p496, %p497
      %p499 = scmp.ne.s32.totalorder %s490, %s491
      %p500 = scmp.eq.s32.totalorder %s59, 0
      %p501 = por %p499, %p500
      %p502 = scmp.ne.s32.totalorder %s490, %s491
      %p503 = scmp.eq.s32.totalorder %s60, 1
      %p504 = por %p502, %p503
      %p506 = scmp.ne.s32.totalorder %s491, %s505
      %p507 = scmp.eq.s32.totalorder %s60, 0
      %p508 = por %p506, %p507
      %s510 = sadd.s32 %s509, 1
      %p513 = scmp.eq.s32.totalorder %s54, 1
      %p514 = scmp.ne.s32.totalorder %s509, %s511
      %p515 = scmp.eq.s32.totalorder %s54, 0
      %p516 = por %p514, %p515
      %p517 = scmp.ne.s32.totalorder %s509, %s511
      %p518 = scmp.eq.s32.totalorder %s59, 1
      %p519 = por %p517, %p518
      %p520 = scmp.ne.s32.totalorder %s511, %s512
      %p521 = scmp.eq.s32.totalorder %s59, 0
      %p522 = por %p520, %p521
      %p523 = scmp.ne.s32.totalorder %s511, %s512
      %p524 = scmp.eq.s32.totalorder %s60, 1
      %p525 = por %p523, %p524
      %p527 = scmp.ne.s32.totalorder %s512, %s526
      %p528 = scmp.eq.s32.totalorder %s60, 0
      %p529 = por %p527, %p528
      %s531 = sadd.s32 %s530, 1
      %p534 = scmp.eq.s32.totalorder %s54, 1
      %p535 = scmp.ne.s32.totalorder %s530, %s532
      %p536 = scmp.eq.s32.totalorder %s54, 0
      %p537 = por %p535, %p536
      %p538 = scmp.ne.s32.totalorder %s530, %s532
      %p539 = scmp.eq.s32.totalorder %s59, 1
      %p540 = por %p538, %p539
      %p541 = scmp.ne.s32.totalorder %s532, %s533
      %p542 = scmp.eq.s32.totalorder %s59, 0
      %p543 = por %p541, %p542
      %p544 = scmp.ne.s32.totalorder %s532, %s533
      %p545 = scmp.eq.s32.totalorder %s60, 1
      %p546 = por %p544, %p545
      %p548 = scmp.ne.s32.totalorder %s533, %s547
      %p549 = scmp.eq.s32.totalorder %s60, 0
      %p550 = por %p548, %p549
      %s552 = sadd.s32 %s551, 1
      %p555 = scmp.eq.s32.totalorder %s54, 1
      %p556 = scmp.ne.s32.totalorder %s551, %s553
      %p557 = scmp.eq.s32.totalorder %s54, 0
      %p558 = por %p556, %p557
      %p559 = scmp.ne.s32.totalorder %s551, %s553
      %p560 = scmp.eq.s32.totalorder %s59, 1
      %p561 = por %p559, %p560
      %p562 = scmp.ne.s32.totalorder %s553, %s554
      %p563 = scmp.eq.s32.totalorder %s59, 0
      %p564 = por %p562, %p563
      %p565 = scmp.ne.s32.totalorder %s553, %s554
      %p566 = scmp.eq.s32.totalorder %s60, 1
      %p567 = por %p565, %p566
      %p569 = scmp.ne.s32.totalorder %s554, %s568
      %p570 = scmp.eq.s32.totalorder %s60, 0
      %p571 = por %p569, %p570
      %s573 = sadd.s32 %s572, 1
      %p576 = scmp.eq.s32.totalorder %s54, 1
      %p577 = scmp.ne.s32.totalorder %s572, %s574
      %p578 = scmp.eq.s32.totalorder %s54, 0
      %p579 = por %p577, %p578
      %p580 = scmp.ne.s32.totalorder %s572, %s574
      %p581 = scmp.eq.s32.totalorder %s59, 1
      %p582 = por %p580, %p581
      %p583 = scmp.ne.s32.totalorder %s574, %s575
      %p584 = scmp.eq.s32.totalorder %s59, 0
      %p585 = por %p583, %p584
      %p586 = scmp.ne.s32.totalorder %s574, %s575
      %p587 = scmp.eq.s32.totalorder %s60, 1
      %p588 = por %p586, %p587
      %p590 = scmp.ne.s32.totalorder %s575, %s589
      %p591 = scmp.eq.s32.totalorder %s60, 0
      %p592 = por %p590, %p591
      %s594 = sadd.s32 %s593, 1
      %p597 = scmp.eq.s32.totalorder %s54, 1
      %p598 = scmp.ne.s32.totalorder %s593, %s595
      %p599 = scmp.eq.s32.totalorder %s54, 0
      %p600 = por %p598, %p599
      %p601 = scmp.ne.s32.totalorder %s593, %s595
      %p602 = scmp.eq.s32.totalorder %s59, 1
      %p603 = por %p601, %p602
      %p604 = scmp.ne.s32.totalorder %s595, %s596
      %p605 = scmp.eq.s32.totalorder %s59, 0
      %p606 = por %p604, %p605
      %p607 = scmp.ne.s32.totalorder %s595, %s596
      %p608 = scmp.eq.s32.totalorder %s60, 1
      %p609 = por %p607, %p608
      %p611 = scmp.ne.s32.totalorder %s596, %s610
      %p612 = scmp.eq.s32.totalorder %s60, 0
      %p613 = por %p611, %p612
      %s614 = ssub.s32 %s62, %s69
      %p615 = scmp.eq.s32.totalorder %s614, 0
      %s617 = sadd.s32 %s616, 1
      %s618 = scalar_select %p615, %s616, %s617
      %p621 = pneg %p615
      %p622 = scmp.eq.s32.totalorder %s54, 1
      %p623 = por %p621, %p622
      %p624 = scmp.ne.s32.totalorder %s616, %s619
      %p625 = scmp.eq.s32.totalorder %s54, 0
      %p626 = por %p624, %p625
      %p627 = scmp.ne.s32.totalorder %s616, %s619
      %p628 = scmp.eq.s32.totalorder %s59, 1
      %p629 = por %p627, %p628
      %p630 = scmp.ne.s32.totalorder %s619, %s620
      %p631 = scmp.eq.s32.totalorder %s59, 0
      %p632 = por %p630, %p631
      %p633 = scmp.ne.s32.totalorder %s619, %s620
      %p634 = scmp.eq.s32.totalorder %s60, 1
      %p635 = por %p633, %p634
      %p637 = scmp.ne.s32.totalorder %s620, %s636
      %p638 = scmp.eq.s32.totalorder %s60, 0
      %p639 = por %p637, %p638
      %s640 = ssub.s32 %s62, %s69
      %p641 = scmp.eq.s32.totalorder %s640, 0
      %s643 = sadd.s32 %s642, 1
      %s644 = scalar_select %p641, %s642, %s643
      %p647 = pneg %p641
      %p648 = scmp.eq.s32.totalorder %s54, 1
      %p649 = por %p647, %p648
      %p650 = scmp.ne.s32.totalorder %s642, %s645
      %p651 = scmp.eq.s32.totalorder %s54, 0
      %p652 = por %p650, %p651
      %p653 = scmp.ne.s32.totalorder %s642, %s645
      %p654 = scmp.eq.s32.totalorder %s59, 1
      %p655 = por %p653, %p654
      %p656 = scmp.ne.s32.totalorder %s645, %s646
      %p657 = scmp.eq.s32.totalorder %s59, 0
      %p658 = por %p656, %p657
      %p659 = scmp.ne.s32.totalorder %s645, %s646
      %p660 = scmp.eq.s32.totalorder %s60, 1
      %p661 = por %p659, %p660
      %p663 = scmp.ne.s32.totalorder %s646, %s662
      %p664 = scmp.eq.s32.totalorder %s60, 0
      %p665 = por %p663, %p664
      %s666 = ssub.s32 %s61, %s73
      %s667 = ssub.s32 %s62, %s69
      %s668 = sor.u32 %s666, %s667
      %p669 = scmp.eq.s32.totalorder %s668, 0
      %s671 = sadd.s32 %s670, 1
      %s672 = scalar_select %p669, %s670, %s671
      %p675 = pneg %p669
      %p676 = scmp.eq.s32.totalorder %s54, 1
      %p677 = por %p675, %p676
      %p678 = scmp.ne.s32.totalorder %s670, %s673
      %p679 = scmp.eq.s32.totalorder %s54, 0
      %p680 = por %p678, %p679
      %p681 = scmp.ne.s32.totalorder %s670, %s673
      %p682 = scmp.eq.s32.totalorder %s59, 1
      %p683 = por %p681, %p682
      %p684 = scmp.ne.s32.totalorder %s673, %s674
      %p685 = scmp.eq.s32.totalorder %s59, 0
      %p686 = por %p684, %p685
      %p687 = scmp.ne.s32.totalorder %s673, %s674
      %p688 = scmp.eq.s32.totalorder %s60, 1
      %p689 = por %p687, %p688
      %p691 = scmp.ne.s32.totalorder %s674, %s690
      %p692 = scmp.eq.s32.totalorder %s60, 0
      %p693 = por %p691, %p692
      %p694 = scmp.le.s32.totalorder 1, %s54
      %p695 = scmp.lt.s32.totalorder %s54, 3
      %p696 = pnand %p694, %p695
      %p697 = pneg %p696
      // Predicated region
      $region9: #{model_forward.3} parent=5 // pred_check
        _
      $region10: #{model_forward.3} parent=5 // pred_check_branch
        %699 = sbr.rel (%p696) target = $region12
      $region11: #{model_forward.3} parent=5 // pred_region
        %s700 = ssub.s32 %s54, 1
        // Predicated region
        $region13: #{model_forward.3} parent=11 // pred_check
          %p701 = pneg %p165
        $region14: #{model_forward.3} parent=11 // pred_check_branch
          %703 = sbr.rel (%p701) target = $region16
        $region15: #{model_forward.3} parent=11 // pred_region
          %s705 = ssub.s32 256, 256
          %706 = vsyncadd [#allocation10], %s705
          %s707 = sshll.u32 [#allocation9], 4
          %s708 = int_to_ptr.vmem [resolvable:$true] %s707
          %713 = dma.hbm_to_vmem [thread:$0]  %s3, 256, %s708, [#allocation10], 64, 64, 4
        $region16: #{model_forward.3} parent=11 // pred_fallthru
          _
        // Predicated region
        $region17: #{model_forward.3} parent=11 // pred_check
          %p714 = pneg %p186
        $region18: #{model_forward.3} parent=11 // pred_check_branch
          %716 = sbr.rel (%p714) target = $region20
        $region19: #{model_forward.3} parent=11 // pred_region
          %s718 = ssub.s32 16, 16
          %719 = vsyncadd [#allocation10], %s718
          %s721 = sshll.u32 [#allocation11], 4
          %s722 = int_to_ptr.vmem [resolvable:$true] %s721
          %724 = dma.hbm_to_vmem [thread:$0]  %s4, 16, %s722, [#allocation10]
        $region20: #{model_forward.3} parent=11 // pred_fallthru
          _
        // Predicated region
        $region21: #{model_forward.3} parent=11 // pred_check
          %p725 = pneg %p207
        $region22: #{model_forward.3} parent=11 // pred_check_branch
          %727 = sbr.rel (%p725) target = $region24
        $region23: #{model_forward.3} parent=11 // pred_region
          %s729 = ssub.s32 256, 256
          %730 = vsyncadd [#allocation13], %s729
          %s731 = sshll.u32 [#allocation12], 4
          %s732 = int_to_ptr.vmem [resolvable:$true] %s731
          %737 = dma.hbm_to_vmem [thread:$0]  %s5, 256, %s732, [#allocation13], 64, 64, 4
        $region24: #{model_forward.3} parent=11 // pred_fallthru
          _
        // Predicated region
        $region25: #{model_forward.3} parent=11 // pred_check
          %p738 = pneg %p228
        $region26: #{model_forward.3} parent=11 // pred_check_branch
          %740 = sbr.rel (%p738) target = $region28
        $region27: #{model_forward.3} parent=11 // pred_region
          %s742 = ssub.s32 16, 16
          %743 = vsyncadd [#allocation13], %s742
          %s745 = sshll.u32 [#allocation14], 4
          %s746 = int_to_ptr.vmem [resolvable:$true] %s745
          %748 = dma.hbm_to_vmem [thread:$0]  %s6, 16, %s746, [#allocation13]
        $region28: #{model_forward.3} parent=11 // pred_fallthru
          _
        // Predicated region
        $region29: #{model_forward.3} parent=11 // pred_check
          %p749 = pneg %p249
        $region30: #{model_forward.3} parent=11 // pred_check_branch
          %751 = sbr.rel (%p749) target = $region32
        $region31: #{model_forward.3} parent=11 // pred_region
          %s753 = ssub.s32 256, 256
          %754 = vsyncadd [#allocation16], %s753
          %s755 = sshll.u32 [#allocation15], 4
          %s756 = int_to_ptr.vmem [resolvable:$true] %s755
          %761 = dma.hbm_to_vmem [thread:$0]  %s7, 256, %s756, [#allocation16], 64, 64, 4
        $region32: #{model_forward.3} parent=11 // pred_fallthru
          _
        // Predicated region
        $region33: #{model_forward.3} parent=11 // pred_check
          %p762 = pneg %p270
        $region34: #{model_forward.3} parent=11 // pred_check_branch
          %764 = sbr.rel (%p762) target = $region36
        $region35: #{model_forward.3} parent=11 // pred_region
          %s766 = ssub.s32 16, 16
          %767 = vsyncadd [#allocation16], %s766
          %s769 = sshll.u32 [#allocation17], 4
          %s770 = int_to_ptr.vmem [resolvable:$true] %s769
          %772 = dma.hbm_to_vmem [thread:$0]  %s8, 16, %s770, [#allocation16]
        $region36: #{model_forward.3} parent=11 // pred_fallthru
          _
        // Predicated region
        $region37: #{model_forward.3} parent=11 // pred_check
          %p773 = pneg %p291
        $region38: #{model_forward.3} parent=11 // pred_check_branch
          %775 = sbr.rel (%p773) target = $region40
        $region39: #{model_forward.3} parent=11 // pred_region
          %s777 = ssub.s32 256, 256
          %778 = vsyncadd [#allocation19], %s777
          %s779 = sshll.u32 [#allocation18], 4
          %s780 = int_to_ptr.vmem [resolvable:$true] %s779
          %785 = dma.hbm_to_vmem [thread:$0]  %s9, 256, %s780, [#allocation19], 64, 64, 4
        $region40: #{model_forward.3} parent=11 // pred_fallthru
          _
        // Predicated region
        $region41: #{model_forward.3} parent=11 // pred_check
          %p786 = pneg %p312
        $region42: #{model_forward.3} parent=11 // pred_check_branch
          %788 = sbr.rel (%p786) target = $region44
        $region43: #{model_forward.3} parent=11 // pred_region
          %s790 = ssub.s32 16, 16
          %791 = vsyncadd [#allocation19], %s790
          %s793 = sshll.u32 [#allocation20], 4
          %s794 = int_to_ptr.vmem [resolvable:$true] %s793
          %796 = dma.hbm_to_vmem [thread:$0]  %s10, 16, %s794, [#allocation19]
        $region44: #{model_forward.3} parent=11 // pred_fallthru
          _
        // Predicated region
        $region45: #{model_forward.3} parent=11 // pred_check
          %p797 = pneg %p333
        $region46: #{model_forward.3} parent=11 // pred_check_branch
          %799 = sbr.rel (%p797) target = $region48
        $region47: #{model_forward.3} parent=11 // pred_region
          %s801 = ssub.s32 16, 16
          %802 = vsyncadd [#allocation22], %s801
          %s804 = sshll.u32 [#allocation21], 4
          %s805 = int_to_ptr.vmem [resolvable:$true] %s804
          %807 = dma.hbm_to_vmem [thread:$0]  %s11, 16, %s805, [#allocation22]
        $region48: #{model_forward.3} parent=11 // pred_fallthru
          _
        // Predicated region
        $region49: #{model_forward.3} parent=11 // pred_check
          %p808 = pneg %p354
        $region50: #{model_forward.3} parent=11 // pred_check_branch
          %810 = sbr.rel (%p808) target = $region52
        $region51: #{model_forward.3} parent=11 // pred_region
          %s812 = ssub.s32 16, 16
          %813 = vsyncadd [#allocation22], %s812
          %s815 = sshll.u32 [#allocation23], 4
          %s816 = int_to_ptr.vmem [resolvable:$true] %s815
          %818 = dma.hbm_to_vmem [thread:$0]  %s12, 16, %s816, [#allocation22]
        $region52: #{model_forward.3} parent=11 // pred_fallthru
          _
        // Predicated region
        $region53: #{model_forward.3} parent=11 // pred_check
          %p819 = pneg %p375
        $region54: #{model_forward.3} parent=11 // pred_check_branch
          %821 = sbr.rel (%p819) target = $region56
        $region55: #{model_forward.3} parent=11 // pred_region
          %s823 = ssub.s32 256, 256
          %824 = vsyncadd [#allocation25], %s823
          %s825 = sshll.u32 [#allocation24], 4
          %s826 = int_to_ptr.vmem [resolvable:$true] %s825
          %831 = dma.hbm_to_vmem [thread:$0]  %s13, 256, %s826, [#allocation25], 64, 64, 4
        $region56: #{model_forward.3} parent=11 // pred_fallthru
          _
        // Predicated region
        $region57: #{model_forward.3} parent=11 // pred_check
          %p832 = pneg %p396
        $region58: #{model_forward.3} parent=11 // pred_check_branch
          %834 = sbr.rel (%p832) target = $region60
        $region59: #{model_forward.3} parent=11 // pred_region
          %s836 = ssub.s32 16, 16
          %837 = vsyncadd [#allocation25], %s836
          %s839 = sshll.u32 [#allocation26], 4
          %s840 = int_to_ptr.vmem [resolvable:$true] %s839
          %842 = dma.hbm_to_vmem [thread:$0]  %s14, 16, %s840, [#allocation25]
        $region60: #{model_forward.3} parent=11 // pred_fallthru
          _
        // Predicated region
        $region61: #{model_forward.3} parent=11 // pred_check
          %p843 = pneg %p417
        $region62: #{model_forward.3} parent=11 // pred_check_branch
          %845 = sbr.rel (%p843) target = $region64
        $region63: #{model_forward.3} parent=11 // pred_region
          %s847 = ssub.s32 256, 256
          %848 = vsyncadd [#allocation28], %s847
          %s849 = sshll.u32 [#allocation27], 4
          %s850 = int_to_ptr.vmem [resolvable:$true] %s849
          %855 = dma.hbm_to_vmem [thread:$0]  %s15, 256, %s850, [#allocation28], 64, 64, 4
        $region64: #{model_forward.3} parent=11 // pred_fallthru
          _
        // Predicated region
        $region65: #{model_forward.3} parent=11 // pred_check
          %p856 = pneg %p438
        $region66: #{model_forward.3} parent=11 // pred_check_branch
          %858 = sbr.rel (%p856) target = $region68
        $region67: #{model_forward.3} parent=11 // pred_region
          %s860 = ssub.s32 16, 16
          %861 = vsyncadd [#allocation28], %s860
          %s863 = sshll.u32 [#allocation29], 4
          %s864 = int_to_ptr.vmem [resolvable:$true] %s863
          %866 = dma.hbm_to_vmem [thread:$0]  %s16, 16, %s864, [#allocation28]
        $region68: #{model_forward.3} parent=11 // pred_fallthru
          _
        // Predicated region
        $region69: #{model_forward.3} parent=11 // pred_check
          %p867 = pneg %p459
        $region70: #{model_forward.3} parent=11 // pred_check_branch
          %869 = sbr.rel (%p867) target = $region72
        $region71: #{model_forward.3} parent=11 // pred_region
          %s871 = ssub.s32 16, 16
          %872 = vsyncadd [#allocation31], %s871
          %s874 = sshll.u32 [#allocation30], 4
          %s875 = int_to_ptr.vmem [resolvable:$true] %s874
          %877 = dma.hbm_to_vmem [thread:$0]  %s17, 16, %s875, [#allocation31]
        $region72: #{model_forward.3} parent=11 // pred_fallthru
          _
        // Predicated region
        $region73: #{model_forward.3} parent=11 // pred_check
          %p878 = pneg %p480
        $region74: #{model_forward.3} parent=11 // pred_check_branch
          %880 = sbr.rel (%p878) target = $region76
        $region75: #{model_forward.3} parent=11 // pred_region
          %s882 = ssub.s32 16, 16
          %883 = vsyncadd [#allocation31], %s882
          %s885 = sshll.u32 [#allocation32], 4
          %s886 = int_to_ptr.vmem [resolvable:$true] %s885
          %888 = dma.hbm_to_vmem [thread:$0]  %s18, 16, %s886, [#allocation31]
        $region76: #{model_forward.3} parent=11 // pred_fallthru
          _
        // Predicated region
        $region77: #{model_forward.3} parent=11 // pred_check
          %p889 = pneg %p501
        $region78: #{model_forward.3} parent=11 // pred_check_branch
          %891 = sbr.rel (%p889) target = $region80
        $region79: #{model_forward.3} parent=11 // pred_region
          %s893 = ssub.s32 256, 256
          %894 = vsyncadd [#allocation34], %s893
          %s895 = sshll.u32 [#allocation33], 4
          %s896 = int_to_ptr.vmem [resolvable:$true] %s895
          %901 = dma.hbm_to_vmem [thread:$0]  %s19, 256, %s896, [#allocation34], 64, 64, 4
        $region80: #{model_forward.3} parent=11 // pred_fallthru
          _
        // Predicated region
        $region81: #{model_forward.3} parent=11 // pred_check
          %p902 = pneg %p522
        $region82: #{model_forward.3} parent=11 // pred_check_branch
          %904 = sbr.rel (%p902) target = $region84
        $region83: #{model_forward.3} parent=11 // pred_region
          %s906 = ssub.s32 16, 16
          %907 = vsyncadd [#allocation34], %s906
          %s909 = sshll.u32 [#allocation35], 4
          %s910 = int_to_ptr.vmem [resolvable:$true] %s909
          %912 = dma.hbm_to_vmem [thread:$0]  %s20, 16, %s910, [#allocation34]
        $region84: #{model_forward.3} parent=11 // pred_fallthru
          _
        // Predicated region
        $region85: #{model_forward.3} parent=11 // pred_check
          %p913 = pneg %p543
        $region86: #{model_forward.3} parent=11 // pred_check_branch
          %915 = sbr.rel (%p913) target = $region88
        $region87: #{model_forward.3} parent=11 // pred_region
          %s917 = ssub.s32 512, 512
          %918 = vsyncadd [#allocation37], %s917
          %s919 = sshll.u32 [#allocation36], 4
          %s920 = int_to_ptr.vmem [resolvable:$true] %s919
          %925 = dma.hbm_to_vmem [thread:$0]  %s21, 512, %s920, [#allocation37], 64, 64, 4
        $region88: #{model_forward.3} parent=11 // pred_fallthru
          _
        // Predicated region
        $region89: #{model_forward.3} parent=11 // pred_check
          %p926 = pneg %p564
        $region90: #{model_forward.3} parent=11 // pred_check_branch
          %928 = sbr.rel (%p926) target = $region92
        $region91: #{model_forward.3} parent=11 // pred_region
          %s930 = ssub.s32 16, 16
          %931 = vsyncadd [#allocation37], %s930
          %s933 = sshll.u32 [#allocation38], 4
          %s934 = int_to_ptr.vmem [resolvable:$true] %s933
          %936 = dma.hbm_to_vmem [thread:$0]  %s22, 16, %s934, [#allocation37]
        $region92: #{model_forward.3} parent=11 // pred_fallthru
          _
        // Predicated region
        $region93: #{model_forward.3} parent=11 // pred_check
          %p937 = pneg %p585
        $region94: #{model_forward.3} parent=11 // pred_check_branch
          %939 = sbr.rel (%p937) target = $region96
        $region95: #{model_forward.3} parent=11 // pred_region
          %s941 = ssub.s32 16, 16
          %942 = vsyncadd [#allocation40], %s941
          %s944 = sshll.u32 [#allocation39], 4
          %s945 = int_to_ptr.vmem [resolvable:$true] %s944
          %947 = dma.hbm_to_vmem [thread:$0]  %s23, 16, %s945, [#allocation40]
        $region96: #{model_forward.3} parent=11 // pred_fallthru
          _
        // Predicated region
        $region97: #{model_forward.3} parent=11 // pred_check
          %p948 = pneg %p606
        $region98: #{model_forward.3} parent=11 // pred_check_branch
          %950 = sbr.rel (%p948) target = $region100
        $region99: #{model_forward.3} parent=11 // pred_region
          %s952 = ssub.s32 16, 16
          %953 = vsyncadd [#allocation40], %s952
          %s955 = sshll.u32 [#allocation41], 4
          %s956 = int_to_ptr.vmem [resolvable:$true] %s955
          %958 = dma.hbm_to_vmem [thread:$0]  %s24, 16, %s956, [#allocation40]
        $region100: #{model_forward.3} parent=11 // pred_fallthru
          _
        // Predicated region
        $region101: #{model_forward.3} parent=11 // pred_check
          %p959 = pneg %p632
        $region102: #{model_forward.3} parent=11 // pred_check_branch
          %961 = sbr.rel (%p959) target = $region104
        $region103: #{model_forward.3} parent=11 // pred_region
          %s963 = ssub.s32 256, 256
          %964 = vsyncadd [#allocation43], %s963
          %s965 = smul.addr %s64, 64
          %s966 = scalar_lea.hbm %s25, %s965
          %s967 = sshll.u32 [#allocation42], 4
          %s968 = int_to_ptr.vmem [resolvable:$true] %s967
          %973 = dma.hbm_to_vmem [thread:$0]  %s966, 256, %s968, [#allocation43], 64, 64, 4
        $region104: #{model_forward.3} parent=11 // pred_fallthru
          _
        // Predicated region
        $region105: #{model_forward.3} parent=11 // pred_check
          %p974 = pneg %p658
        $region106: #{model_forward.3} parent=11 // pred_check_branch
          %976 = sbr.rel (%p974) target = $region108
        $region107: #{model_forward.3} parent=11 // pred_region
          %s978 = ssub.s32 16, 16
          %979 = vsyncadd [#allocation43], %s978
          %s980 = smul.addr %s64, 16
          %s981 = scalar_lea.hbm %s26, %s980
          %s983 = sshll.u32 [#allocation44], 4
          %s984 = int_to_ptr.vmem [resolvable:$true] %s983
          %986 = dma.hbm_to_vmem [thread:$0]  %s981, 16, %s984, [#allocation43]
        $region108: #{model_forward.3} parent=11 // pred_fallthru
          _
      $region12: #{model_forward.3} parent=5 // pred_fallthru
        _
      %p987 = scmp.lt.s32.totalorder %s54, 2
      // Predicated region
      $region109: #{model_forward.3} parent=5 // pred_check
        %p988 = pneg %p987
      $region110: #{model_forward.3} parent=5 // pred_check_branch
        %990 = sbr.rel (%p988) target = $region112
      $region111: #{model_forward.3} parent=5 // pred_region
        // Predicated region
        $region113: #{model_forward.3} parent=111 // pred_check
          %p991 = pneg %p86
        $region114: #{model_forward.3} parent=111 // pred_check_branch
          %993 = sbr.rel (%p991) target = $region116
        $region115: #{model_forward.3} parent=111 // pred_region
          %s994 = sand.u32 %s76, 1
          %s995 = scalar_lea.sflag [#allocation4], %s994
          %s996 = sand.u32 %s76, 1
          %s997 = smul.addr %s996, 8
          %s998 = scalar_lea.vmem [#allocation3], %s997
          %s1000 = ssub.s32 128, 128
          %1001 = vsyncadd %s995, %s1000
          %s1002 = smul.addr %s61, 128
          %s1003 = scalar_lea.hbm %s0, %s1002
          %s1005 = sshll.u32 %s998, 4
          %s1006 = int_to_ptr.vmem [resolvable:$true] %s1005
          %1008 = dma.hbm_to_vmem [thread:$0]  %s1003, 128, %s1006, %s995
        $region116: #{model_forward.3} parent=111 // pred_fallthru
          _
        // Predicated region
        $region117: #{model_forward.3} parent=111 // pred_check
          %p1009 = pneg %p112
        $region118: #{model_forward.3} parent=111 // pred_check_branch
          %1011 = sbr.rel (%p1009) target = $region120
        $region119: #{model_forward.3} parent=111 // pred_region
          %s1012 = sand.u32 %s54, 1
          %s1013 = scalar_lea.sflag [#allocation7], %s1012
          %s1014 = sand.u32 %s102, 1
          %s1015 = smul.addr %s1014, 4
          %s1016 = scalar_lea.vmem [#allocation6], %s1015
          %s1018 = ssub.s32 64, 64
          %1019 = vsyncadd %s1013, %s1018
          %s1020 = smul.addr %s61, 64
          %s1021 = scalar_lea.hbm %s1, %s1020
          %s1023 = sshll.u32 %s1016, 4
          %s1024 = int_to_ptr.vmem [resolvable:$true] %s1023
          %1026 = dma.hbm_to_vmem [thread:$0]  %s1021, 64, %s1024, %s1013
        $region120: #{model_forward.3} parent=111 // pred_fallthru
          _
        // Predicated region
        $region121: #{model_forward.3} parent=111 // pred_check
          %p1027 = pneg %p138
        $region122: #{model_forward.3} parent=111 // pred_check_branch
          %1029 = sbr.rel (%p1027) target = $region124
        $region123: #{model_forward.3} parent=111 // pred_region
          %s1030 = sand.u32 %s54, 1
          %s1031 = scalar_lea.sflag [#allocation7], %s1030
          %s1032 = sand.u32 %s128, 1
          %s1033 = smul.addr %s1032, 4
          %s1034 = scalar_lea.vmem [#allocation8], %s1033
          %s1036 = ssub.s32 64, 64
          %1037 = vsyncadd %s1031, %s1036
          %s1038 = smul.addr %s61, 64
          %s1039 = scalar_lea.hbm %s2, %s1038
          %s1041 = sshll.u32 %s1034, 4
          %s1042 = int_to_ptr.vmem [resolvable:$true] %s1041
          %1044 = dma.hbm_to_vmem [thread:$0]  %s1039, 64, %s1042, %s1031
        $region124: #{model_forward.3} parent=111 // pred_fallthru
          _
      $region112: #{model_forward.3} parent=5 // pred_fallthru
        _
      %p1045 = scmp.le.s32.totalorder 1, %s54
      %p1046 = scmp.lt.s32.totalorder %s54, 3
      %p1047 = pnand %p1045, %p1046
      %p1048 = pneg %p1047
      // Predicated region
      $region125: #{model_forward.3} parent=5 // pred_check
        _
      $region126: #{model_forward.3} parent=5 // pred_check_branch
        %1050 = sbr.rel (%p1047) target = $region128
      $region127: #{model_forward.3} parent=5 // pred_region
        %s1051 = ssub.s32 %s54, 1
        %s1052 = sand.u32 %s79, 1
        %s1053 = scalar_lea.sflag [#allocation4], %s1052
        %s1054 = sand.u32 %s79, 1
        %s1055 = smul.addr %s1054, 8
        %s1056 = scalar_lea.vmem [#allocation3], %s1055
        // Predicated region
        $region129: #{model_forward.3} parent=127 // pred_check
          %p1057 = pneg %p92
        $region130: #{model_forward.3} parent=127 // pred_check_branch
          %1059 = sbr.rel (%p1057) target = $region132
        $region131: #{model_forward.3} parent=127 // pred_region
          %1060 = dma.done %s1053, 128
        $region132: #{model_forward.3} parent=127 // pred_fallthru
          _
        %s1061 = sand.u32 %s59, 1
        %s1062 = scalar_lea.sflag [#allocation7], %s1061
        %s1063 = sand.u32 %s105, 1
        %s1064 = smul.addr %s1063, 4
        %s1065 = scalar_lea.vmem [#allocation6], %s1064
        // Predicated region
        $region133: #{model_forward.3} parent=127 // pred_check
          %p1066 = pneg %p118
        $region134: #{model_forward.3} parent=127 // pred_check_branch
          %1068 = sbr.rel (%p1066) target = $region136
        $region135: #{model_forward.3} parent=127 // pred_region
          %1069 = dma.done %s1062, 64
        $region136: #{model_forward.3} parent=127 // pred_fallthru
          _
        %s1070 = sand.u32 %s59, 1
        %s1071 = scalar_lea.sflag [#allocation7], %s1070
        %s1072 = sand.u32 %s131, 1
        %s1073 = smul.addr %s1072, 4
        %s1074 = scalar_lea.vmem [#allocation8], %s1073
        // Predicated region
        $region137: #{model_forward.3} parent=127 // pred_check
          %p1075 = pneg %p144
        $region138: #{model_forward.3} parent=127 // pred_check_branch
          %1077 = sbr.rel (%p1075) target = $region140
        $region139: #{model_forward.3} parent=127 // pred_region
          %1078 = dma.done %s1071, 64
        $region140: #{model_forward.3} parent=127 // pred_fallthru
          _
        // Predicated region
        $region141: #{model_forward.3} parent=127 // pred_check
          %p1079 = pneg %p165
        $region142: #{model_forward.3} parent=127 // pred_check_branch
          %1081 = sbr.rel (%p1079) target = $region144
        $region143: #{model_forward.3} parent=127 // pred_region
          %1082 = dma.done [#allocation10], 256
        $region144: #{model_forward.3} parent=127 // pred_fallthru
          _
        // Predicated region
        $region145: #{model_forward.3} parent=127 // pred_check
          %p1083 = pneg %p186
        $region146: #{model_forward.3} parent=127 // pred_check_branch
          %1085 = sbr.rel (%p1083) target = $region148
        $region147: #{model_forward.3} parent=127 // pred_region
          %1086 = dma.done [#allocation10], 16
        $region148: #{model_forward.3} parent=127 // pred_fallthru
          _
        // Predicated region
        $region149: #{model_forward.3} parent=127 // pred_check
          %p1087 = pneg %p207
        $region150: #{model_forward.3} parent=127 // pred_check_branch
          %1089 = sbr.rel (%p1087) target = $region152
        $region151: #{model_forward.3} parent=127 // pred_region
          %1090 = dma.done [#allocation13], 256
        $region152: #{model_forward.3} parent=127 // pred_fallthru
          _
        // Predicated region
        $region153: #{model_forward.3} parent=127 // pred_check
          %p1091 = pneg %p228
        $region154: #{model_forward.3} parent=127 // pred_check_branch
          %1093 = sbr.rel (%p1091) target = $region156
        $region155: #{model_forward.3} parent=127 // pred_region
          %1094 = dma.done [#allocation13], 16
        $region156: #{model_forward.3} parent=127 // pred_fallthru
          _
        // Predicated region
        $region157: #{model_forward.3} parent=127 // pred_check
          %p1095 = pneg %p249
        $region158: #{model_forward.3} parent=127 // pred_check_branch
          %1097 = sbr.rel (%p1095) target = $region160
        $region159: #{model_forward.3} parent=127 // pred_region
          %1098 = dma.done [#allocation16], 256
        $region160: #{model_forward.3} parent=127 // pred_fallthru
          _
        // Predicated region
        $region161: #{model_forward.3} parent=127 // pred_check
          %p1099 = pneg %p270
        $region162: #{model_forward.3} parent=127 // pred_check_branch
          %1101 = sbr.rel (%p1099) target = $region164
        $region163: #{model_forward.3} parent=127 // pred_region
          %1102 = dma.done [#allocation16], 16
        $region164: #{model_forward.3} parent=127 // pred_fallthru
          _
        // Predicated region
        $region165: #{model_forward.3} parent=127 // pred_check
          %p1103 = pneg %p291
        $region166: #{model_forward.3} parent=127 // pred_check_branch
          %1105 = sbr.rel (%p1103) target = $region168
        $region167: #{model_forward.3} parent=127 // pred_region
          %1106 = dma.done [#allocation19], 256
        $region168: #{model_forward.3} parent=127 // pred_fallthru
          _
        // Predicated region
        $region169: #{model_forward.3} parent=127 // pred_check
          %p1107 = pneg %p312
        $region170: #{model_forward.3} parent=127 // pred_check_branch
          %1109 = sbr.rel (%p1107) target = $region172
        $region171: #{model_forward.3} parent=127 // pred_region
          %1110 = dma.done [#allocation19], 16
        $region172: #{model_forward.3} parent=127 // pred_fallthru
          _
        // Predicated region
        $region173: #{model_forward.3} parent=127 // pred_check
          %p1111 = pneg %p333
        $region174: #{model_forward.3} parent=127 // pred_check_branch
          %1113 = sbr.rel (%p1111) target = $region176
        $region175: #{model_forward.3} parent=127 // pred_region
          %1114 = dma.done [#allocation22], 16
        $region176: #{model_forward.3} parent=127 // pred_fallthru
          _
        // Predicated region
        $region177: #{model_forward.3} parent=127 // pred_check
          %p1115 = pneg %p354
        $region178: #{model_forward.3} parent=127 // pred_check_branch
          %1117 = sbr.rel (%p1115) target = $region180
        $region179: #{model_forward.3} parent=127 // pred_region
          %1118 = dma.done [#allocation22], 16
        $region180: #{model_forward.3} parent=127 // pred_fallthru
          _
        // Predicated region
        $region181: #{model_forward.3} parent=127 // pred_check
          %p1119 = pneg %p375
        $region182: #{model_forward.3} parent=127 // pred_check_branch
          %1121 = sbr.rel (%p1119) target = $region184
        $region183: #{model_forward.3} parent=127 // pred_region
          %1122 = dma.done [#allocation25], 256
        $region184: #{model_forward.3} parent=127 // pred_fallthru
          _
        // Predicated region
        $region185: #{model_forward.3} parent=127 // pred_check
          %p1123 = pneg %p396
        $region186: #{model_forward.3} parent=127 // pred_check_branch
          %1125 = sbr.rel (%p1123) target = $region188
        $region187: #{model_forward.3} parent=127 // pred_region
          %1126 = dma.done [#allocation25], 16
        $region188: #{model_forward.3} parent=127 // pred_fallthru
          _
        // Predicated region
        $region189: #{model_forward.3} parent=127 // pred_check
          %p1127 = pneg %p417
        $region190: #{model_forward.3} parent=127 // pred_check_branch
          %1129 = sbr.rel (%p1127) target = $region192
        $region191: #{model_forward.3} parent=127 // pred_region
          %1130 = dma.done [#allocation28], 256
        $region192: #{model_forward.3} parent=127 // pred_fallthru
          _
        // Predicated region
        $region193: #{model_forward.3} parent=127 // pred_check
          %p1131 = pneg %p438
        $region194: #{model_forward.3} parent=127 // pred_check_branch
          %1133 = sbr.rel (%p1131) target = $region196
        $region195: #{model_forward.3} parent=127 // pred_region
          %1134 = dma.done [#allocation28], 16
        $region196: #{model_forward.3} parent=127 // pred_fallthru
          _
        // Predicated region
        $region197: #{model_forward.3} parent=127 // pred_check
          %p1135 = pneg %p459
        $region198: #{model_forward.3} parent=127 // pred_check_branch
          %1137 = sbr.rel (%p1135) target = $region200
        $region199: #{model_forward.3} parent=127 // pred_region
          %1138 = dma.done [#allocation31], 16
        $region200: #{model_forward.3} parent=127 // pred_fallthru
          _
        // Predicated region
        $region201: #{model_forward.3} parent=127 // pred_check
          %p1139 = pneg %p480
        $region202: #{model_forward.3} parent=127 // pred_check_branch
          %1141 = sbr.rel (%p1139) target = $region204
        $region203: #{model_forward.3} parent=127 // pred_region
          %1142 = dma.done [#allocation31], 16
        $region204: #{model_forward.3} parent=127 // pred_fallthru
          _
        // Predicated region
        $region205: #{model_forward.3} parent=127 // pred_check
          %p1143 = pneg %p501
        $region206: #{model_forward.3} parent=127 // pred_check_branch
          %1145 = sbr.rel (%p1143) target = $region208
        $region207: #{model_forward.3} parent=127 // pred_region
          %1146 = dma.done [#allocation34], 256
        $region208: #{model_forward.3} parent=127 // pred_fallthru
          _
        // Predicated region
        $region209: #{model_forward.3} parent=127 // pred_check
          %p1147 = pneg %p522
        $region210: #{model_forward.3} parent=127 // pred_check_branch
          %1149 = sbr.rel (%p1147) target = $region212
        $region211: #{model_forward.3} parent=127 // pred_region
          %1150 = dma.done [#allocation34], 16
        $region212: #{model_forward.3} parent=127 // pred_fallthru
          _
        // Predicated region
        $region213: #{model_forward.3} parent=127 // pred_check
          %p1151 = pneg %p543
        $region214: #{model_forward.3} parent=127 // pred_check_branch
          %1153 = sbr.rel (%p1151) target = $region216
        $region215: #{model_forward.3} parent=127 // pred_region
          %1154 = dma.done [#allocation37], 512
        $region216: #{model_forward.3} parent=127 // pred_fallthru
          _
        // Predicated region
        $region217: #{model_forward.3} parent=127 // pred_check
          %p1155 = pneg %p564
        $region218: #{model_forward.3} parent=127 // pred_check_branch
          %1157 = sbr.rel (%p1155) target = $region220
        $region219: #{model_forward.3} parent=127 // pred_region
          %1158 = dma.done [#allocation37], 16
        $region220: #{model_forward.3} parent=127 // pred_fallthru
          _
        // Predicated region
        $region221: #{model_forward.3} parent=127 // pred_check
          %p1159 = pneg %p585
        $region222: #{model_forward.3} parent=127 // pred_check_branch
          %1161 = sbr.rel (%p1159) target = $region224
        $region223: #{model_forward.3} parent=127 // pred_region
          %1162 = dma.done [#allocation40], 16
        $region224: #{model_forward.3} parent=127 // pred_fallthru
          _
        // Predicated region
        $region225: #{model_forward.3} parent=127 // pred_check
          %p1163 = pneg %p606
        $region226: #{model_forward.3} parent=127 // pred_check_branch
          %1165 = sbr.rel (%p1163) target = $region228
        $region227: #{model_forward.3} parent=127 // pred_region
          %1166 = dma.done [#allocation40], 16
        $region228: #{model_forward.3} parent=127 // pred_fallthru
          _
        // Predicated region
        $region229: #{model_forward.3} parent=127 // pred_check
          %p1167 = pneg %p632
        $region230: #{model_forward.3} parent=127 // pred_check_branch
          %1169 = sbr.rel (%p1167) target = $region232
        $region231: #{model_forward.3} parent=127 // pred_region
          %1170 = dma.done [#allocation43], 256
        $region232: #{model_forward.3} parent=127 // pred_fallthru
          _
        // Predicated region
        $region233: #{model_forward.3} parent=127 // pred_check
          %p1171 = pneg %p658
        $region234: #{model_forward.3} parent=127 // pred_check_branch
          %1173 = sbr.rel (%p1171) target = $region236
        $region235: #{model_forward.3} parent=127 // pred_region
          %1174 = dma.done [#allocation43], 16
        $region236: #{model_forward.3} parent=127 // pred_fallthru
          _
        %s1175 = sand.u32 %s79, 1
        %s1176 = scalar_lea.sflag [#allocation4], %s1175
        %s1177 = sand.u32 %s79, 1
        %s1178 = smul.addr %s1177, 8
        %s1179 = scalar_lea.vmem [#allocation3], %s1178
        %p1180 = pneg %p92
        %p1181 = pneg %p89
        %s1182 = sand.u32 %s59, 1
        %s1183 = scalar_lea.sflag [#allocation7], %s1182
        %s1184 = sand.u32 %s105, 1
        %s1185 = smul.addr %s1184, 4
        %s1186 = scalar_lea.vmem [#allocation6], %s1185
        %p1187 = pneg %p118
        %p1188 = pneg %p115
        %s1189 = sand.u32 %s59, 1
        %s1190 = scalar_lea.sflag [#allocation7], %s1189
        %s1191 = sand.u32 %s131, 1
        %s1192 = smul.addr %s1191, 4
        %s1193 = scalar_lea.vmem [#allocation8], %s1192
        %p1194 = pneg %p144
        %p1195 = pneg %p141
        %p1196 = pneg %p165
        %p1197 = pneg %p162
        %p1198 = pneg %p186
        %p1199 = pneg %p183
        %p1200 = pneg %p207
        %p1201 = pneg %p204
        %p1202 = pneg %p228
        %p1203 = pneg %p225
        %p1204 = pneg %p249
        %p1205 = pneg %p246
        %p1206 = pneg %p270
        %p1207 = pneg %p267
        %p1208 = pneg %p291
        %p1209 = pneg %p288
        %p1210 = pneg %p312
        %p1211 = pneg %p309
        %p1212 = pneg %p333
        %p1213 = pneg %p330
        %p1214 = pneg %p354
        %p1215 = pneg %p351
        %p1216 = pneg %p375
        %p1217 = pneg %p372
        %p1218 = pneg %p396
        %p1219 = pneg %p393
        %p1220 = pneg %p417
        %p1221 = pneg %p414
        %p1222 = pneg %p438
        %p1223 = pneg %p435
        %p1224 = pneg %p459
        %p1225 = pneg %p456
        %p1226 = pneg %p480
        %p1227 = pneg %p477
        %p1228 = pneg %p501
        %p1229 = pneg %p498
        %p1230 = pneg %p522
        %p1231 = pneg %p519
        %p1232 = pneg %p543
        %p1233 = pneg %p540
        %p1234 = pneg %p564
        %p1235 = pneg %p561
        %p1236 = pneg %p585
        %p1237 = pneg %p582
        %p1238 = pneg %p606
        %p1239 = pneg %p603
        %p1240 = pneg %p632
        %p1241 = pneg %p629
        %p1242 = pneg %p658
        %p1243 = pneg %p655
        %p1244 = pneg %p686
        %p1245 = pneg %p683
        %s1246 = sand.u32 %s673, 1
        %s1247 = scalar_lea.sflag [#allocation5], %s1246
        %s1248 = sand.u32 %s673, 1
        %s1249 = smul.addr %s1248, 8
        %s1250 = scalar_lea.vmem [#allocation45], %s1249
        %p1252 = scmp.eq.s32.totalorder %s64, 0
        // Predicated region
        $region237: #{model_forward.3} parent=127 // pred_check
          %p1253 = pneg %p1252
        $region238: #{model_forward.3} parent=127 // pred_check_branch
          %1255 = sbr.rel (%p1253) target = $region240
        $region239: #{model_forward.3} parent=127 // pred_region
          %v1256 = vld [vmem:[%s1056] sm:$0xff]
          %v1257 = vpack.c.bf16 %v1256, %v1256
          %v1258 = vld [vmem:[#allocation9] sm:$0xf]
          %v1259 = vld [vmem:[#allocation9 + $0x4] sm:$0xf]
          %v1260 = vld [vmem:[#allocation9 + $0x8] sm:$0xf]
          %v1261 = vld [vmem:[#allocation9 + $0xc] sm:$0xf]
          %v1262 = vld [vmem:[#allocation11] sm:$0x1]
          %v1264 = vlaneseq
          %v1265 = vshrl.u32 %v1264, 7
          %v1266 = vsub.s32 0, %v1265
          %v1267 = vrot.slane %v1262, %v1266
          %v1273 = vunpack.c.l.b16 %v1258
          %v1274 = vunpack.c.l.b16 %v1259
          %v1275 = vunpack.c.l.b16 %v1260
          %v1276 = vunpack.c.l.b16 %v1261
          %v1277 = vpack.c.b16 %v1274, %v1273
          %v1278 = vpack.c.b16 %v1276, %v1275
          %vm1281 = vcmask 261120
          %v1283 = vsel %vm1281, %v1257, 0
          %1285 = vmatprep.subr.bf16.mxu0 0
          %1286 = vmatpush1.bf16.msra.mxu0 %v1277
          %1287 = vmatprep.subr.bf16.mxu0 0
          %1288 = vmatpush1.bf16.msra.mxu0 %v1278
          %1289 = vmatprep.subr.bf16.mxu0 0
          %1290 = vmatpush1.bf16.msra.mxu0 0
          %1291 = vmatprep.subr.bf16.mxu0 0
          %1292 = vmatpush1.bf16.msra.mxu0 0
          %1293 = vmatprep.subr.bf16.mxu0 0
          %1294 = vmatpush1.bf16.msra.mxu0 0
          %1295 = vmatprep.subr.bf16.mxu0 0
          %1296 = vmatpush1.bf16.msra.mxu0 0
          %1297 = vmatprep.subr.bf16.mxu0 0
          %1298 = vmatpush1.bf16.msra.mxu0 0
          %1299 = vmatprep.subr.bf16.mxu0 0
          %1300 = vmatpush1.bf16.msra.mxu0 0
          %1301 = vmatprep.subr.bf16.mxu0 0
          %1302 = vmatpush1.bf16.msra.mxu0 0
          %1303 = vmatprep.subr.bf16.mxu0 0
          %1304 = vmatpush1.bf16.msra.mxu0 0
          %1305 = vmatprep.subr.bf16.mxu0 0
          %1306 = vmatpush1.bf16.msra.mxu0 0
          %1307 = vmatprep.subr.bf16.mxu0 0
          %1308 = vmatpush1.bf16.msra.mxu0 0
          %1309 = vmatprep.subr.bf16.mxu0 0
          %1310 = vmatpush1.bf16.msra.mxu0 0
          %1311 = vmatprep.subr.bf16.mxu0 0
          %1312 = vmatpush1.bf16.msra.mxu0 0
          %1313 = vmatprep.subr.bf16.mxu0 0
          %1314 = vmatpush1.bf16.msra.mxu0 0
          %1315 = vmatprep.subr.bf16.mxu0 0
          %1316 = vmatpush1.bf16.msra.mxu0 0
          %1317 = vmatprep.mubr.bf16.mxu0 0
          %1318 = vmatmul.mubr.bf16.gmra.mrb[0].mxu0 %v1283
          %v1319 = vpop.f32.mrb[0].mxu0
          %v1320 = vadd.f32 %v1267, %v1319
          %v1321 = vpop.f32.mrb[0].mxu0
          %v1322 = vpop.f32.mrb[0].mxu0
          %v1323 = vpop.f32.mrb[0].mxu0
          %1324 = vdwg.mxu0
          %v1325 = vld [vmem:[#allocation12] sm:$0xf]
          %v1326 = vld [vmem:[#allocation12 + $0x4] sm:$0xf]
          %v1327 = vld [vmem:[#allocation12 + $0x8] sm:$0xf]
          %v1328 = vld [vmem:[#allocation12 + $0xc] sm:$0xf]
          %v1329 = vld [vmem:[#allocation14] sm:$0x1]
          %v1331 = vlaneseq
          %v1332 = vshrl.u32 %v1331, 7
          %v1333 = vsub.s32 0, %v1332
          %v1334 = vrot.slane %v1329, %v1333
          %v1340 = vunpack.c.l.b16 %v1325
          %v1341 = vunpack.c.l.b16 %v1326
          %v1342 = vunpack.c.l.b16 %v1327
          %v1343 = vunpack.c.l.b16 %v1328
          %v1344 = vpack.c.b16 %v1341, %v1340
          %v1345 = vpack.c.b16 %v1343, %v1342
          %1348 = vmatprep.subr.bf16.mxu0 0
          %1349 = vmatpush1.bf16.msra.mxu0 %v1344
          %1350 = vmatprep.subr.bf16.mxu0 0
          %1351 = vmatpush1.bf16.msra.mxu0 %v1345
          %1352 = vmatprep.subr.bf16.mxu0 0
          %1353 = vmatpush1.bf16.msra.mxu0 0
          %1354 = vmatprep.subr.bf16.mxu0 0
          %1355 = vmatpush1.bf16.msra.mxu0 0
          %1356 = vmatprep.subr.bf16.mxu0 0
          %1357 = vmatpush1.bf16.msra.mxu0 0
          %1358 = vmatprep.subr.bf16.mxu0 0
          %1359 = vmatpush1.bf16.msra.mxu0 0
          %1360 = vmatprep.subr.bf16.mxu0 0
          %1361 = vmatpush1.bf16.msra.mxu0 0
          %1362 = vmatprep.subr.bf16.mxu0 0
          %1363 = vmatpush1.bf16.msra.mxu0 0
          %1364 = vmatprep.subr.bf16.mxu0 0
          %1365 = vmatpush1.bf16.msra.mxu0 0
          %1366 = vmatprep.subr.bf16.mxu0 0
          %1367 = vmatpush1.bf16.msra.mxu0 0
          %1368 = vmatprep.subr.bf16.mxu0 0
          %1369 = vmatpush1.bf16.msra.mxu0 0
          %1370 = vmatprep.subr.bf16.mxu0 0
          %1371 = vmatpush1.bf16.msra.mxu0 0
          %1372 = vmatprep.subr.bf16.mxu0 0
          %1373 = vmatpush1.bf16.msra.mxu0 0
          %1374 = vmatprep.subr.bf16.mxu0 0
          %1375 = vmatpush1.bf16.msra.mxu0 0
          %1376 = vmatprep.subr.bf16.mxu0 0
          %1377 = vmatpush1.bf16.msra.mxu0 0
          %1378 = vmatprep.subr.bf16.mxu0 0
          %1379 = vmatpush1.bf16.msra.mxu0 0
          %1380 = vmatprep.mubr.bf16.mxu0 0
          %1381 = vmatmul.mubr.bf16.gmra.mrb[0].mxu0 %v1283
          %v1382 = vpop.f32.mrb[0].mxu0
          %v1383 = vadd.f32 %v1334, %v1382
          %v1384 = vpop.f32.mrb[0].mxu0
          %v1385 = vpop.f32.mrb[0].mxu0
          %v1386 = vpop.f32.mrb[0].mxu0
          %1387 = vdwg.mxu0
          %v1388 = vld [vmem:[#allocation15] sm:$0xf]
          %v1389 = vld [vmem:[#allocation15 + $0x4] sm:$0xf]
          %v1390 = vld [vmem:[#allocation15 + $0x8] sm:$0xf]
          %v1391 = vld [vmem:[#allocation15 + $0xc] sm:$0xf]
          %v1392 = vld [vmem:[#allocation17] sm:$0x1]
          %v1394 = vlaneseq
          %v1395 = vshrl.u32 %v1394, 7
          %v1396 = vsub.s32 0, %v1395
          %v1397 = vrot.slane %v1392, %v1396
          %v1403 = vunpack.c.l.b16 %v1388
          %v1404 = vunpack.c.l.b16 %v1389
          %v1405 = vunpack.c.l.b16 %v1390
          %v1406 = vunpack.c.l.b16 %v1391
          %v1407 = vpack.c.b16 %v1404, %v1403
          %v1408 = vpack.c.b16 %v1406, %v1405
          %1411 = vmatprep.subr.bf16.mxu0 0
          %1412 = vmatpush1.bf16.msra.mxu0 %v1407
          %1413 = vmatprep.subr.bf16.mxu0 0
          %1414 = vmatpush1.bf16.msra.mxu0 %v1408
          %1415 = vmatprep.subr.bf16.mxu0 0
          %1416 = vmatpush1.bf16.msra.mxu0 0
          %1417 = vmatprep.subr.bf16.mxu0 0
          %1418 = vmatpush1.bf16.msra.mxu0 0
          %1419 = vmatprep.subr.bf16.mxu0 0
          %1420 = vmatpush1.bf16.msra.mxu0 0
          %1421 = vmatprep.subr.bf16.mxu0 0
          %1422 = vmatpush1.bf16.msra.mxu0 0
          %1423 = vmatprep.subr.bf16.mxu0 0
          %1424 = vmatpush1.bf16.msra.mxu0 0
          %1425 = vmatprep.subr.bf16.mxu0 0
          %1426 = vmatpush1.bf16.msra.mxu0 0
          %1427 = vmatprep.subr.bf16.mxu0 0
          %1428 = vmatpush1.bf16.msra.mxu0 0
          %1429 = vmatprep.subr.bf16.mxu0 0
          %1430 = vmatpush1.bf16.msra.mxu0 0
          %1431 = vmatprep.subr.bf16.mxu0 0
          %1432 = vmatpush1.bf16.msra.mxu0 0
          %1433 = vmatprep.subr.bf16.mxu0 0
          %1434 = vmatpush1.bf16.msra.mxu0 0
          %1435 = vmatprep.subr.bf16.mxu0 0
          %1436 = vmatpush1.bf16.msra.mxu0 0
          %1437 = vmatprep.subr.bf16.mxu0 0
          %1438 = vmatpush1.bf16.msra.mxu0 0
          %1439 = vmatprep.subr.bf16.mxu0 0
          %1440 = vmatpush1.bf16.msra.mxu0 0
          %1441 = vmatprep.subr.bf16.mxu0 0
          %1442 = vmatpush1.bf16.msra.mxu0 0
          %1443 = vmatprep.mubr.bf16.mxu0 0
          %1444 = vmatmul.mubr.bf16.gmra.mrb[0].mxu0 %v1283
          %v1445 = vpop.f32.mrb[0].mxu0
          %v1446 = vadd.f32 %v1397, %v1445
          %v1447 = vpop.f32.mrb[0].mxu0
          %v1448 = vpop.f32.mrb[0].mxu0
          %v1449 = vpop.f32.mrb[0].mxu0
          %1450 = vdwg.mxu0
          %v1451 = vmul.f32 %v1320, 0.17677669
          %v1452 = vpack.c.bf16 %v1451, %v1451
          %v1453 = vpack.c.bf16 %v1383, %v1383
          %v1455 = vsel %vm1281, %v1452, 0
          %v1458 = vsel %vm1281, %v1453, 0
          %1460 = vmatprep.subr.bf16.mxu0 0
          %1461 = vmatpush1.bf16.xpose.msra.mxu0 %v1458
          %1462 = vmatprep.subr.bf16.mxu0 0
          %1463 = vmatpush1.bf16.xpose.msra.mxu0 0
          %1464 = vmatprep.subr.bf16.mxu0 0
          %1465 = vmatpush1.bf16.xpose.msra.mxu0 0
          %1466 = vmatprep.subr.bf16.mxu0 0
          %1467 = vmatpush1.bf16.xpose.msra.mxu0 0
          %1468 = vmatprep.subr.bf16.mxu0 0
          %1469 = vmatpush1.bf16.xpose.msra.mxu0 0
          %1470 = vmatprep.subr.bf16.mxu0 0
          %1471 = vmatpush1.bf16.xpose.msra.mxu0 0
          %1472 = vmatprep.subr.bf16.mxu0 0
          %1473 = vmatpush1.bf16.xpose.msra.mxu0 0
          %1474 = vmatprep.subr.bf16.mxu0 0
          %1475 = vmatpush1.bf16.xpose.msra.mxu0 0
          %1476 = vmatprep.subr.bf16.mxu0 0
          %1477 = vmatpush1.bf16.xpose.msra.mxu0 0
          %1478 = vmatprep.subr.bf16.mxu0 0
          %1479 = vmatpush1.bf16.xpose.msra.mxu0 0
          %1480 = vmatprep.subr.bf16.mxu0 0
          %1481 = vmatpush1.bf16.xpose.msra.mxu0 0
          %1482 = vmatprep.subr.bf16.mxu0 0
          %1483 = vmatpush1.bf16.xpose.msra.mxu0 0
          %1484 = vmatprep.subr.bf16.mxu0 0
          %1485 = vmatpush1.bf16.xpose.msra.mxu0 0
          %1486 = vmatprep.subr.bf16.mxu0 0
          %1487 = vmatpush1.bf16.xpose.msra.mxu0 0
          %1488 = vmatprep.subr.bf16.mxu0 0
          %1489 = vmatpush1.bf16.xpose.msra.mxu0 0
          %1490 = vmatprep.subr.bf16.mxu0 0
          %1491 = vmatpush1.bf16.xpose.msra.mxu0 0
          %1492 = vmatprep.mubr.bf16.mxu0 0
          %1493 = vmatmul.mubr.bf16.gmra.mrb[0].mxu0 %v1455
          %v1494 = vpop.f32.mrb[0].mxu0
          %v1495 = vadd.f32 0.0, %v1494
          %v1496 = vpop.f32.mrb[0].mxu0
          %v1497 = vpop.f32.mrb[0].mxu0
          %v1498 = vpop.f32.mrb[0].mxu0
          %1499 = vdwg.mxu0
          %vm1500 = vcmask 64512
          %v1501 = vsel %vm1500, %v1495, -inf
          %1502 = vmax.xlane.f32.xlu0 %v1501
          %v1503 = vpop.xlane.xlu0 %1502
          %v1504 = vsub.f32 %v1495, %v1503
          %v1505 = vmul.f32 %v1504, 1.442695
          %v1506 = vpow.pop %v1505
          %v1507 = vsel %vm1500, %v1506, 0.0
          %1508 = vadd.xlane.f32.xlu0 %v1507
          %v1509 = vpop.xlane.xlu0 %1508
          %v1510 = vrcp.pop %v1509
          %v1511 = vmul.f32 %v1506, %v1510
          %v1512 = vpack.c.bf16 %v1511, %v1511
          %v1513 = vpack.c.bf16 %v1446, %v1446
          %v1515 = vsel %vm1500, %v1512, 0
          %vm1517 = vcmask 1043456
          %v1519 = vsel %vm1517, %v1513, 0
          %1521 = vmatprep.subr.bf16.mxu0 0
          %1522 = vmatpush1.bf16.msra.mxu0 %v1519
          %1523 = vmatprep.subr.bf16.mxu0 0
          %1524 = vmatpush1.bf16.msra.mxu0 0
          %1525 = vmatprep.subr.bf16.mxu0 0
          %1526 = vmatpush1.bf16.msra.mxu0 0
          %1527 = vmatprep.subr.bf16.mxu0 0
          %1528 = vmatpush1.bf16.msra.mxu0 0
          %1529 = vmatprep.subr.bf16.mxu0 0
          %1530 = vmatpush1.bf16.msra.mxu0 0
          %1531 = vmatprep.subr.bf16.mxu0 0
          %1532 = vmatpush1.bf16.msra.mxu0 0
          %1533 = vmatprep.subr.bf16.mxu0 0
          %1534 = vmatpush1.bf16.msra.mxu0 0
          %1535 = vmatprep.subr.bf16.mxu0 0
          %1536 = vmatpush1.bf16.msra.mxu0 0
          %1537 = vmatprep.subr.bf16.mxu0 0
          %1538 = vmatpush1.bf16.msra.mxu0 0
          %1539 = vmatprep.subr.bf16.mxu0 0
          %1540 = vmatpush1.bf16.msra.mxu0 0
          %1541 = vmatprep.subr.bf16.mxu0 0
          %1542 = vmatpush1.bf16.msra.mxu0 0
          %1543 = vmatprep.subr.bf16.mxu0 0
          %1544 = vmatpush1.bf16.msra.mxu0 0
          %1545 = vmatprep.subr.bf16.mxu0 0
          %1546 = vmatpush1.bf16.msra.mxu0 0
          %1547 = vmatprep.subr.bf16.mxu0 0
          %1548 = vmatpush1.bf16.msra.mxu0 0
          %1549 = vmatprep.subr.bf16.mxu0 0
          %1550 = vmatpush1.bf16.msra.mxu0 0
          %1551 = vmatprep.subr.bf16.mxu0 0
          %1552 = vmatpush1.bf16.msra.mxu0 0
          %1553 = vmatprep.mubr.bf16.mxu0 0
          %1554 = vmatmul.mubr.bf16.gmra.mrb[0].mxu0 %v1515
          %v1555 = vpop.f32.mrb[0].mxu0
          %v1556 = vadd.f32 0.0, %v1555
          %v1557 = vpop.f32.mrb[0].mxu0
          %v1558 = vpop.f32.mrb[0].mxu0
          %v1559 = vpop.f32.mrb[0].mxu0
          %1560 = vdwg.mxu0
          %v1561 = vpack.c.bf16 %v1556, %v1556
          %v1562 = vld [vmem:[#allocation18] sm:$0xf]
          %v1563 = vld [vmem:[#allocation18 + $0x4] sm:$0xf]
          %v1564 = vld [vmem:[#allocation18 + $0x8] sm:$0xf]
          %v1565 = vld [vmem:[#allocation18 + $0xc] sm:$0xf]
          %v1566 = vld [vmem:[#allocation20] sm:$0x1]
          %v1568 = vlaneseq
          %v1569 = vshrl.u32 %v1568, 7
          %v1570 = vsub.s32 0, %v1569
          %v1571 = vrot.slane %v1566, %v1570
          %v1577 = vunpack.c.l.b16 %v1562
          %v1578 = vunpack.c.l.b16 %v1563
          %v1579 = vunpack.c.l.b16 %v1564
          %v1580 = vunpack.c.l.b16 %v1565
          %v1581 = vpack.c.b16 %v1578, %v1577
          %v1582 = vpack.c.b16 %v1580, %v1579
          %v1586 = vsel %vm1281, %v1561, 0
          %1588 = vmatprep.subr.bf16.mxu0 0
          %1589 = vmatpush1.bf16.msra.mxu0 %v1581
          %1590 = vmatprep.subr.bf16.mxu0 0
          %1591 = vmatpush1.bf16.msra.mxu0 %v1582
          %1592 = vmatprep.subr.bf16.mxu0 0
          %1593 = vmatpush1.bf16.msra.mxu0 0
          %1594 = vmatprep.subr.bf16.mxu0 0
          %1595 = vmatpush1.bf16.msra.mxu0 0
          %1596 = vmatprep.subr.bf16.mxu0 0
          %1597 = vmatpush1.bf16.msra.mxu0 0
          %1598 = vmatprep.subr.bf16.mxu0 0
          %1599 = vmatpush1.bf16.msra.mxu0 0
          %1600 = vmatprep.subr.bf16.mxu0 0
          %1601 = vmatpush1.bf16.msra.mxu0 0
          %1602 = vmatprep.subr.bf16.mxu0 0
          %1603 = vmatpush1.bf16.msra.mxu0 0
          %1604 = vmatprep.subr.bf16.mxu0 0
          %1605 = vmatpush1.bf16.msra.mxu0 0
          %1606 = vmatprep.subr.bf16.mxu0 0
          %1607 = vmatpush1.bf16.msra.mxu0 0
          %1608 = vmatprep.subr.bf16.mxu0 0
          %1609 = vmatpush1.bf16.msra.mxu0 0
          %1610 = vmatprep.subr.bf16.mxu0 0
          %1611 = vmatpush1.bf16.msra.mxu0 0
          %1612 = vmatprep.subr.bf16.mxu0 0
          %1613 = vmatpush1.bf16.msra.mxu0 0
          %1614 = vmatprep.subr.bf16.mxu0 0
          %1615 = vmatpush1.bf16.msra.mxu0 0
          %1616 = vmatprep.subr.bf16.mxu0 0
          %1617 = vmatpush1.bf16.msra.mxu0 0
          %1618 = vmatprep.subr.bf16.mxu0 0
          %1619 = vmatpush1.bf16.msra.mxu0 0
          %1620 = vmatprep.mubr.bf16.mxu0 0
          %1621 = vmatmul.mubr.bf16.gmra.mrb[0].mxu0 %v1586
          %v1622 = vpop.f32.mrb[0].mxu0
          %v1623 = vadd.f32 %v1571, %v1622
          %v1624 = vpop.f32.mrb[0].mxu0
          %v1625 = vpop.f32.mrb[0].mxu0
          %v1626 = vpop.f32.mrb[0].mxu0
          %1627 = vdwg.mxu0
          %v1628 = vadd.f32 %v1256, %v1623
          %v1629 = vld [vmem:[#allocation21] sm:$0x1]
          %v1630 = vld [vmem:[#allocation23] sm:$0x1]
          %v1631 = vsel %vm1281, %v1628, 0.0
          %1632 = vadd.xlane.f32.xlu0 %v1631
          %v1633 = vpop.xlane.xlu0 %1632
          %v1634 = vrcp.pop 32.0
          %v1635 = vmul.f32 %v1633, %v1634
          %v1636 = vsub.f32 %v1628, %v1635
          %v1637 = vmul.f32 %v1636, %v1636
          %v1638 = vsel %vm1281, %v1637, 0.0
          %1639 = vadd.xlane.f32.xlu0 %v1638
          %v1640 = vpop.xlane.xlu0 %1639
          %v1641 = vmul.f32 %v1640, %v1634
          %v1642 = vadd.f32 %v1641, 1e-05
          %v1643 = vrsqrt.pop %v1642
          %v1644 = vmul.f32 %v1636, %v1643
          %v1646 = vlaneseq
          %v1647 = vshrl.u32 %v1646, 7
          %v1648 = vsub.s32 0, %v1647
          %v1649 = vrot.slane %v1629, %v1648
          %v1651 = vmul.f32 %v1644, %v1649
          %v1653 = vlaneseq
          %v1654 = vshrl.u32 %v1653, 7
          %v1655 = vsub.s32 0, %v1654
          %v1656 = vrot.slane %v1630, %v1655
          %v1658 = vadd.f32 %v1651, %v1656
          %v1659 = vpack.c.bf16 %v1658, %v1658
          %v1660 = vld [vmem:[#allocation24] sm:$0xf]
          %v1661 = vld [vmem:[#allocation24 + $0x4] sm:$0xf]
          %v1662 = vld [vmem:[#allocation24 + $0x8] sm:$0xf]
          %v1663 = vld [vmem:[#allocation24 + $0xc] sm:$0xf]
          %v1664 = vld [vmem:[#allocation26] sm:$0x1]
          %v1666 = vlaneseq
          %v1667 = vshrl.u32 %v1666, 7
          %v1668 = vsub.s32 0, %v1667
          %v1669 = vrot.slane %v1664, %v1668
          %v1675 = vunpack.c.l.b16 %v1660
          %v1676 = vunpack.c.l.b16 %v1661
          %v1677 = vunpack.c.l.b16 %v1662
          %v1678 = vunpack.c.l.b16 %v1663
          %v1679 = vpack.c.b16 %v1676, %v1675
          %v1680 = vpack.c.b16 %v1678, %v1677
          %v1684 = vsel %vm1281, %v1659, 0
          %1686 = vmatprep.subr.bf16.mxu0 0
          %1687 = vmatpush1.bf16.msra.mxu0 %v1679
          %1688 = vmatprep.subr.bf16.mxu0 0
          %1689 = vmatpush1.bf16.msra.mxu0 %v1680
          %1690 = vmatprep.subr.bf16.mxu0 0
          %1691 = vmatpush1.bf16.msra.mxu0 0
          %1692 = vmatprep.subr.bf16.mxu0 0
          %1693 = vmatpush1.bf16.msra.mxu0 0
          %1694 = vmatprep.subr.bf16.mxu0 0
          %1695 = vmatpush1.bf16.msra.mxu0 0
          %1696 = vmatprep.subr.bf16.mxu0 0
          %1697 = vmatpush1.bf16.msra.mxu0 0
          %1698 = vmatprep.subr.bf16.mxu0 0
          %1699 = vmatpush1.bf16.msra.mxu0 0
          %1700 = vmatprep.subr.bf16.mxu0 0
          %1701 = vmatpush1.bf16.msra.mxu0 0
          %1702 = vmatprep.subr.bf16.mxu0 0
          %1703 = vmatpush1.bf16.msra.mxu0 0
          %1704 = vmatprep.subr.bf16.mxu0 0
          %1705 = vmatpush1.bf16.msra.mxu0 0
          %1706 = vmatprep.subr.bf16.mxu0 0
          %1707 = vmatpush1.bf16.msra.mxu0 0
          %1708 = vmatprep.subr.bf16.mxu0 0
          %1709 = vmatpush1.bf16.msra.mxu0 0
          %1710 = vmatprep.subr.bf16.mxu0 0
          %1711 = vmatpush1.bf16.msra.mxu0 0
          %1712 = vmatprep.subr.bf16.mxu0 0
          %1713 = vmatpush1.bf16.msra.mxu0 0
          %1714 = vmatprep.subr.bf16.mxu0 0
          %1715 = vmatpush1.bf16.msra.mxu0 0
          %1716 = vmatprep.subr.bf16.mxu0 0
          %1717 = vmatpush1.bf16.msra.mxu0 0
          %1718 = vmatprep.mubr.bf16.mxu0 0
          %1719 = vmatmul.mubr.bf16.gmra.mrb[0].mxu0 %v1684
          %v1720 = vpop.f32.mrb[0].mxu0
          %v1721 = vadd.f32 %v1669, %v1720
          %v1722 = vpop.f32.mrb[0].mxu0
          %v1723 = vpop.f32.mrb[0].mxu0
          %v1724 = vpop.f32.mrb[0].mxu0
          %1725 = vdwg.mxu0
          %v1726 = vld [vmem:[%s1065] sm:$0xf]
          %v1727 = vld [vmem:[%s1074] sm:$0xf]
          %v1728 = vmul.f32 %v1721, 0.17677669
          %v1729 = vpack.c.bf16 %v1728, %v1728
          %v1731 = vsel %vm1281, %v1729, 0
          %v1734 = vsel %vm1281, %v1726, 0
          %1736 = vmatprep.subr.bf16.mxu0 0
          %1737 = vmatpush1.bf16.xpose.msra.mxu0 %v1734
          %1738 = vmatprep.subr.bf16.mxu0 0
          %1739 = vmatpush1.bf16.xpose.msra.mxu0 0
          %1740 = vmatprep.subr.bf16.mxu0 0
          %1741 = vmatpush1.bf16.xpose.msra.mxu0 0
          %1742 = vmatprep.subr.bf16.mxu0 0
          %1743 = vmatpush1.bf16.xpose.msra.mxu0 0
          %1744 = vmatprep.subr.bf16.mxu0 0
          %1745 = vmatpush1.bf16.xpose.msra.mxu0 0
          %1746 = vmatprep.subr.bf16.mxu0 0
          %1747 = vmatpush1.bf16.xpose.msra.mxu0 0
          %1748 = vmatprep.subr.bf16.mxu0 0
          %1749 = vmatpush1.bf16.xpose.msra.mxu0 0
          %1750 = vmatprep.subr.bf16.mxu0 0
          %1751 = vmatpush1.bf16.xpose.msra.mxu0 0
          %1752 = vmatprep.subr.bf16.mxu0 0
          %1753 = vmatpush1.bf16.xpose.msra.mxu0 0
          %1754 = vmatprep.subr.bf16.mxu0 0
          %1755 = vmatpush1.bf16.xpose.msra.mxu0 0
          %1756 = vmatprep.subr.bf16.mxu0 0
          %1757 = vmatpush1.bf16.xpose.msra.mxu0 0
          %1758 = vmatprep.subr.bf16.mxu0 0
          %1759 = vmatpush1.bf16.xpose.msra.mxu0 0
          %1760 = vmatprep.subr.bf16.mxu0 0
          %1761 = vmatpush1.bf16.xpose.msra.mxu0 0
          %1762 = vmatprep.subr.bf16.mxu0 0
          %1763 = vmatpush1.bf16.xpose.msra.mxu0 0
          %1764 = vmatprep.subr.bf16.mxu0 0
          %1765 = vmatpush1.bf16.xpose.msra.mxu0 0
          %1766 = vmatprep.subr.bf16.mxu0 0
          %1767 = vmatpush1.bf16.xpose.msra.mxu0 0
          %1768 = vmatprep.mubr.bf16.mxu0 0
          %1769 = vmatmul.mubr.bf16.gmra.mrb[0].mxu0 %v1731
          %v1770 = vpop.f32.mrb[0].mxu0
          %v1771 = vadd.f32 0.0, %v1770
          %v1772 = vpop.f32.mrb[0].mxu0
          %v1773 = vpop.f32.mrb[0].mxu0
          %v1774 = vpop.f32.mrb[0].mxu0
          %1775 = vdwg.mxu0
          %v1776 = vsel %vm1500, %v1771, -inf
          %1777 = vmax.xlane.f32.xlu0 %v1776
          %v1778 = vpop.xlane.xlu0 %1777
          %v1779 = vsub.f32 %v1771, %v1778
          %v1780 = vmul.f32 %v1779, 1.442695
          %v1781 = vpow.pop %v1780
          %v1782 = vsel %vm1500, %v1781, 0.0
          %1783 = vadd.xlane.f32.xlu0 %v1782
          %v1784 = vpop.xlane.xlu0 %1783
          %v1785 = vrcp.pop %v1784
          %v1786 = vmul.f32 %v1781, %v1785
          %v1787 = vpack.c.bf16 %v1786, %v1786
          %v1789 = vsel %vm1500, %v1787, 0
          %v1792 = vsel %vm1517, %v1727, 0
          %1794 = vmatprep.subr.bf16.mxu0 0
          %1795 = vmatpush1.bf16.msra.mxu0 %v1792
          %1796 = vmatprep.subr.bf16.mxu0 0
          %1797 = vmatpush1.bf16.msra.mxu0 0
          %1798 = vmatprep.subr.bf16.mxu0 0
          %1799 = vmatpush1.bf16.msra.mxu0 0
          %1800 = vmatprep.subr.bf16.mxu0 0
          %1801 = vmatpush1.bf16.msra.mxu0 0
          %1802 = vmatprep.subr.bf16.mxu0 0
          %1803 = vmatpush1.bf16.msra.mxu0 0
          %1804 = vmatprep.subr.bf16.mxu0 0
          %1805 = vmatpush1.bf16.msra.mxu0 0
          %1806 = vmatprep.subr.bf16.mxu0 0
          %1807 = vmatpush1.bf16.msra.mxu0 0
          %1808 = vmatprep.subr.bf16.mxu0 0
          %1809 = vmatpush1.bf16.msra.mxu0 0
          %1810 = vmatprep.subr.bf16.mxu0 0
          %1811 = vmatpush1.bf16.msra.mxu0 0
          %1812 = vmatprep.subr.bf16.mxu0 0
          %1813 = vmatpush1.bf16.msra.mxu0 0
          %1814 = vmatprep.subr.bf16.mxu0 0
          %1815 = vmatpush1.bf16.msra.mxu0 0
          %1816 = vmatprep.subr.bf16.mxu0 0
          %1817 = vmatpush1.bf16.msra.mxu0 0
          %1818 = vmatprep.subr.bf16.mxu0 0
          %1819 = vmatpush1.bf16.msra.mxu0 0
          %1820 = vmatprep.subr.bf16.mxu0 0
          %1821 = vmatpush1.bf16.msra.mxu0 0
          %1822 = vmatprep.subr.bf16.mxu0 0
          %1823 = vmatpush1.bf16.msra.mxu0 0
          %1824 = vmatprep.subr.bf16.mxu0 0
          %1825 = vmatpush1.bf16.msra.mxu0 0
          %1826 = vmatprep.mubr.bf16.mxu0 0
          %1827 = vmatmul.mubr.bf16.gmra.mrb[0].mxu0 %v1789
          %v1828 = vpop.f32.mrb[0].mxu0
          %v1829 = vadd.f32 0.0, %v1828
          %v1830 = vpop.f32.mrb[0].mxu0
          %v1831 = vpop.f32.mrb[0].mxu0
          %v1832 = vpop.f32.mrb[0].mxu0
          %1833 = vdwg.mxu0
          %v1834 = vpack.c.bf16 %v1829, %v1829
          %v1835 = vld [vmem:[#allocation27] sm:$0xf]
          %v1836 = vld [vmem:[#allocation27 + $0x4] sm:$0xf]
          %v1837 = vld [vmem:[#allocation27 + $0x8] sm:$0xf]
          %v1838 = vld [vmem:[#allocation27 + $0xc] sm:$0xf]
          %v1839 = vld [vmem:[#allocation29] sm:$0x1]
          %v1841 = vlaneseq
          %v1842 = vshrl.u32 %v1841, 7
          %v1843 = vsub.s32 0, %v1842
          %v1844 = vrot.slane %v1839, %v1843
          %v1850 = vunpack.c.l.b16 %v1835
          %v1851 = vunpack.c.l.b16 %v1836
          %v1852 = vunpack.c.l.b16 %v1837
          %v1853 = vunpack.c.l.b16 %v1838
          %v1854 = vpack.c.b16 %v1851, %v1850
          %v1855 = vpack.c.b16 %v1853, %v1852
          %v1859 = vsel %vm1281, %v1834, 0
          %1861 = vmatprep.subr.bf16.mxu0 0
          %1862 = vmatpush1.bf16.msra.mxu0 %v1854
          %1863 = vmatprep.subr.bf16.mxu0 0
          %1864 = vmatpush1.bf16.msra.mxu0 %v1855
          %1865 = vmatprep.subr.bf16.mxu0 0
          %1866 = vmatpush1.bf16.msra.mxu0 0
          %1867 = vmatprep.subr.bf16.mxu0 0
          %1868 = vmatpush1.bf16.msra.mxu0 0
          %1869 = vmatprep.subr.bf16.mxu0 0
          %1870 = vmatpush1.bf16.msra.mxu0 0
          %1871 = vmatprep.subr.bf16.mxu0 0
          %1872 = vmatpush1.bf16.msra.mxu0 0
          %1873 = vmatprep.subr.bf16.mxu0 0
          %1874 = vmatpush1.bf16.msra.mxu0 0
          %1875 = vmatprep.subr.bf16.mxu0 0
          %1876 = vmatpush1.bf16.msra.mxu0 0
          %1877 = vmatprep.subr.bf16.mxu0 0
          %1878 = vmatpush1.bf16.msra.mxu0 0
          %1879 = vmatprep.subr.bf16.mxu0 0
          %1880 = vmatpush1.bf16.msra.mxu0 0
          %1881 = vmatprep.subr.bf16.mxu0 0
          %1882 = vmatpush1.bf16.msra.mxu0 0
          %1883 = vmatprep.subr.bf16.mxu0 0
          %1884 = vmatpush1.bf16.msra.mxu0 0
          %1885 = vmatprep.subr.bf16.mxu0 0
          %1886 = vmatpush1.bf16.msra.mxu0 0
          %1887 = vmatprep.subr.bf16.mxu0 0
          %1888 = vmatpush1.bf16.msra.mxu0 0
          %1889 = vmatprep.subr.bf16.mxu0 0
          %1890 = vmatpush1.bf16.msra.mxu0 0
          %1891 = vmatprep.subr.bf16.mxu0 0
          %1892 = vmatpush1.bf16.msra.mxu0 0
          %1893 = vmatprep.mubr.bf16.mxu0 0
          %1894 = vmatmul.mubr.bf16.gmra.mrb[0].mxu0 %v1859
          %v1895 = vpop.f32.mrb[0].mxu0
          %v1896 = vadd.f32 %v1844, %v1895
          %v1897 = vpop.f32.mrb[0].mxu0
          %v1898 = vpop.f32.mrb[0].mxu0
          %v1899 = vpop.f32.mrb[0].mxu0
          %1900 = vdwg.mxu0
          %v1901 = vadd.f32 %v1658, %v1896
          %v1902 = vld [vmem:[#allocation30] sm:$0x1]
          %v1903 = vld [vmem:[#allocation32] sm:$0x1]
          %v1904 = vsel %vm1281, %v1901, 0.0
          %1905 = vadd.xlane.f32.xlu0 %v1904
          %v1906 = vpop.xlane.xlu0 %1905
          %v1907 = vmul.f32 %v1906, %v1634
          %v1908 = vsub.f32 %v1901, %v1907
          %v1909 = vmul.f32 %v1908, %v1908
          %v1910 = vsel %vm1281, %v1909, 0.0
          %1911 = vadd.xlane.f32.xlu0 %v1910
          %v1912 = vpop.xlane.xlu0 %1911
          %v1913 = vmul.f32 %v1912, %v1634
          %v1914 = vadd.f32 %v1913, 1e-05
          %v1915 = vrsqrt.pop %v1914
          %v1916 = vmul.f32 %v1908, %v1915
          %v1918 = vlaneseq
          %v1919 = vshrl.u32 %v1918, 7
          %v1920 = vsub.s32 0, %v1919
          %v1921 = vrot.slane %v1902, %v1920
          %v1923 = vmul.f32 %v1916, %v1921
          %v1925 = vlaneseq
          %v1926 = vshrl.u32 %v1925, 7
          %v1927 = vsub.s32 0, %v1926
          %v1928 = vrot.slane %v1903, %v1927
          %v1930 = vadd.f32 %v1923, %v1928
          %v1931 = vpack.c.bf16 %v1930, %v1930
          %v1932 = vld [vmem:[#allocation33] sm:$0xf]
          %v1933 = vld [vmem:[#allocation33 + $0x4] sm:$0xf]
          %v1934 = vld [vmem:[#allocation33 + $0x8] sm:$0xf]
          %v1935 = vld [vmem:[#allocation33 + $0xc] sm:$0xf]
          %v1936 = vld [vmem:[#allocation35] sm:$0x1]
          %v1938 = vlaneseq
          %v1939 = vshrl.u32 %v1938, 7
          %v1940 = vsub.s32 0, %v1939
          %v1941 = vrot.slane %v1936, %v1940
          %v1947 = vunpack.c.l.b16 %v1932
          %v1948 = vunpack.c.l.b16 %v1933
          %v1949 = vunpack.c.l.b16 %v1934
          %v1950 = vunpack.c.l.b16 %v1935
          %v1951 = vpack.c.b16 %v1948, %v1947
          %v1952 = vpack.c.b16 %v1950, %v1949
          %v1956 = vsel %vm1281, %v1931, 0
          %1958 = vmatprep.subr.bf16.mxu0 0
          %1959 = vmatpush1.bf16.msra.mxu0 %v1951
          %1960 = vmatprep.subr.bf16.mxu0 0
          %1961 = vmatpush1.bf16.msra.mxu0 %v1952
          %1962 = vmatprep.subr.bf16.mxu0 0
          %1963 = vmatpush1.bf16.msra.mxu0 0
          %1964 = vmatprep.subr.bf16.mxu0 0
          %1965 = vmatpush1.bf16.msra.mxu0 0
          %1966 = vmatprep.subr.bf16.mxu0 0
          %1967 = vmatpush1.bf16.msra.mxu0 0
          %1968 = vmatprep.subr.bf16.mxu0 0
          %1969 = vmatpush1.bf16.msra.mxu0 0
          %1970 = vmatprep.subr.bf16.mxu0 0
          %1971 = vmatpush1.bf16.msra.mxu0 0
          %1972 = vmatprep.subr.bf16.mxu0 0
          %1973 = vmatpush1.bf16.msra.mxu0 0
          %1974 = vmatprep.subr.bf16.mxu0 0
          %1975 = vmatpush1.bf16.msra.mxu0 0
          %1976 = vmatprep.subr.bf16.mxu0 0
          %1977 = vmatpush1.bf16.msra.mxu0 0
          %1978 = vmatprep.subr.bf16.mxu0 0
          %1979 = vmatpush1.bf16.msra.mxu0 0
          %1980 = vmatprep.subr.bf16.mxu0 0
          %1981 = vmatpush1.bf16.msra.mxu0 0
          %1982 = vmatprep.subr.bf16.mxu0 0
          %1983 = vmatpush1.bf16.msra.mxu0 0
          %1984 = vmatprep.subr.bf16.mxu0 0
          %1985 = vmatpush1.bf16.msra.mxu0 0
          %1986 = vmatprep.subr.bf16.mxu0 0
          %1987 = vmatpush1.bf16.msra.mxu0 0
          %1988 = vmatprep.subr.bf16.mxu0 0
          %1989 = vmatpush1.bf16.msra.mxu0 0
          %1990 = vmatprep.mubr.bf16.mxu0 0
          %1991 = vmatmul.mubr.bf16.gmra.mrb[0].mxu0 %v1956
          %v1992 = vpop.f32.mrb[0].mxu0
          %v1993 = vadd.f32 %v1941, %v1992
          %v1994 = vpop.f32.mrb[0].mxu0
          %v1995 = vpop.f32.mrb[0].mxu0
          %v1996 = vpop.f32.mrb[0].mxu0
          %1997 = vdwg.mxu0
          %v1998 = vmax.f32 %v1993, 0.0
          %v1999 = vpack.c.bf16 %v1998, %v1998
          %v2000 = vld [vmem:[#allocation36] sm:$0xf]
          %v2001 = vld [vmem:[#allocation36 + $0x4] sm:$0xf]
          %v2002 = vld [vmem:[#allocation36 + $0x8] sm:$0xf]
          %v2003 = vld [vmem:[#allocation36 + $0xc] sm:$0xf]
          %v2004 = vld [vmem:[#allocation36 + $0x10] sm:$0xf]
          %v2005 = vld [vmem:[#allocation36 + $0x14] sm:$0xf]
          %v2006 = vld [vmem:[#allocation36 + $0x18] sm:$0xf]
          %v2007 = vld [vmem:[#allocation36 + $0x1c] sm:$0xf]
          %v2008 = vld [vmem:[#allocation38] sm:$0x1]
          %v2010 = vlaneseq
          %v2011 = vshrl.u32 %v2010, 7
          %v2012 = vsub.s32 0, %v2011
          %v2013 = vrot.slane %v2008, %v2012
          %v2023 = vunpack.c.l.b16 %v2000
          %v2024 = vunpack.c.l.b16 %v2001
          %v2025 = vunpack.c.l.b16 %v2002
          %v2026 = vunpack.c.l.b16 %v2003
          %v2027 = vunpack.c.l.b16 %v2004
          %v2028 = vunpack.c.l.b16 %v2005
          %v2029 = vunpack.c.l.b16 %v2006
          %v2030 = vunpack.c.l.b16 %v2007
          %v2031 = vpack.c.b16 %v2024, %v2023
          %v2032 = vpack.c.b16 %v2026, %v2025
          %v2033 = vpack.c.b16 %v2028, %v2027
          %v2034 = vpack.c.b16 %v2030, %v2029
          %vm2039 = vcmask 523264
          %v2041 = vsel %vm2039, %v1999, 0
          %2043 = vmatprep.subr.bf16.mxu0 0
          %2044 = vmatpush1.bf16.msra.mxu0 %v2031
          %2045 = vmatprep.subr.bf16.mxu0 0
          %2046 = vmatpush1.bf16.msra.mxu0 %v2032
          %2047 = vmatprep.subr.bf16.mxu0 0
          %2048 = vmatpush1.bf16.msra.mxu0 %v2033
          %2049 = vmatprep.subr.bf16.mxu0 0
          %2050 = vmatpush1.bf16.msra.mxu0 %v2034
          %2051 = vmatprep.subr.bf16.mxu0 0
          %2052 = vmatpush1.bf16.msra.mxu0 0
          %2053 = vmatprep.subr.bf16.mxu0 0
          %2054 = vmatpush1.bf16.msra.mxu0 0
          %2055 = vmatprep.subr.bf16.mxu0 0
          %2056 = vmatpush1.bf16.msra.mxu0 0
          %2057 = vmatprep.subr.bf16.mxu0 0
          %2058 = vmatpush1.bf16.msra.mxu0 0
          %2059 = vmatprep.subr.bf16.mxu0 0
          %2060 = vmatpush1.bf16.msra.mxu0 0
          %2061 = vmatprep.subr.bf16.mxu0 0
          %2062 = vmatpush1.bf16.msra.mxu0 0
          %2063 = vmatprep.subr.bf16.mxu0 0
          %2064 = vmatpush1.bf16.msra.mxu0 0
          %2065 = vmatprep.subr.bf16.mxu0 0
          %2066 = vmatpush1.bf16.msra.mxu0 0
          %2067 = vmatprep.subr.bf16.mxu0 0
          %2068 = vmatpush1.bf16.msra.mxu0 0
          %2069 = vmatprep.subr.bf16.mxu0 0
          %2070 = vmatpush1.bf16.msra.mxu0 0
          %2071 = vmatprep.subr.bf16.mxu0 0
          %2072 = vmatpush1.bf16.msra.mxu0 0
          %2073 = vmatprep.subr.bf16.mxu0 0
          %2074 = vmatpush1.bf16.msra.mxu0 0
          %2075 = vmatprep.mubr.bf16.mxu0 0
          %2076 = vmatmul.mubr.bf16.gmra.mrb[0].mxu0 %v2041
          %v2077 = vpop.f32.mrb[0].mxu0
          %v2078 = vadd.f32 %v2013, %v2077
          %v2079 = vpop.f32.mrb[0].mxu0
          %v2080 = vpop.f32.mrb[0].mxu0
          %v2081 = vpop.f32.mrb[0].mxu0
          %2082 = vdwg.mxu0
          %v2083 = vadd.f32 %v1930, %v2078
          %v2084 = vld [vmem:[#allocation39] sm:$0x1]
          %v2085 = vld [vmem:[#allocation41] sm:$0x1]
          %v2086 = vsel %vm1281, %v2083, 0.0
          %2087 = vadd.xlane.f32.xlu0 %v2086
          %v2088 = vpop.xlane.xlu0 %2087
          %v2089 = vmul.f32 %v2088, %v1634
          %v2090 = vsub.f32 %v2083, %v2089
          %v2091 = vmul.f32 %v2090, %v2090
          %v2092 = vsel %vm1281, %v2091, 0.0
          %2093 = vadd.xlane.f32.xlu0 %v2092
          %v2094 = vpop.xlane.xlu0 %2093
          %v2095 = vmul.f32 %v2094, %v1634
          %v2096 = vadd.f32 %v2095, 1e-05
          %v2097 = vrsqrt.pop %v2096
          %v2098 = vmul.f32 %v2090, %v2097
          %v2100 = vlaneseq
          %v2101 = vshrl.u32 %v2100, 7
          %v2102 = vsub.s32 0, %v2101
          %v2103 = vrot.slane %v2084, %v2102
          %v2105 = vmul.f32 %v2098, %v2103
          %v2107 = vlaneseq
          %v2108 = vshrl.u32 %v2107, 7
          %v2109 = vsub.s32 0, %v2108
          %v2110 = vrot.slane %v2085, %v2109
          %v2112 = vadd.f32 %v2105, %v2110
          %2113 = vst.msk [vmem:[#allocation2] sm:$0xff] %vm1281, %v2112
        $region240: #{model_forward.3} parent=127 // pred_fallthru
          _
        %v2114 = vld [vmem:[#allocation2] sm:$0xff]
        %v2115 = vpack.c.bf16 %v2114, %v2114
        %v2116 = vld [vmem:[#allocation42] sm:$0xf]
        %v2117 = vld [vmem:[#allocation42 + $0x4] sm:$0xf]
        %v2118 = vld [vmem:[#allocation42 + $0x8] sm:$0xf]
        %v2119 = vld [vmem:[#allocation42 + $0xc] sm:$0xf]
        %v2120 = vld [vmem:[#allocation44] sm:$0x1]
        %v2122 = vlaneseq
        %v2123 = vshrl.u32 %v2122, 7
        %v2124 = vsub.s32 0, %v2123
        %v2125 = vrot.slane %v2120, %v2124
        %v2131 = vunpack.c.l.b16 %v2116
        %v2132 = vunpack.c.l.b16 %v2117
        %v2133 = vunpack.c.l.b16 %v2118
        %v2134 = vunpack.c.l.b16 %v2119
        %v2135 = vpack.c.b16 %v2132, %v2131
        %v2136 = vpack.c.b16 %v2134, %v2133
        %vm2139 = vcmask 261120
        %v2141 = vsel %vm2139, %v2115, 0
        %2143 = vmatprep.subr.bf16.mxu0 0
        %2144 = vmatpush1.bf16.msra.mxu0 %v2135
        %2145 = vmatprep.subr.bf16.mxu0 0
        %2146 = vmatpush1.bf16.msra.mxu0 %v2136
        %2147 = vmatprep.subr.bf16.mxu0 0
        %2148 = vmatpush1.bf16.msra.mxu0 0
        %2149 = vmatprep.subr.bf16.mxu0 0
        %2150 = vmatpush1.bf16.msra.mxu0 0
        %2151 = vmatprep.subr.bf16.mxu0 0
        %2152 = vmatpush1.bf16.msra.mxu0 0
        %2153 = vmatprep.subr.bf16.mxu0 0
        %2154 = vmatpush1.bf16.msra.mxu0 0
        %2155 = vmatprep.subr.bf16.mxu0 0
        %2156 = vmatpush1.bf16.msra.mxu0 0
        %2157 = vmatprep.subr.bf16.mxu0 0
        %2158 = vmatpush1.bf16.msra.mxu0 0
        %2159 = vmatprep.subr.bf16.mxu0 0
        %2160 = vmatpush1.bf16.msra.mxu0 0
        %2161 = vmatprep.subr.bf16.mxu0 0
        %2162 = vmatpush1.bf16.msra.mxu0 0
        %2163 = vmatprep.subr.bf16.mxu0 0
        %2164 = vmatpush1.bf16.msra.mxu0 0
        %2165 = vmatprep.subr.bf16.mxu0 0
        %2166 = vmatpush1.bf16.msra.mxu0 0
        %2167 = vmatprep.subr.bf16.mxu0 0
        %2168 = vmatpush1.bf16.msra.mxu0 0
        %2169 = vmatprep.subr.bf16.mxu0 0
        %2170 = vmatpush1.bf16.msra.mxu0 0
        %2171 = vmatprep.subr.bf16.mxu0 0
        %2172 = vmatpush1.bf16.msra.mxu0 0
        %2173 = vmatprep.subr.bf16.mxu0 0
        %2174 = vmatpush1.bf16.msra.mxu0 0
        %2175 = vmatprep.mubr.bf16.mxu0 0
        %2176 = vmatmul.mubr.bf16.gmra.mrb[0].mxu0 %v2141
        %v2177 = vpop.f32.mrb[0].mxu0
        %v2178 = vadd.f32 %v2125, %v2177
        %v2179 = vpop.f32.mrb[0].mxu0
        %v2180 = vpop.f32.mrb[0].mxu0
        %v2181 = vpop.f32.mrb[0].mxu0
        %2182 = vdwg.mxu0
        %2183 = vst [vmem:[%s1250] sm:$0xff] %v2178
        %s2184 = sand.u32 %s673, 1
        %s2185 = scalar_lea.sflag [#allocation5], %s2184
        %s2186 = sand.u32 %s673, 1
        %s2187 = smul.addr %s2186, 8
        %s2188 = scalar_lea.vmem [#allocation45], %s2187
        // Predicated region
        $region241: #{model_forward.3} parent=127 // pred_check
          %p2189 = pneg %p683
        $region242: #{model_forward.3} parent=127 // pred_check_branch
          %2191 = sbr.rel (%p2189) target = $region244
        $region243: #{model_forward.3} parent=127 // pred_region
          %s2193 = ssub.s32 128, 128
          %2194 = vsyncadd %s2185, %s2193
          %s2195 = sadd.s32 %s64, %s63
          %s2196 = smul.addr %s2195, 128
          %s2197 = scalar_lea.hbm %s27, %s2196
          %s2199 = sshll.u32 %s2188, 4
          %s2200 = int_to_ptr.vmem [resolvable:$true] %s2199
          %2202 = dma.vmem_to_hbm [thread:$0]  %s2200, 128, %s2197, %s2185
        $region244: #{model_forward.3} parent=127 // pred_fallthru
          _
      $region128: #{model_forward.3} parent=5 // pred_fallthru
        _
      %p2203 = scmp.le.s32.totalorder 2, %s54
      // Predicated region
      $region245: #{model_forward.3} parent=5 // pred_check
        %p2204 = pneg %p2203
      $region246: #{model_forward.3} parent=5 // pred_check_branch
        %2206 = sbr.rel (%p2204) target = $region248
      $region247: #{model_forward.3} parent=5 // pred_region
        %s2207 = ssub.s32 %s54, 2
        // Predicated region
        $region249: #{model_forward.3} parent=247 // pred_check
          %p2208 = pneg %p689
        $region250: #{model_forward.3} parent=247 // pred_check_branch
          %2210 = sbr.rel (%p2208) target = $region252
        $region251: #{model_forward.3} parent=247 // pred_region
          %s2211 = sand.u32 %s674, 1
          %s2212 = scalar_lea.sflag [#allocation5], %s2211
          %s2213 = sand.u32 %s674, 1
          %s2214 = smul.addr %s2213, 8
          %s2215 = scalar_lea.vmem [#allocation45], %s2214
          %2216 = dma.done %s2212, 128
        $region252: #{model_forward.3} parent=247 // pred_fallthru
          _
      $region248: #{model_forward.3} parent=5 // pred_fallthru
        _
    $region6: #{model_forward.3} parent=1 // loop_footer
      %s58 = sadd.s32 1, %s54
    $region7: #{model_forward.3} parent=1 // loop_footer_branch
      %53 = sbr.rel target = $region3
    $region8: #{model_forward.3} parent=1 // loop_exit
      _
    %2217 = vsyncpa [#allocation4], 1
    %s2218 = scalar_lea.sflag [#allocation4], 1
    %2219 = vsyncpa %s2218, 1
    %2220 = vsyncpa [#allocation7], 1
    %s2221 = scalar_lea.sflag [#allocation7], 1
    %2222 = vsyncpa %s2221, 1
    %2223 = vsyncpa [#allocation10], 1
    %2224 = vsyncpa [#allocation13], 1
    %2225 = vsyncpa [#allocation16], 1
    %2226 = vsyncpa [#allocation19], 1
    %2227 = vsyncpa [#allocation22], 1
    %2228 = vsyncpa [#allocation25], 1
    %2229 = vsyncpa [#allocation28], 1
    %2230 = vsyncpa [#allocation31], 1
    %2231 = vsyncpa [#allocation34], 1
    %2232 = vsyncpa [#allocation37], 1
    %2233 = vsyncpa [#allocation40], 1
    %2234 = vsyncpa [#allocation43], 1
    %2235 = vsyncpa [#allocation5], 1
    %s2236 = scalar_lea.sflag [#allocation5], 1
    %2237 = vsyncpa %s2236, 1

// kernel: model_forward.2
$region0: #{model_forward.2}
  #allocation0 [shape = 'u32[]', space=smem, size = 0x4, offset = 0x4, fixed_abs, tag = 'smem constant byte address 0x4 - core index']
  #allocation1 [shape = 'u32[144,128]{1,0:T(1,128)}', space=vmem, size = 0x12000, scoped, tag = 'internal scratch']
  %s0 = inlined_call_operand.hbm [shape: f32[2,8,16], index: 0, kind: input, shape index: {}]
  %s1 = inlined_call_operand.hbm [shape: f32[8,32], index: 1, kind: input, shape index: {}]
  %s2 = inlined_call_operand.hbm [shape: bf16[16,32], index: 2, kind: input, shape index: {}]
  %s3 = inlined_call_operand.hbm [shape: f32[1,32], index: 3, kind: input, shape index: {}, may-alias: {3,5,7,9,11,13,17,19,21,23}]
  %s4 = inlined_call_operand.hbm [shape: bf16[32,32], index: 4, kind: input, shape index: {}]
  %s5 = inlined_call_operand.hbm [shape: f32[1,32], index: 5, kind: input, shape index: {}, may-alias: {3,5,7,9,11,13,17,19,21,23}]
  %s6 = inlined_call_operand.hbm [shape: bf16[32,32], index: 6, kind: input, shape index: {}]
  %s7 = inlined_call_operand.hbm [shape: f32[1,32], index: 7, kind: input, shape index: {}, may-alias: {3,5,7,9,11,13,17,19,21,23}]
  %s8 = inlined_call_operand.hbm [shape: bf16[32,32], index: 8, kind: input, shape index: {}]
  %s9 = inlined_call_operand.hbm [shape: f32[1,32], index: 9, kind: input, shape index: {}, may-alias: {3,5,7,9,11,13,17,19,21,23}]
  %s10 = inlined_call_operand.hbm [shape: bf16[32,32], index: 10, kind: input, shape index: {}]
  %s11 = inlined_call_operand.hbm [shape: f32[1,32], index: 11, kind: input, shape index: {}, may-alias: {3,5,7,9,11,13,17,19,21,23}]
  %s12 = inlined_call_operand.hbm [shape: f32[1,32], index: 12, kind: input, shape index: {}, may-alias: {12,18}]
  %s13 = inlined_call_operand.hbm [shape: f32[1,32], index: 13, kind: input, shape index: {}, may-alias: {3,5,7,9,11,13,17,19,21,23}]
  %s14 = inlined_call_operand.hbm [shape: bf16[32,64], index: 14, kind: input, shape index: {}]
  %s15 = inlined_call_operand.hbm [shape: f32[1,64], index: 15, kind: input, shape index: {}]
  %s16 = inlined_call_operand.hbm [shape: bf16[64,32], index: 16, kind: input, shape index: {}]
  %s17 = inlined_call_operand.hbm [shape: f32[1,32], index: 17, kind: input, shape index: {}, may-alias: {3,5,7,9,11,13,17,19,21,23}]
  %s18 = inlined_call_operand.hbm [shape: f32[1,32], index: 18, kind: input, shape index: {}, may-alias: {12,18}]
  %s19 = inlined_call_operand.hbm [shape: f32[1,32], index: 19, kind: input, shape index: {}, may-alias: {3,5,7,9,11,13,17,19,21,23}]
  %s20 = inlined_call_operand.hbm [shape: bf16[32,32], index: 20, kind: input, shape index: {}]
  %s21 = inlined_call_operand.hbm [shape: f32[1,32], index: 21, kind: input, shape index: {}, may-alias: {3,5,7,9,11,13,17,19,21,23}]
  %s22 = inlined_call_operand.hbm [shape: bf16[32,32], index: 22, kind: input, shape index: {}]
  %s23 = inlined_call_operand.hbm [shape: f32[1,32], index: 23, kind: input, shape index: {}, may-alias: {3,5,7,9,11,13,17,19,21,23}]
  %s24 = inlined_call_operand.hbm [shape: bf16[2,8,32], index: 24, kind: output, shape index: {0}]
  %s25 = inlined_call_operand.hbm [shape: bf16[2,8,32], index: 25, kind: output, shape index: {1}]
  %26 = xla_tuple %s24, %s25
  %s27 = sld [smem:[#allocation0]]
  $region233: #{model_forward.2} parent=0
    _
  %s29 = ssub.s32 1, %s27
  %s30 = scalar_select 0, %s29, %s27
  $region1: #{model_forward.2} parent=0
    #allocation2 [shape = 'u8[8192]{0}', space=vmem, size = 0x2000, scoped, tag = 'input window, operand 0']
    #allocation3 [shape = 's32[2]{0}', space=sflag, size = 0x8, scoped, tag = 'scoped memory for model_forward.2']
    #allocation4 [shape = 's32[2]{0}', space=sflag, size = 0x8, scoped, tag = 'scoped memory for model_forward.2']
    #allocation5 [shape = 'u8[4096]{0}', space=vmem, size = 0x1000, scoped, tag = 'input window, operand 1, single buffered']
    #allocation6 [shape = 's32[1]{0}', space=sflag, size = 0x4, scoped, tag = 'scoped memory for model_forward.2']
    #allocation7 [shape = 'u8[4096]{0}', space=vmem, size = 0x1000, scoped, tag = 'input window, operand 2, single buffered']
    #allocation8 [shape = 'u8[512]{0}', space=vmem, size = 0x400, scoped, tag = 'input window, operand 3, single buffered']
    #allocation9 [shape = 's32[1]{0}', space=sflag, size = 0x4, scoped, tag = 'scoped memory for model_forward.2']
    #allocation10 [shape = 'u8[8192]{0}', space=vmem, size = 0x2000, scoped, tag = 'input window, operand 4, single buffered']
    #allocation11 [shape = 'u8[512]{0}', space=vmem, size = 0x400, scoped, tag = 'input window, operand 5, single buffered']
    #allocation12 [shape = 's32[1]{0}', space=sflag, size = 0x4, scoped, tag = 'scoped memory for model_forward.2']
    #allocation13 [shape = 'u8[8192]{0}', space=vmem, size = 0x2000, scoped, tag = 'input window, operand 6, single buffered']
    #allocation14 [shape = 'u8[512]{0}', space=vmem, size = 0x400, scoped, tag = 'input window, operand 7, single buffered']
    #allocation15 [shape = 's32[1]{0}', space=sflag, size = 0x4, scoped, tag = 'scoped memory for model_forward.2']
    #allocation16 [shape = 'u8[8192]{0}', space=vmem, size = 0x2000, scoped, tag = 'input window, operand 8, single buffered']
    #allocation17 [shape = 'u8[512]{0}', space=vmem, size = 0x400, scoped, tag = 'input window, operand 9, single buffered']
    #allocation18 [shape = 's32[1]{0}', space=sflag, size = 0x4, scoped, tag = 'scoped memory for model_forward.2']
    #allocation19 [shape = 'u8[8192]{0}', space=vmem, size = 0x2000, scoped, tag = 'input window, operand 10, single buffered']
    #allocation20 [shape = 'u8[512]{0}', space=vmem, size = 0x400, scoped, tag = 'input window, operand 11, single buffered']
    #allocation21 [shape = 's32[1]{0}', space=sflag, size = 0x4, scoped, tag = 'scoped memory for model_forward.2']
    #allocation22 [shape = 'u8[512]{0}', space=vmem, size = 0x400, scoped, tag = 'input window, operand 12, single buffered']
    #allocation23 [shape = 'u8[512]{0}', space=vmem, size = 0x400, scoped, tag = 'input window, operand 13, single buffered']
    #allocation24 [shape = 's32[1]{0}', space=sflag, size = 0x4, scoped, tag = 'scoped memory for model_forward.2']
    #allocation25 [shape = 'u8[8192]{0}', space=vmem, size = 0x2000, scoped, tag = 'input window, operand 14, single buffered']
    #allocation26 [shape = 'u8[512]{0}', space=vmem, size = 0x400, scoped, tag = 'input window, operand 15, single buffered']
    #allocation27 [shape = 's32[1]{0}', space=sflag, size = 0x4, scoped, tag = 'scoped memory for model_forward.2']
    #allocation28 [shape = 'u8[16384]{0}', space=vmem, size = 0x4000, scoped, tag = 'input window, operand 16, single buffered']
    #allocation29 [shape = 'u8[512]{0}', space=vmem, size = 0x400, scoped, tag = 'input window, operand 17, single buffered']
    #allocation30 [shape = 's32[1]{0}', space=sflag, size = 0x4, scoped, tag = 'scoped memory for model_forward.2']
    #allocation31 [shape = 'u8[512]{0}', space=vmem, size = 0x400, scoped, tag = 'input window, operand 18, single buffered']
    #allocation32 [shape = 'u8[512]{0}', space=vmem, size = 0x400, scoped, tag = 'input window, operand 19, single buffered']
    #allocation33 [shape = 's32[1]{0}', space=sflag, size = 0x4, scoped, tag = 'scoped memory for model_forward.2']
    #allocation34 [shape = 'u8[8192]{0}', space=vmem, size = 0x2000, scoped, tag = 'input window, operand 20, single buffered']
    #allocation35 [shape = 'u8[512]{0}', space=vmem, size = 0x400, scoped, tag = 'input window, operand 21, single buffered']
    #allocation36 [shape = 's32[1]{0}', space=sflag, size = 0x4, scoped, tag = 'scoped memory for model_forward.2']
    #allocation37 [shape = 'u8[8192]{0}', space=vmem, size = 0x2000, scoped, tag = 'input window, operand 22, single buffered']
    #allocation38 [shape = 'u8[512]{0}', space=vmem, size = 0x400, scoped, tag = 'input window, operand 23, single buffered']
    #allocation39 [shape = 's32[1]{0}', space=sflag, size = 0x4, scoped, tag = 'scoped memory for model_forward.2']
    #allocation40 [shape = 'u8[4096]{0}', space=vmem, size = 0x1000, scoped, tag = 'output window, operand 0']
    #allocation41 [shape = 'u8[4096]{0}', space=vmem, size = 0x1000, scoped, tag = 'output window, operand 1']
    #allocation42 [shape = 's32[2]{0}', space=sflag, size = 0x8, scoped, tag = 'scoped memory for model_forward.2']
    %31 = vsyncpa [#allocation3], 0
    %s32 = scalar_lea.sflag [#allocation3], 1
    %33 = vsyncpa %s32, 0
    %34 = vsyncpa [#allocation6], 0
    %35 = vsyncpa [#allocation9], 0
    %36 = vsyncpa [#allocation12], 0
    %37 = vsyncpa [#allocation15], 0
    %38 = vsyncpa [#allocation18], 0
    %39 = vsyncpa [#allocation21], 0
    %40 = vsyncpa [#allocation24], 0
    %41 = vsyncpa [#allocation27], 0
    %42 = vsyncpa [#allocation30], 0
    %43 = vsyncpa [#allocation33], 0
    %44 = vsyncpa [#allocation36], 0
    %45 = vsyncpa [#allocation39], 0
    %46 = vsyncpa [#allocation4], 0
    %s47 = scalar_lea.sflag [#allocation4], 1
    %48 = vsyncpa %s47, 0
    %49 = vsyncpa [#allocation42], 0
    %s50 = scalar_lea.sflag [#allocation42], 1
    %51 = vsyncpa %s50, 0
    loop: start=0, step=1, limit=4
    $region2: #{model_forward.2} parent=1 // loop_pre_header
      _
    $region3: #{model_forward.2} parent=1 // loop_header
      %s53 = sphi 0, %s57
      %p54 = scmp.ge.s32.totalorder %s53, 4
      %s63 = sphi 0, %s65
      %s66 = sphi 0, %s63
      %s67 = sphi 0, %s66
      %s83 = sphi 0, %s67
      %s87 = sphi 0, %s87
      %s89 = sphi 0, %s87
      %s90 = sphi 0, %s89
      %s104 = sphi 0, %s90
      %s108 = sphi 0, %s108
      %s110 = sphi 0, %s108
      %s111 = sphi 0, %s110
      %s125 = sphi 0, %s111
      %s129 = sphi 0, %s129
      %s131 = sphi 0, %s129
      %s132 = sphi 0, %s131
      %s146 = sphi 0, %s132
      %s150 = sphi 0, %s150
      %s152 = sphi 0, %s150
      %s153 = sphi 0, %s152
      %s167 = sphi 0, %s153
      %s171 = sphi 0, %s171
      %s173 = sphi 0, %s171
      %s174 = sphi 0, %s173
      %s188 = sphi 0, %s174
      %s192 = sphi 0, %s192
      %s194 = sphi 0, %s192
      %s195 = sphi 0, %s194
      %s209 = sphi 0, %s195
      %s213 = sphi 0, %s213
      %s215 = sphi 0, %s213
      %s216 = sphi 0, %s215
      %s230 = sphi 0, %s216
      %s234 = sphi 0, %s234
      %s236 = sphi 0, %s234
      %s237 = sphi 0, %s236
      %s251 = sphi 0, %s237
      %s255 = sphi 0, %s255
      %s257 = sphi 0, %s255
      %s258 = sphi 0, %s257
      %s272 = sphi 0, %s258
      %s276 = sphi 0, %s276
      %s278 = sphi 0, %s276
      %s279 = sphi 0, %s278
      %s293 = sphi 0, %s279
      %s297 = sphi 0, %s297
      %s299 = sphi 0, %s297
      %s300 = sphi 0, %s299
      %s314 = sphi 0, %s300
      %s318 = sphi 0, %s318
      %s320 = sphi 0, %s318
      %s321 = sphi 0, %s320
      %s335 = sphi 0, %s321
      %s339 = sphi 0, %s339
      %s341 = sphi 0, %s339
      %s342 = sphi 0, %s341
      %s356 = sphi 0, %s342
      %s360 = sphi 0, %s360
      %s362 = sphi 0, %s360
      %s363 = sphi 0, %s362
      %s377 = sphi 0, %s363
      %s381 = sphi 0, %s381
      %s383 = sphi 0, %s381
      %s384 = sphi 0, %s383
      %s398 = sphi 0, %s384
      %s402 = sphi 0, %s402
      %s404 = sphi 0, %s402
      %s405 = sphi 0, %s404
      %s419 = sphi 0, %s405
      %s423 = sphi 0, %s423
      %s425 = sphi 0, %s423
      %s426 = sphi 0, %s425
      %s440 = sphi 0, %s426
      %s444 = sphi 0, %s444
      %s446 = sphi 0, %s444
      %s447 = sphi 0, %s446
      %s461 = sphi 0, %s447
      %s465 = sphi 0, %s465
      %s467 = sphi 0, %s465
      %s468 = sphi 0, %s467
      %s482 = sphi 0, %s468
      %s486 = sphi 0, %s486
      %s488 = sphi 0, %s486
      %s489 = sphi 0, %s488
      %s503 = sphi 0, %s489
      %s507 = sphi 0, %s507
      %s509 = sphi 0, %s507
      %s510 = sphi 0, %s509
      %s524 = sphi 0, %s510
      %s528 = sphi 0, %s528
      %s530 = sphi 0, %s528
      %s531 = sphi 0, %s530
      %s545 = sphi 0, %s531
      %s549 = sphi 0, %s549
      %s551 = sphi 0, %s549
      %s552 = sphi 0, %s551
      %s566 = sphi 0, %s552
      %s572 = sphi 0, %s574
      %s575 = sphi 0, %s572
      %s576 = sphi 0, %s575
      %s592 = sphi 0, %s576
      %s598 = sphi 0, %s600
      %s601 = sphi 0, %s598
      %s602 = sphi 0, %s601
      %s618 = sphi 0, %s602
    $region4: #{model_forward.2} parent=1 // loop_header_branch
      %56 = sbr.rel (%p54) target = $region8
    $region5: #{model_forward.2} parent=1 // loop_body
      %s58 = ssub.s32 %s53, 1
      %s59 = ssub.s32 %s53, 2
      %s60 = sadd.s32 %s53, 1
      %s61 = ssub.s32 %s53, %s60
      %p62 = scmp.eq.s32.totalorder %s61, 0
      %s64 = sadd.s32 %s63, 1
      %s65 = scalar_select %p62, %s63, %s64
      %p68 = pneg %p62
      %p69 = scmp.eq.s32.totalorder %s53, 1
      %p70 = por %p68, %p69
      %p71 = scmp.ne.s32.totalorder %s63, %s66
      %p72 = scmp.eq.s32.totalorder %s53, 0
      %p73 = por %p71, %p72
      %p74 = scmp.ne.s32.totalorder %s63, %s66
      %p75 = scmp.eq.s32.totalorder %s58, 1
      %p76 = por %p74, %p75
      %p77 = scmp.ne.s32.totalorder %s66, %s67
      %p78 = scmp.eq.s32.totalorder %s58, 0
      %p79 = por %p77, %p78
      %p80 = scmp.ne.s32.totalorder %s66, %s67
      %p81 = scmp.eq.s32.totalorder %s59, 1
      %p82 = por %p80, %p81
      %p84 = scmp.ne.s32.totalorder %s67, %s83
      %p85 = scmp.eq.s32.totalorder %s59, 0
      %p86 = por %p84, %p85
      %s88 = sadd.s32 %s87, 1
      %p91 = scmp.eq.s32.totalorder %s53, 1
      %p92 = scmp.ne.s32.totalorder %s87, %s89
      %p93 = scmp.eq.s32.totalorder %s53, 0
      %p94 = por %p92, %p93
      %p95 = scmp.ne.s32.totalorder %s87, %s89
      %p96 = scmp.eq.s32.totalorder %s58, 1
      %p97 = por %p95, %p96
      %p98 = scmp.ne.s32.totalorder %s89, %s90
      %p99 = scmp.eq.s32.totalorder %s58, 0
      %p100 = por %p98, %p99
      %p101 = scmp.ne.s32.totalorder %s89, %s90
      %p102 = scmp.eq.s32.totalorder %s59, 1
      %p103 = por %p101, %p102
      %p105 = scmp.ne.s32.totalorder %s90, %s104
      %p106 = scmp.eq.s32.totalorder %s59, 0
      %p107 = por %p105, %p106
      %s109 = sadd.s32 %s108, 1
      %p112 = scmp.eq.s32.totalorder %s53, 1
      %p113 = scmp.ne.s32.totalorder %s108, %s110
      %p114 = scmp.eq.s32.totalorder %s53, 0
      %p115 = por %p113, %p114
      %p116 = scmp.ne.s32.totalorder %s108, %s110
      %p117 = scmp.eq.s32.totalorder %s58, 1
      %p118 = por %p116, %p117
      %p119 = scmp.ne.s32.totalorder %s110, %s111
      %p120 = scmp.eq.s32.totalorder %s58, 0
      %p121 = por %p119, %p120
      %p122 = scmp.ne.s32.totalorder %s110, %s111
      %p123 = scmp.eq.s32.totalorder %s59, 1
      %p124 = por %p122, %p123
      %p126 = scmp.ne.s32.totalorder %s111, %s125
      %p127 = scmp.eq.s32.totalorder %s59, 0
      %p128 = por %p126, %p127
      %s130 = sadd.s32 %s129, 1
      %p133 = scmp.eq.s32.totalorder %s53, 1
      %p134 = scmp.ne.s32.totalorder %s129, %s131
      %p135 = scmp.eq.s32.totalorder %s53, 0
      %p136 = por %p134, %p135
      %p137 = scmp.ne.s32.totalorder %s129, %s131
      %p138 = scmp.eq.s32.totalorder %s58, 1
      %p139 = por %p137, %p138
      %p140 = scmp.ne.s32.totalorder %s131, %s132
      %p141 = scmp.eq.s32.totalorder %s58, 0
      %p142 = por %p140, %p141
      %p143 = scmp.ne.s32.totalorder %s131, %s132
      %p144 = scmp.eq.s32.totalorder %s59, 1
      %p145 = por %p143, %p144
      %p147 = scmp.ne.s32.totalorder %s132, %s146
      %p148 = scmp.eq.s32.totalorder %s59, 0
      %p149 = por %p147, %p148
      %s151 = sadd.s32 %s150, 1
      %p154 = scmp.eq.s32.totalorder %s53, 1
      %p155 = scmp.ne.s32.totalorder %s150, %s152
      %p156 = scmp.eq.s32.totalorder %s53, 0
      %p157 = por %p155, %p156
      %p158 = scmp.ne.s32.totalorder %s150, %s152
      %p159 = scmp.eq.s32.totalorder %s58, 1
      %p160 = por %p158, %p159
      %p161 = scmp.ne.s32.totalorder %s152, %s153
      %p162 = scmp.eq.s32.totalorder %s58, 0
      %p163 = por %p161, %p162
      %p164 = scmp.ne.s32.totalorder %s152, %s153
      %p165 = scmp.eq.s32.totalorder %s59, 1
      %p166 = por %p164, %p165
      %p168 = scmp.ne.s32.totalorder %s153, %s167
      %p169 = scmp.eq.s32.totalorder %s59, 0
      %p170 = por %p168, %p169
      %s172 = sadd.s32 %s171, 1
      %p175 = scmp.eq.s32.totalorder %s53, 1
      %p176 = scmp.ne.s32.totalorder %s171, %s173
      %p177 = scmp.eq.s32.totalorder %s53, 0
      %p178 = por %p176, %p177
      %p179 = scmp.ne.s32.totalorder %s171, %s173
      %p180 = scmp.eq.s32.totalorder %s58, 1
      %p181 = por %p179, %p180
      %p182 = scmp.ne.s32.totalorder %s173, %s174
      %p183 = scmp.eq.s32.totalorder %s58, 0
      %p184 = por %p182, %p183
      %p185 = scmp.ne.s32.totalorder %s173, %s174
      %p186 = scmp.eq.s32.totalorder %s59, 1
      %p187 = por %p185, %p186
      %p189 = scmp.ne.s32.totalorder %s174, %s188
      %p190 = scmp.eq.s32.totalorder %s59, 0
      %p191 = por %p189, %p190
      %s193 = sadd.s32 %s192, 1
      %p196 = scmp.eq.s32.totalorder %s53, 1
      %p197 = scmp.ne.s32.totalorder %s192, %s194
      %p198 = scmp.eq.s32.totalorder %s53, 0
      %p199 = por %p197, %p198
      %p200 = scmp.ne.s32.totalorder %s192, %s194
      %p201 = scmp.eq.s32.totalorder %s58, 1
      %p202 = por %p200, %p201
      %p203 = scmp.ne.s32.totalorder %s194, %s195
      %p204 = scmp.eq.s32.totalorder %s58, 0
      %p205 = por %p203, %p204
      %p206 = scmp.ne.s32.totalorder %s194, %s195
      %p207 = scmp.eq.s32.totalorder %s59, 1
      %p208 = por %p206, %p207
      %p210 = scmp.ne.s32.totalorder %s195, %s209
      %p211 = scmp.eq.s32.totalorder %s59, 0
      %p212 = por %p210, %p211
      %s214 = sadd.s32 %s213, 1
      %p217 = scmp.eq.s32.totalorder %s53, 1
      %p218 = scmp.ne.s32.totalorder %s213, %s215
      %p219 = scmp.eq.s32.totalorder %s53, 0
      %p220 = por %p218, %p219
      %p221 = scmp.ne.s32.totalorder %s213, %s215
      %p222 = scmp.eq.s32.totalorder %s58, 1
      %p223 = por %p221, %p222
      %p224 = scmp.ne.s32.totalorder %s215, %s216
      %p225 = scmp.eq.s32.totalorder %s58, 0
      %p226 = por %p224, %p225
      %p227 = scmp.ne.s32.totalorder %s215, %s216
      %p228 = scmp.eq.s32.totalorder %s59, 1
      %p229 = por %p227, %p228
      %p231 = scmp.ne.s32.totalorder %s216, %s230
      %p232 = scmp.eq.s32.totalorder %s59, 0
      %p233 = por %p231, %p232
      %s235 = sadd.s32 %s234, 1
      %p238 = scmp.eq.s32.totalorder %s53, 1
      %p239 = scmp.ne.s32.totalorder %s234, %s236
      %p240 = scmp.eq.s32.totalorder %s53, 0
      %p241 = por %p239, %p240
      %p242 = scmp.ne.s32.totalorder %s234, %s236
      %p243 = scmp.eq.s32.totalorder %s58, 1
      %p244 = por %p242, %p243
      %p245 = scmp.ne.s32.totalorder %s236, %s237
      %p246 = scmp.eq.s32.totalorder %s58, 0
      %p247 = por %p245, %p246
      %p248 = scmp.ne.s32.totalorder %s236, %s237
      %p249 = scmp.eq.s32.totalorder %s59, 1
      %p250 = por %p248, %p249
      %p252 = scmp.ne.s32.totalorder %s237, %s251
      %p253 = scmp.eq.s32.totalorder %s59, 0
      %p254 = por %p252, %p253
      %s256 = sadd.s32 %s255, 1
      %p259 = scmp.eq.s32.totalorder %s53, 1
      %p260 = scmp.ne.s32.totalorder %s255, %s257
      %p261 = scmp.eq.s32.totalorder %s53, 0
      %p262 = por %p260, %p261
      %p263 = scmp.ne.s32.totalorder %s255, %s257
      %p264 = scmp.eq.s32.totalorder %s58, 1
      %p265 = por %p263, %p264
      %p266 = scmp.ne.s32.totalorder %s257, %s258
      %p267 = scmp.eq.s32.totalorder %s58, 0
      %p268 = por %p266, %p267
      %p269 = scmp.ne.s32.totalorder %s257, %s258
      %p270 = scmp.eq.s32.totalorder %s59, 1
      %p271 = por %p269, %p270
      %p273 = scmp.ne.s32.totalorder %s258, %s272
      %p274 = scmp.eq.s32.totalorder %s59, 0
      %p275 = por %p273, %p274
      %s277 = sadd.s32 %s276, 1
      %p280 = scmp.eq.s32.totalorder %s53, 1
      %p281 = scmp.ne.s32.totalorder %s276, %s278
      %p282 = scmp.eq.s32.totalorder %s53, 0
      %p283 = por %p281, %p282
      %p284 = scmp.ne.s32.totalorder %s276, %s278
      %p285 = scmp.eq.s32.totalorder %s58, 1
      %p286 = por %p284, %p285
      %p287 = scmp.ne.s32.totalorder %s278, %s279
      %p288 = scmp.eq.s32.totalorder %s58, 0
      %p289 = por %p287, %p288
      %p290 = scmp.ne.s32.totalorder %s278, %s279
      %p291 = scmp.eq.s32.totalorder %s59, 1
      %p292 = por %p290, %p291
      %p294 = scmp.ne.s32.totalorder %s279, %s293
      %p295 = scmp.eq.s32.totalorder %s59, 0
      %p296 = por %p294, %p295
      %s298 = sadd.s32 %s297, 1
      %p301 = scmp.eq.s32.totalorder %s53, 1
      %p302 = scmp.ne.s32.totalorder %s297, %s299
      %p303 = scmp.eq.s32.totalorder %s53, 0
      %p304 = por %p302, %p303
      %p305 = scmp.ne.s32.totalorder %s297, %s299
      %p306 = scmp.eq.s32.totalorder %s58, 1
      %p307 = por %p305, %p306
      %p308 = scmp.ne.s32.totalorder %s299, %s300
      %p309 = scmp.eq.s32.totalorder %s58, 0
      %p310 = por %p308, %p309
      %p311 = scmp.ne.s32.totalorder %s299, %s300
      %p312 = scmp.eq.s32.totalorder %s59, 1
      %p313 = por %p311, %p312
      %p315 = scmp.ne.s32.totalorder %s300, %s314
      %p316 = scmp.eq.s32.totalorder %s59, 0
      %p317 = por %p315, %p316
      %s319 = sadd.s32 %s318, 1
      %p322 = scmp.eq.s32.totalorder %s53, 1
      %p323 = scmp.ne.s32.totalorder %s318, %s320
      %p324 = scmp.eq.s32.totalorder %s53, 0
      %p325 = por %p323, %p324
      %p326 = scmp.ne.s32.totalorder %s318, %s320
      %p327 = scmp.eq.s32.totalorder %s58, 1
      %p328 = por %p326, %p327
      %p329 = scmp.ne.s32.totalorder %s320, %s321
      %p330 = scmp.eq.s32.totalorder %s58, 0
      %p331 = por %p329, %p330
      %p332 = scmp.ne.s32.totalorder %s320, %s321
      %p333 = scmp.eq.s32.totalorder %s59, 1
      %p334 = por %p332, %p333
      %p336 = scmp.ne.s32.totalorder %s321, %s335
      %p337 = scmp.eq.s32.totalorder %s59, 0
      %p338 = por %p336, %p337
      %s340 = sadd.s32 %s339, 1
      %p343 = scmp.eq.s32.totalorder %s53, 1
      %p344 = scmp.ne.s32.totalorder %s339, %s341
      %p345 = scmp.eq.s32.totalorder %s53, 0
      %p346 = por %p344, %p345
      %p347 = scmp.ne.s32.totalorder %s339, %s341
      %p348 = scmp.eq.s32.totalorder %s58, 1
      %p349 = por %p347, %p348
      %p350 = scmp.ne.s32.totalorder %s341, %s342
      %p351 = scmp.eq.s32.totalorder %s58, 0
      %p352 = por %p350, %p351
      %p353 = scmp.ne.s32.totalorder %s341, %s342
      %p354 = scmp.eq.s32.totalorder %s59, 1
      %p355 = por %p353, %p354
      %p357 = scmp.ne.s32.totalorder %s342, %s356
      %p358 = scmp.eq.s32.totalorder %s59, 0
      %p359 = por %p357, %p358
      %s361 = sadd.s32 %s360, 1
      %p364 = scmp.eq.s32.totalorder %s53, 1
      %p365 = scmp.ne.s32.totalorder %s360, %s362
      %p366 = scmp.eq.s32.totalorder %s53, 0
      %p367 = por %p365, %p366
      %p368 = scmp.ne.s32.totalorder %s360, %s362
      %p369 = scmp.eq.s32.totalorder %s58, 1
      %p370 = por %p368, %p369
      %p371 = scmp.ne.s32.totalorder %s362, %s363
      %p372 = scmp.eq.s32.totalorder %s58, 0
      %p373 = por %p371, %p372
      %p374 = scmp.ne.s32.totalorder %s362, %s363
      %p375 = scmp.eq.s32.totalorder %s59, 1
      %p376 = por %p374, %p375
      %p378 = scmp.ne.s32.totalorder %s363, %s377
      %p379 = scmp.eq.s32.totalorder %s59, 0
      %p380 = por %p378, %p379
      %s382 = sadd.s32 %s381, 1
      %p385 = scmp.eq.s32.totalorder %s53, 1
      %p386 = scmp.ne.s32.totalorder %s381, %s383
      %p387 = scmp.eq.s32.totalorder %s53, 0
      %p388 = por %p386, %p387
      %p389 = scmp.ne.s32.totalorder %s381, %s383
      %p390 = scmp.eq.s32.totalorder %s58, 1
      %p391 = por %p389, %p390
      %p392 = scmp.ne.s32.totalorder %s383, %s384
      %p393 = scmp.eq.s32.totalorder %s58, 0
      %p394 = por %p392, %p393
      %p395 = scmp.ne.s32.totalorder %s383, %s384
      %p396 = scmp.eq.s32.totalorder %s59, 1
      %p397 = por %p395, %p396
      %p399 = scmp.ne.s32.totalorder %s384, %s398
      %p400 = scmp.eq.s32.totalorder %s59, 0
      %p401 = por %p399, %p400
      %s403 = sadd.s32 %s402, 1
      %p406 = scmp.eq.s32.totalorder %s53, 1
      %p407 = scmp.ne.s32.totalorder %s402, %s404
      %p408 = scmp.eq.s32.totalorder %s53, 0
      %p409 = por %p407, %p408
      %p410 = scmp.ne.s32.totalorder %s402, %s404
      %p411 = scmp.eq.s32.totalorder %s58, 1
      %p412 = por %p410, %p411
      %p413 = scmp.ne.s32.totalorder %s404, %s405
      %p414 = scmp.eq.s32.totalorder %s58, 0
      %p415 = por %p413, %p414
      %p416 = scmp.ne.s32.totalorder %s404, %s405
      %p417 = scmp.eq.s32.totalorder %s59, 1
      %p418 = por %p416, %p417
      %p420 = scmp.ne.s32.totalorder %s405, %s419
      %p421 = scmp.eq.s32.totalorder %s59, 0
      %p422 = por %p420, %p421
      %s424 = sadd.s32 %s423, 1
      %p427 = scmp.eq.s32.totalorder %s53, 1
      %p428 = scmp.ne.s32.totalorder %s423, %s425
      %p429 = scmp.eq.s32.totalorder %s53, 0
      %p430 = por %p428, %p429
      %p431 = scmp.ne.s32.totalorder %s423, %s425
      %p432 = scmp.eq.s32.totalorder %s58, 1
      %p433 = por %p431, %p432
      %p434 = scmp.ne.s32.totalorder %s425, %s426
      %p435 = scmp.eq.s32.totalorder %s58, 0
      %p436 = por %p434, %p435
      %p437 = scmp.ne.s32.totalorder %s425, %s426
      %p438 = scmp.eq.s32.totalorder %s59, 1
      %p439 = por %p437, %p438
      %p441 = scmp.ne.s32.totalorder %s426, %s440
      %p442 = scmp.eq.s32.totalorder %s59, 0
      %p443 = por %p441, %p442
      %s445 = sadd.s32 %s444, 1
      %p448 = scmp.eq.s32.totalorder %s53, 1
      %p449 = scmp.ne.s32.totalorder %s444, %s446
      %p450 = scmp.eq.s32.totalorder %s53, 0
      %p451 = por %p449, %p450
      %p452 = scmp.ne.s32.totalorder %s444, %s446
      %p453 = scmp.eq.s32.totalorder %s58, 1
      %p454 = por %p452, %p453
      %p455 = scmp.ne.s32.totalorder %s446, %s447
      %p456 = scmp.eq.s32.totalorder %s58, 0
      %p457 = por %p455, %p456
      %p458 = scmp.ne.s32.totalorder %s446, %s447
      %p459 = scmp.eq.s32.totalorder %s59, 1
      %p460 = por %p458, %p459
      %p462 = scmp.ne.s32.totalorder %s447, %s461
      %p463 = scmp.eq.s32.totalorder %s59, 0
      %p464 = por %p462, %p463
      %s466 = sadd.s32 %s465, 1
      %p469 = scmp.eq.s32.totalorder %s53, 1
      %p470 = scmp.ne.s32.totalorder %s465, %s467
      %p471 = scmp.eq.s32.totalorder %s53, 0
      %p472 = por %p470, %p471
      %p473 = scmp.ne.s32.totalorder %s465, %s467
      %p474 = scmp.eq.s32.totalorder %s58, 1
      %p475 = por %p473, %p474
      %p476 = scmp.ne.s32.totalorder %s467, %s468
      %p477 = scmp.eq.s32.totalorder %s58, 0
      %p478 = por %p476, %p477
      %p479 = scmp.ne.s32.totalorder %s467, %s468
      %p480 = scmp.eq.s32.totalorder %s59, 1
      %p481 = por %p479, %p480
      %p483 = scmp.ne.s32.totalorder %s468, %s482
      %p484 = scmp.eq.s32.totalorder %s59, 0
      %p485 = por %p483, %p484
      %s487 = sadd.s32 %s486, 1
      %p490 = scmp.eq.s32.totalorder %s53, 1
      %p491 = scmp.ne.s32.totalorder %s486, %s488
      %p492 = scmp.eq.s32.totalorder %s53, 0
      %p493 = por %p491, %p492
      %p494 = scmp.ne.s32.totalorder %s486, %s488
      %p495 = scmp.eq.s32.totalorder %s58, 1
      %p496 = por %p494, %p495
      %p497 = scmp.ne.s32.totalorder %s488, %s489
      %p498 = scmp.eq.s32.totalorder %s58, 0
      %p499 = por %p497, %p498
      %p500 = scmp.ne.s32.totalorder %s488, %s489
      %p501 = scmp.eq.s32.totalorder %s59, 1
      %p502 = por %p500, %p501
      %p504 = scmp.ne.s32.totalorder %s489, %s503
      %p505 = scmp.eq.s32.totalorder %s59, 0
      %p506 = por %p504, %p505
      %s508 = sadd.s32 %s507, 1
      %p511 = scmp.eq.s32.totalorder %s53, 1
      %p512 = scmp.ne.s32.totalorder %s507, %s509
      %p513 = scmp.eq.s32.totalorder %s53, 0
      %p514 = por %p512, %p513
      %p515 = scmp.ne.s32.totalorder %s507, %s509
      %p516 = scmp.eq.s32.totalorder %s58, 1
      %p517 = por %p515, %p516
      %p518 = scmp.ne.s32.totalorder %s509, %s510
      %p519 = scmp.eq.s32.totalorder %s58, 0
      %p520 = por %p518, %p519
      %p521 = scmp.ne.s32.totalorder %s509, %s510
      %p522 = scmp.eq.s32.totalorder %s59, 1
      %p523 = por %p521, %p522
      %p525 = scmp.ne.s32.totalorder %s510, %s524
      %p526 = scmp.eq.s32.totalorder %s59, 0
      %p527 = por %p525, %p526
      %s529 = sadd.s32 %s528, 1
      %p532 = scmp.eq.s32.totalorder %s53, 1
      %p533 = scmp.ne.s32.totalorder %s528, %s530
      %p534 = scmp.eq.s32.totalorder %s53, 0
      %p535 = por %p533, %p534
      %p536 = scmp.ne.s32.totalorder %s528, %s530
      %p537 = scmp.eq.s32.totalorder %s58, 1
      %p538 = por %p536, %p537
      %p539 = scmp.ne.s32.totalorder %s530, %s531
      %p540 = scmp.eq.s32.totalorder %s58, 0
      %p541 = por %p539, %p540
      %p542 = scmp.ne.s32.totalorder %s530, %s531
      %p543 = scmp.eq.s32.totalorder %s59, 1
      %p544 = por %p542, %p543
      %p546 = scmp.ne.s32.totalorder %s531, %s545
      %p547 = scmp.eq.s32.totalorder %s59, 0
      %p548 = por %p546, %p547
      %s550 = sadd.s32 %s549, 1
      %p553 = scmp.eq.s32.totalorder %s53, 1
      %p554 = scmp.ne.s32.totalorder %s549, %s551
      %p555 = scmp.eq.s32.totalorder %s53, 0
      %p556 = por %p554, %p555
      %p557 = scmp.ne.s32.totalorder %s549, %s551
      %p558 = scmp.eq.s32.totalorder %s58, 1
      %p559 = por %p557, %p558
      %p560 = scmp.ne.s32.totalorder %s551, %s552
      %p561 = scmp.eq.s32.totalorder %s58, 0
      %p562 = por %p560, %p561
      %p563 = scmp.ne.s32.totalorder %s551, %s552
      %p564 = scmp.eq.s32.totalorder %s59, 1
      %p565 = por %p563, %p564
      %p567 = scmp.ne.s32.totalorder %s552, %s566
      %p568 = scmp.eq.s32.totalorder %s59, 0
      %p569 = por %p567, %p568
      %s570 = ssub.s32 %s53, %s60
      %p571 = scmp.eq.s32.totalorder %s570, 0
      %s573 = sadd.s32 %s572, 1
      %s574 = scalar_select %p571, %s572, %s573
      %p577 = pneg %p571
      %p578 = scmp.eq.s32.totalorder %s53, 1
      %p579 = por %p577, %p578
      %p580 = scmp.ne.s32.totalorder %s572, %s575
      %p581 = scmp.eq.s32.totalorder %s53, 0
      %p582 = por %p580, %p581
      %p583 = scmp.ne.s32.totalorder %s572, %s575
      %p584 = scmp.eq.s32.totalorder %s58, 1
      %p585 = por %p583, %p584
      %p586 = scmp.ne.s32.totalorder %s575, %s576
      %p587 = scmp.eq.s32.totalorder %s58, 0
      %p588 = por %p586, %p587
      %p589 = scmp.ne.s32.totalorder %s575, %s576
      %p590 = scmp.eq.s32.totalorder %s59, 1
      %p591 = por %p589, %p590
      %p593 = scmp.ne.s32.totalorder %s576, %s592
      %p594 = scmp.eq.s32.totalorder %s59, 0
      %p595 = por %p593, %p594
      %s596 = ssub.s32 %s53, %s60
      %p597 = scmp.eq.s32.totalorder %s596, 0
      %s599 = sadd.s32 %s598, 1
      %s600 = scalar_select %p597, %s598, %s599
      %p603 = pneg %p597
      %p604 = scmp.eq.s32.totalorder %s53, 1
      %p605 = por %p603, %p604
      %p606 = scmp.ne.s32.totalorder %s598, %s601
      %p607 = scmp.eq.s32.totalorder %s53, 0
      %p608 = por %p606, %p607
      %p609 = scmp.ne.s32.totalorder %s598, %s601
      %p610 = scmp.eq.s32.totalorder %s58, 1
      %p611 = por %p609, %p610
      %p612 = scmp.ne.s32.totalorder %s601, %s602
      %p613 = scmp.eq.s32.totalorder %s58, 0
      %p614 = por %p612, %p613
      %p615 = scmp.ne.s32.totalorder %s601, %s602
      %p616 = scmp.eq.s32.totalorder %s59, 1
      %p617 = por %p615, %p616
      %p619 = scmp.ne.s32.totalorder %s602, %s618
      %p620 = scmp.eq.s32.totalorder %s59, 0
      %p621 = por %p619, %p620
      %p622 = scmp.le.s32.totalorder 1, %s53
      %p623 = scmp.lt.s32.totalorder %s53, 3
      %p624 = pnand %p622, %p623
      %p625 = pneg %p624
      // Predicated region
      $region9: #{model_forward.2} parent=5 // pred_check
        _
      $region10: #{model_forward.2} parent=5 // pred_check_branch
        %627 = sbr.rel (%p624) target = $region12
      $region11: #{model_forward.2} parent=5 // pred_region
        %s628 = ssub.s32 %s53, 1
        // Predicated region
        $region13: #{model_forward.2} parent=11 // pred_check
          %p629 = pneg %p100
        $region14: #{model_forward.2} parent=11 // pred_check_branch
          %631 = sbr.rel (%p629) target = $region16
        $region15: #{model_forward.2} parent=11 // pred_region
          %s633 = ssub.s32 128, 128
          %634 = vsyncadd [#allocation6], %s633
          %s636 = sshll.u32 [#allocation5], 4
          %s637 = int_to_ptr.vmem [resolvable:$true] %s636
          %639 = dma.hbm_to_vmem [thread:$0]  %s1, 128, %s637, [#allocation6]
        $region16: #{model_forward.2} parent=11 // pred_fallthru
          _
        // Predicated region
        $region17: #{model_forward.2} parent=11 // pred_check
          %p640 = pneg %p121
        $region18: #{model_forward.2} parent=11 // pred_check_branch
          %642 = sbr.rel (%p640) target = $region20
        $region19: #{model_forward.2} parent=11 // pred_region
          %s644 = ssub.s32 128, 128
          %645 = vsyncadd [#allocation6], %s644
          %s646 = sshll.u32 [#allocation7], 4
          %s647 = int_to_ptr.vmem [resolvable:$true] %s646
          %652 = dma.hbm_to_vmem [thread:$0]  %s2, 128, %s647, [#allocation6], 64, 64, 4
        $region20: #{model_forward.2} parent=11 // pred_fallthru
          _
        // Predicated region
        $region21: #{model_forward.2} parent=11 // pred_check
          %p653 = pneg %p142
        $region22: #{model_forward.2} parent=11 // pred_check_branch
          %655 = sbr.rel (%p653) target = $region24
        $region23: #{model_forward.2} parent=11 // pred_region
          %s657 = ssub.s32 16, 16
          %658 = vsyncadd [#allocation9], %s657
          %s660 = sshll.u32 [#allocation8], 4
          %s661 = int_to_ptr.vmem [resolvable:$true] %s660
          %663 = dma.hbm_to_vmem [thread:$0]  %s3, 16, %s661, [#allocation9]
        $region24: #{model_forward.2} parent=11 // pred_fallthru
          _
        // Predicated region
        $region25: #{model_forward.2} parent=11 // pred_check
          %p664 = pneg %p163
        $region26: #{model_forward.2} parent=11 // pred_check_branch
          %666 = sbr.rel (%p664) target = $region28
        $region27: #{model_forward.2} parent=11 // pred_region
          %s668 = ssub.s32 256, 256
          %669 = vsyncadd [#allocation9], %s668
          %s670 = sshll.u32 [#allocation10], 4
          %s671 = int_to_ptr.vmem [resolvable:$true] %s670
          %676 = dma.hbm_to_vmem [thread:$0]  %s4, 256, %s671, [#allocation9], 64, 64, 4
        $region28: #{model_forward.2} parent=11 // pred_fallthru
          _
        // Predicated region
        $region29: #{model_forward.2} parent=11 // pred_check
          %p677 = pneg %p184
        $region30: #{model_forward.2} parent=11 // pred_check_branch
          %679 = sbr.rel (%p677) target = $region32
        $region31: #{model_forward.2} parent=11 // pred_region
          %s681 = ssub.s32 16, 16
          %682 = vsyncadd [#allocation12], %s681
          %s684 = sshll.u32 [#allocation11], 4
          %s685 = int_to_ptr.vmem [resolvable:$true] %s684
          %687 = dma.hbm_to_vmem [thread:$0]  %s5, 16, %s685, [#allocation12]
        $region32: #{model_forward.2} parent=11 // pred_fallthru
          _
        // Predicated region
        $region33: #{model_forward.2} parent=11 // pred_check
          %p688 = pneg %p205
        $region34: #{model_forward.2} parent=11 // pred_check_branch
          %690 = sbr.rel (%p688) target = $region36
        $region35: #{model_forward.2} parent=11 // pred_region
          %s692 = ssub.s32 256, 256
          %693 = vsyncadd [#allocation12], %s692
          %s694 = sshll.u32 [#allocation13], 4
          %s695 = int_to_ptr.vmem [resolvable:$true] %s694
          %700 = dma.hbm_to_vmem [thread:$0]  %s6, 256, %s695, [#allocation12], 64, 64, 4
        $region36: #{model_forward.2} parent=11 // pred_fallthru
          _
        // Predicated region
        $region37: #{model_forward.2} parent=11 // pred_check
          %p701 = pneg %p226
        $region38: #{model_forward.2} parent=11 // pred_check_branch
          %703 = sbr.rel (%p701) target = $region40
        $region39: #{model_forward.2} parent=11 // pred_region
          %s705 = ssub.s32 16, 16
          %706 = vsyncadd [#allocation15], %s705
          %s708 = sshll.u32 [#allocation14], 4
          %s709 = int_to_ptr.vmem [resolvable:$true] %s708
          %711 = dma.hbm_to_vmem [thread:$0]  %s7, 16, %s709, [#allocation15]
        $region40: #{model_forward.2} parent=11 // pred_fallthru
          _
        // Predicated region
        $region41: #{model_forward.2} parent=11 // pred_check
          %p712 = pneg %p247
        $region42: #{model_forward.2} parent=11 // pred_check_branch
          %714 = sbr.rel (%p712) target = $region44
        $region43: #{model_forward.2} parent=11 // pred_region
          %s716 = ssub.s32 256, 256
          %717 = vsyncadd [#allocation15], %s716
          %s718 = sshll.u32 [#allocation16], 4
          %s719 = int_to_ptr.vmem [resolvable:$true] %s718
          %724 = dma.hbm_to_vmem [thread:$0]  %s8, 256, %s719, [#allocation15], 64, 64, 4
        $region44: #{model_forward.2} parent=11 // pred_fallthru
          _
        // Predicated region
        $region45: #{model_forward.2} parent=11 // pred_check
          %p725 = pneg %p268
        $region46: #{model_forward.2} parent=11 // pred_check_branch
          %727 = sbr.rel (%p725) target = $region48
        $region47: #{model_forward.2} parent=11 // pred_region
          %s729 = ssub.s32 16, 16
          %730 = vsyncadd [#allocation18], %s729
          %s732 = sshll.u32 [#allocation17], 4
          %s733 = int_to_ptr.vmem [resolvable:$true] %s732
          %735 = dma.hbm_to_vmem [thread:$0]  %s9, 16, %s733, [#allocation18]
        $region48: #{model_forward.2} parent=11 // pred_fallthru
          _
        // Predicated region
        $region49: #{model_forward.2} parent=11 // pred_check
          %p736 = pneg %p289
        $region50: #{model_forward.2} parent=11 // pred_check_branch
          %738 = sbr.rel (%p736) target = $region52
        $region51: #{model_forward.2} parent=11 // pred_region
          %s740 = ssub.s32 256, 256
          %741 = vsyncadd [#allocation18], %s740
          %s742 = sshll.u32 [#allocation19], 4
          %s743 = int_to_ptr.vmem [resolvable:$true] %s742
          %748 = dma.hbm_to_vmem [thread:$0]  %s10, 256, %s743, [#allocation18], 64, 64, 4
        $region52: #{model_forward.2} parent=11 // pred_fallthru
          _
        // Predicated region
        $region53: #{model_forward.2} parent=11 // pred_check
          %p749 = pneg %p310
        $region54: #{model_forward.2} parent=11 // pred_check_branch
          %751 = sbr.rel (%p749) target = $region56
        $region55: #{model_forward.2} parent=11 // pred_region
          %s753 = ssub.s32 16, 16
          %754 = vsyncadd [#allocation21], %s753
          %s756 = sshll.u32 [#allocation20], 4
          %s757 = int_to_ptr.vmem [resolvable:$true] %s756
          %759 = dma.hbm_to_vmem [thread:$0]  %s11, 16, %s757, [#allocation21]
        $region56: #{model_forward.2} parent=11 // pred_fallthru
          _
        // Predicated region
        $region57: #{model_forward.2} parent=11 // pred_check
          %p760 = pneg %p331
        $region58: #{model_forward.2} parent=11 // pred_check_branch
          %762 = sbr.rel (%p760) target = $region60
        $region59: #{model_forward.2} parent=11 // pred_region
          %s764 = ssub.s32 16, 16
          %765 = vsyncadd [#allocation21], %s764
          %s767 = sshll.u32 [#allocation22], 4
          %s768 = int_to_ptr.vmem [resolvable:$true] %s767
          %770 = dma.hbm_to_vmem [thread:$0]  %s12, 16, %s768, [#allocation21]
        $region60: #{model_forward.2} parent=11 // pred_fallthru
          _
        // Predicated region
        $region61: #{model_forward.2} parent=11 // pred_check
          %p771 = pneg %p352
        $region62: #{model_forward.2} parent=11 // pred_check_branch
          %773 = sbr.rel (%p771) target = $region64
        $region63: #{model_forward.2} parent=11 // pred_region
          %s775 = ssub.s32 16, 16
          %776 = vsyncadd [#allocation24], %s775
          %s778 = sshll.u32 [#allocation23], 4
          %s779 = int_to_ptr.vmem [resolvable:$true] %s778
          %781 = dma.hbm_to_vmem [thread:$0]  %s13, 16, %s779, [#allocation24]
        $region64: #{model_forward.2} parent=11 // pred_fallthru
          _
        // Predicated region
        $region65: #{model_forward.2} parent=11 // pred_check
          %p782 = pneg %p373
        $region66: #{model_forward.2} parent=11 // pred_check_branch
          %784 = sbr.rel (%p782) target = $region68
        $region67: #{model_forward.2} parent=11 // pred_region
          %s786 = ssub.s32 256, 256
          %787 = vsyncadd [#allocation24], %s786
          %s788 = sshll.u32 [#allocation25], 4
          %s789 = int_to_ptr.vmem [resolvable:$true] %s788
          %794 = dma.hbm_to_vmem [thread:$0]  %s14, 256, %s789, [#allocation24], 64, 64, 4
        $region68: #{model_forward.2} parent=11 // pred_fallthru
          _
        // Predicated region
        $region69: #{model_forward.2} parent=11 // pred_check
          %p795 = pneg %p394
        $region70: #{model_forward.2} parent=11 // pred_check_branch
          %797 = sbr.rel (%p795) target = $region72
        $region71: #{model_forward.2} parent=11 // pred_region
          %s799 = ssub.s32 16, 16
          %800 = vsyncadd [#allocation27], %s799
          %s802 = sshll.u32 [#allocation26], 4
          %s803 = int_to_ptr.vmem [resolvable:$true] %s802
          %805 = dma.hbm_to_vmem [thread:$0]  %s15, 16, %s803, [#allocation27]
        $region72: #{model_forward.2} parent=11 // pred_fallthru
          _
        // Predicated region
        $region73: #{model_forward.2} parent=11 // pred_check
          %p806 = pneg %p415
        $region74: #{model_forward.2} parent=11 // pred_check_branch
          %808 = sbr.rel (%p806) target = $region76
        $region75: #{model_forward.2} parent=11 // pred_region
          %s810 = ssub.s32 512, 512
          %811 = vsyncadd [#allocation27], %s810
          %s812 = sshll.u32 [#allocation28], 4
          %s813 = int_to_ptr.vmem [resolvable:$true] %s812
          %818 = dma.hbm_to_vmem [thread:$0]  %s16, 512, %s813, [#allocation27], 64, 64, 4
        $region76: #{model_forward.2} parent=11 // pred_fallthru
          _
        // Predicated region
        $region77: #{model_forward.2} parent=11 // pred_check
          %p819 = pneg %p436
        $region78: #{model_forward.2} parent=11 // pred_check_branch
          %821 = sbr.rel (%p819) target = $region80
        $region79: #{model_forward.2} parent=11 // pred_region
          %s823 = ssub.s32 16, 16
          %824 = vsyncadd [#allocation30], %s823
          %s826 = sshll.u32 [#allocation29], 4
          %s827 = int_to_ptr.vmem [resolvable:$true] %s826
          %829 = dma.hbm_to_vmem [thread:$0]  %s17, 16, %s827, [#allocation30]
        $region80: #{model_forward.2} parent=11 // pred_fallthru
          _
        // Predicated region
        $region81: #{model_forward.2} parent=11 // pred_check
          %p830 = pneg %p457
        $region82: #{model_forward.2} parent=11 // pred_check_branch
          %832 = sbr.rel (%p830) target = $region84
        $region83: #{model_forward.2} parent=11 // pred_region
          %s834 = ssub.s32 16, 16
          %835 = vsyncadd [#allocation30], %s834
          %s837 = sshll.u32 [#allocation31], 4
          %s838 = int_to_ptr.vmem [resolvable:$true] %s837
          %840 = dma.hbm_to_vmem [thread:$0]  %s18, 16, %s838, [#allocation30]
        $region84: #{model_forward.2} parent=11 // pred_fallthru
          _
        // Predicated region
        $region85: #{model_forward.2} parent=11 // pred_check
          %p841 = pneg %p478
        $region86: #{model_forward.2} parent=11 // pred_check_branch
          %843 = sbr.rel (%p841) target = $region88
        $region87: #{model_forward.2} parent=11 // pred_region
          %s845 = ssub.s32 16, 16
          %846 = vsyncadd [#allocation33], %s845
          %s848 = sshll.u32 [#allocation32], 4
          %s849 = int_to_ptr.vmem [resolvable:$true] %s848
          %851 = dma.hbm_to_vmem [thread:$0]  %s19, 16, %s849, [#allocation33]
        $region88: #{model_forward.2} parent=11 // pred_fallthru
          _
        // Predicated region
        $region89: #{model_forward.2} parent=11 // pred_check
          %p852 = pneg %p499
        $region90: #{model_forward.2} parent=11 // pred_check_branch
          %854 = sbr.rel (%p852) target = $region92
        $region91: #{model_forward.2} parent=11 // pred_region
          %s856 = ssub.s32 256, 256
          %857 = vsyncadd [#allocation33], %s856
          %s858 = sshll.u32 [#allocation34], 4
          %s859 = int_to_ptr.vmem [resolvable:$true] %s858
          %864 = dma.hbm_to_vmem [thread:$0]  %s20, 256, %s859, [#allocation33], 64, 64, 4
        $region92: #{model_forward.2} parent=11 // pred_fallthru
          _
        // Predicated region
        $region93: #{model_forward.2} parent=11 // pred_check
          %p865 = pneg %p520
        $region94: #{model_forward.2} parent=11 // pred_check_branch
          %867 = sbr.rel (%p865) target = $region96
        $region95: #{model_forward.2} parent=11 // pred_region
          %s869 = ssub.s32 16, 16
          %870 = vsyncadd [#allocation36], %s869
          %s872 = sshll.u32 [#allocation35], 4
          %s873 = int_to_ptr.vmem [resolvable:$true] %s872
          %875 = dma.hbm_to_vmem [thread:$0]  %s21, 16, %s873, [#allocation36]
        $region96: #{model_forward.2} parent=11 // pred_fallthru
          _
        // Predicated region
        $region97: #{model_forward.2} parent=11 // pred_check
          %p876 = pneg %p541
        $region98: #{model_forward.2} parent=11 // pred_check_branch
          %878 = sbr.rel (%p876) target = $region100
        $region99: #{model_forward.2} parent=11 // pred_region
          %s880 = ssub.s32 256, 256
          %881 = vsyncadd [#allocation36], %s880
          %s882 = sshll.u32 [#allocation37], 4
          %s883 = int_to_ptr.vmem [resolvable:$true] %s882
          %888 = dma.hbm_to_vmem [thread:$0]  %s22, 256, %s883, [#allocation36], 64, 64, 4
        $region100: #{model_forward.2} parent=11 // pred_fallthru
          _
        // Predicated region
        $region101: #{model_forward.2} parent=11 // pred_check
          %p889 = pneg %p562
        $region102: #{model_forward.2} parent=11 // pred_check_branch
          %891 = sbr.rel (%p889) target = $region104
        $region103: #{model_forward.2} parent=11 // pred_region
          %s893 = ssub.s32 16, 16
          %894 = vsyncadd [#allocation39], %s893
          %s896 = sshll.u32 [#allocation38], 4
          %s897 = int_to_ptr.vmem [resolvable:$true] %s896
          %899 = dma.hbm_to_vmem [thread:$0]  %s23, 16, %s897, [#allocation39]
        $region104: #{model_forward.2} parent=11 // pred_fallthru
          _
      $region12: #{model_forward.2} parent=5 // pred_fallthru
        _
      %p900 = scmp.lt.s32.totalorder %s53, 2
      // Predicated region
      $region105: #{model_forward.2} parent=5 // pred_check
        %p901 = pneg %p900
      $region106: #{model_forward.2} parent=5 // pred_check_branch
        %903 = sbr.rel (%p901) target = $region108
      $region107: #{model_forward.2} parent=5 // pred_region
        // Predicated region
        $region109: #{model_forward.2} parent=107 // pred_check
          %p904 = pneg %p73
        $region110: #{model_forward.2} parent=107 // pred_check_branch
          %906 = sbr.rel (%p904) target = $region112
        $region111: #{model_forward.2} parent=107 // pred_region
          %s907 = sand.u32 %s63, 1
          %s908 = scalar_lea.sflag [#allocation3], %s907
          %s909 = sand.u32 %s63, 1
          %s910 = smul.addr %s909, 8
          %s911 = scalar_lea.vmem [#allocation2], %s910
          %s913 = ssub.s32 128, 128
          %914 = vsyncadd %s908, %s913
          %s915 = smul.addr %s53, 128
          %s916 = scalar_lea.hbm %s0, %s915
          %s918 = sshll.u32 %s911, 4
          %s919 = int_to_ptr.vmem [resolvable:$true] %s918
          %921 = dma.hbm_to_vmem [thread:$0]  %s916, 128, %s919, %s908
        $region112: #{model_forward.2} parent=107 // pred_fallthru
          _
      $region108: #{model_forward.2} parent=5 // pred_fallthru
        _
      %p922 = scmp.le.s32.totalorder 1, %s53
      %p923 = scmp.lt.s32.totalorder %s53, 3
      %p924 = pnand %p922, %p923
      %p925 = pneg %p924
      // Predicated region
      $region113: #{model_forward.2} parent=5 // pred_check
        _
      $region114: #{model_forward.2} parent=5 // pred_check_branch
        %927 = sbr.rel (%p924) target = $region116
      $region115: #{model_forward.2} parent=5 // pred_region
        %s928 = ssub.s32 %s53, 1
        %s929 = sand.u32 %s66, 1
        %s930 = scalar_lea.sflag [#allocation3], %s929
        %s931 = sand.u32 %s66, 1
        %s932 = smul.addr %s931, 8
        %s933 = scalar_lea.vmem [#allocation2], %s932
        // Predicated region
        $region117: #{model_forward.2} parent=115 // pred_check
          %p934 = pneg %p79
        $region118: #{model_forward.2} parent=115 // pred_check_branch
          %936 = sbr.rel (%p934) target = $region120
        $region119: #{model_forward.2} parent=115 // pred_region
          %937 = dma.done %s930, 128
        $region120: #{model_forward.2} parent=115 // pred_fallthru
          _
        // Predicated region
        $region121: #{model_forward.2} parent=115 // pred_check
          %p938 = pneg %p100
        $region122: #{model_forward.2} parent=115 // pred_check_branch
          %940 = sbr.rel (%p938) target = $region124
        $region123: #{model_forward.2} parent=115 // pred_region
          %941 = dma.done [#allocation6], 128
        $region124: #{model_forward.2} parent=115 // pred_fallthru
          _
        // Predicated region
        $region125: #{model_forward.2} parent=115 // pred_check
          %p942 = pneg %p121
        $region126: #{model_forward.2} parent=115 // pred_check_branch
          %944 = sbr.rel (%p942) target = $region128
        $region127: #{model_forward.2} parent=115 // pred_region
          %945 = dma.done [#allocation6], 128
        $region128: #{model_forward.2} parent=115 // pred_fallthru
          _
        // Predicated region
        $region129: #{model_forward.2} parent=115 // pred_check
          %p946 = pneg %p142
        $region130: #{model_forward.2} parent=115 // pred_check_branch
          %948 = sbr.rel (%p946) target = $region132
        $region131: #{model_forward.2} parent=115 // pred_region
          %949 = dma.done [#allocation9], 16
        $region132: #{model_forward.2} parent=115 // pred_fallthru
          _
        // Predicated region
        $region133: #{model_forward.2} parent=115 // pred_check
          %p950 = pneg %p163
        $region134: #{model_forward.2} parent=115 // pred_check_branch
          %952 = sbr.rel (%p950) target = $region136
        $region135: #{model_forward.2} parent=115 // pred_region
          %953 = dma.done [#allocation9], 256
        $region136: #{model_forward.2} parent=115 // pred_fallthru
          _
        // Predicated region
        $region137: #{model_forward.2} parent=115 // pred_check
          %p954 = pneg %p184
        $region138: #{model_forward.2} parent=115 // pred_check_branch
          %956 = sbr.rel (%p954) target = $region140
        $region139: #{model_forward.2} parent=115 // pred_region
          %957 = dma.done [#allocation12], 16
        $region140: #{model_forward.2} parent=115 // pred_fallthru
          _
        // Predicated region
        $region141: #{model_forward.2} parent=115 // pred_check
          %p958 = pneg %p205
        $region142: #{model_forward.2} parent=115 // pred_check_branch
          %960 = sbr.rel (%p958) target = $region144
        $region143: #{model_forward.2} parent=115 // pred_region
          %961 = dma.done [#allocation12], 256
        $region144: #{model_forward.2} parent=115 // pred_fallthru
          _
        // Predicated region
        $region145: #{model_forward.2} parent=115 // pred_check
          %p962 = pneg %p226
        $region146: #{model_forward.2} parent=115 // pred_check_branch
          %964 = sbr.rel (%p962) target = $region148
        $region147: #{model_forward.2} parent=115 // pred_region
          %965 = dma.done [#allocation15], 16
        $region148: #{model_forward.2} parent=115 // pred_fallthru
          _
        // Predicated region
        $region149: #{model_forward.2} parent=115 // pred_check
          %p966 = pneg %p247
        $region150: #{model_forward.2} parent=115 // pred_check_branch
          %968 = sbr.rel (%p966) target = $region152
        $region151: #{model_forward.2} parent=115 // pred_region
          %969 = dma.done [#allocation15], 256
        $region152: #{model_forward.2} parent=115 // pred_fallthru
          _
        // Predicated region
        $region153: #{model_forward.2} parent=115 // pred_check
          %p970 = pneg %p268
        $region154: #{model_forward.2} parent=115 // pred_check_branch
          %972 = sbr.rel (%p970) target = $region156
        $region155: #{model_forward.2} parent=115 // pred_region
          %973 = dma.done [#allocation18], 16
        $region156: #{model_forward.2} parent=115 // pred_fallthru
          _
        // Predicated region
        $region157: #{model_forward.2} parent=115 // pred_check
          %p974 = pneg %p289
        $region158: #{model_forward.2} parent=115 // pred_check_branch
          %976 = sbr.rel (%p974) target = $region160
        $region159: #{model_forward.2} parent=115 // pred_region
          %977 = dma.done [#allocation18], 256
        $region160: #{model_forward.2} parent=115 // pred_fallthru
          _
        // Predicated region
        $region161: #{model_forward.2} parent=115 // pred_check
          %p978 = pneg %p310
        $region162: #{model_forward.2} parent=115 // pred_check_branch
          %980 = sbr.rel (%p978) target = $region164
        $region163: #{model_forward.2} parent=115 // pred_region
          %981 = dma.done [#allocation21], 16
        $region164: #{model_forward.2} parent=115 // pred_fallthru
          _
        // Predicated region
        $region165: #{model_forward.2} parent=115 // pred_check
          %p982 = pneg %p331
        $region166: #{model_forward.2} parent=115 // pred_check_branch
          %984 = sbr.rel (%p982) target = $region168
        $region167: #{model_forward.2} parent=115 // pred_region
          %985 = dma.done [#allocation21], 16
        $region168: #{model_forward.2} parent=115 // pred_fallthru
          _
        // Predicated region
        $region169: #{model_forward.2} parent=115 // pred_check
          %p986 = pneg %p352
        $region170: #{model_forward.2} parent=115 // pred_check_branch
          %988 = sbr.rel (%p986) target = $region172
        $region171: #{model_forward.2} parent=115 // pred_region
          %989 = dma.done [#allocation24], 16
        $region172: #{model_forward.2} parent=115 // pred_fallthru
          _
        // Predicated region
        $region173: #{model_forward.2} parent=115 // pred_check
          %p990 = pneg %p373
        $region174: #{model_forward.2} parent=115 // pred_check_branch
          %992 = sbr.rel (%p990) target = $region176
        $region175: #{model_forward.2} parent=115 // pred_region
          %993 = dma.done [#allocation24], 256
        $region176: #{model_forward.2} parent=115 // pred_fallthru
          _
        // Predicated region
        $region177: #{model_forward.2} parent=115 // pred_check
          %p994 = pneg %p394
        $region178: #{model_forward.2} parent=115 // pred_check_branch
          %996 = sbr.rel (%p994) target = $region180
        $region179: #{model_forward.2} parent=115 // pred_region
          %997 = dma.done [#allocation27], 16
        $region180: #{model_forward.2} parent=115 // pred_fallthru
          _
        // Predicated region
        $region181: #{model_forward.2} parent=115 // pred_check
          %p998 = pneg %p415
        $region182: #{model_forward.2} parent=115 // pred_check_branch
          %1000 = sbr.rel (%p998) target = $region184
        $region183: #{model_forward.2} parent=115 // pred_region
          %1001 = dma.done [#allocation27], 512
        $region184: #{model_forward.2} parent=115 // pred_fallthru
          _
        // Predicated region
        $region185: #{model_forward.2} parent=115 // pred_check
          %p1002 = pneg %p436
        $region186: #{model_forward.2} parent=115 // pred_check_branch
          %1004 = sbr.rel (%p1002) target = $region188
        $region187: #{model_forward.2} parent=115 // pred_region
          %1005 = dma.done [#allocation30], 16
        $region188: #{model_forward.2} parent=115 // pred_fallthru
          _
        // Predicated region
        $region189: #{model_forward.2} parent=115 // pred_check
          %p1006 = pneg %p457
        $region190: #{model_forward.2} parent=115 // pred_check_branch
          %1008 = sbr.rel (%p1006) target = $region192
        $region191: #{model_forward.2} parent=115 // pred_region
          %1009 = dma.done [#allocation30], 16
        $region192: #{model_forward.2} parent=115 // pred_fallthru
          _
        // Predicated region
        $region193: #{model_forward.2} parent=115 // pred_check
          %p1010 = pneg %p478
        $region194: #{model_forward.2} parent=115 // pred_check_branch
          %1012 = sbr.rel (%p1010) target = $region196
        $region195: #{model_forward.2} parent=115 // pred_region
          %1013 = dma.done [#allocation33], 16
        $region196: #{model_forward.2} parent=115 // pred_fallthru
          _
        // Predicated region
        $region197: #{model_forward.2} parent=115 // pred_check
          %p1014 = pneg %p499
        $region198: #{model_forward.2} parent=115 // pred_check_branch
          %1016 = sbr.rel (%p1014) target = $region200
        $region199: #{model_forward.2} parent=115 // pred_region
          %1017 = dma.done [#allocation33], 256
        $region200: #{model_forward.2} parent=115 // pred_fallthru
          _
        // Predicated region
        $region201: #{model_forward.2} parent=115 // pred_check
          %p1018 = pneg %p520
        $region202: #{model_forward.2} parent=115 // pred_check_branch
          %1020 = sbr.rel (%p1018) target = $region204
        $region203: #{model_forward.2} parent=115 // pred_region
          %1021 = dma.done [#allocation36], 16
        $region204: #{model_forward.2} parent=115 // pred_fallthru
          _
        // Predicated region
        $region205: #{model_forward.2} parent=115 // pred_check
          %p1022 = pneg %p541
        $region206: #{model_forward.2} parent=115 // pred_check_branch
          %1024 = sbr.rel (%p1022) target = $region208
        $region207: #{model_forward.2} parent=115 // pred_region
          %1025 = dma.done [#allocation36], 256
        $region208: #{model_forward.2} parent=115 // pred_fallthru
          _
        // Predicated region
        $region209: #{model_forward.2} parent=115 // pred_check
          %p1026 = pneg %p562
        $region210: #{model_forward.2} parent=115 // pred_check_branch
          %1028 = sbr.rel (%p1026) target = $region212
        $region211: #{model_forward.2} parent=115 // pred_region
          %1029 = dma.done [#allocation39], 16
        $region212: #{model_forward.2} parent=115 // pred_fallthru
          _
        %s1030 = sand.u32 %s66, 1
        %s1031 = scalar_lea.sflag [#allocation3], %s1030
        %s1032 = sand.u32 %s66, 1
        %s1033 = smul.addr %s1032, 8
        %s1034 = scalar_lea.vmem [#allocation2], %s1033
        %p1035 = pneg %p79
        %p1036 = pneg %p76
        %p1037 = pneg %p100
        %p1038 = pneg %p97
        %p1039 = pneg %p121
        %p1040 = pneg %p118
        %p1041 = pneg %p142
        %p1042 = pneg %p139
        %p1043 = pneg %p163
        %p1044 = pneg %p160
        %p1045 = pneg %p184
        %p1046 = pneg %p181
        %p1047 = pneg %p205
        %p1048 = pneg %p202
        %p1049 = pneg %p226
        %p1050 = pneg %p223
        %p1051 = pneg %p247
        %p1052 = pneg %p244
        %p1053 = pneg %p268
        %p1054 = pneg %p265
        %p1055 = pneg %p289
        %p1056 = pneg %p286
        %p1057 = pneg %p310
        %p1058 = pneg %p307
        %p1059 = pneg %p331
        %p1060 = pneg %p328
        %p1061 = pneg %p352
        %p1062 = pneg %p349
        %p1063 = pneg %p373
        %p1064 = pneg %p370
        %p1065 = pneg %p394
        %p1066 = pneg %p391
        %p1067 = pneg %p415
        %p1068 = pneg %p412
        %p1069 = pneg %p436
        %p1070 = pneg %p433
        %p1071 = pneg %p457
        %p1072 = pneg %p454
        %p1073 = pneg %p478
        %p1074 = pneg %p475
        %p1075 = pneg %p499
        %p1076 = pneg %p496
        %p1077 = pneg %p520
        %p1078 = pneg %p517
        %p1079 = pneg %p541
        %p1080 = pneg %p538
        %p1081 = pneg %p562
        %p1082 = pneg %p559
        %p1083 = pneg %p588
        %p1084 = pneg %p585
        %s1085 = sand.u32 %s575, 1
        %s1086 = scalar_lea.sflag [#allocation4], %s1085
        %s1087 = sand.u32 %s575, 1
        %s1088 = smul.addr %s1087, 4
        %s1089 = scalar_lea.vmem [#allocation40], %s1088
        %p1090 = pneg %p614
        %p1091 = pneg %p611
        %s1092 = sand.u32 %s601, 1
        %s1093 = scalar_lea.sflag [#allocation42], %s1092
        %s1094 = sand.u32 %s601, 1
        %s1095 = smul.addr %s1094, 4
        %s1096 = scalar_lea.vmem [#allocation41], %s1095
        %v1098 = vld [vmem:[%s933] sm:$0xff]
        %v1099 = vpack.c.bf16 %v1098, %v1098
        %v1100 = vld [vmem:[#allocation7] sm:$0xf]
        %v1101 = vld [vmem:[#allocation7 + $0x4] sm:$0xf]
        %v1102 = vld [vmem:[#allocation8] sm:$0x1]
        %v1104 = vlaneseq
        %v1105 = vshrl.u32 %v1104, 7
        %v1106 = vsub.s32 0, %v1105
        %v1107 = vrot.slane %v1102, %v1106
        %v1111 = vunpack.c.l.b16 %v1100
        %v1112 = vunpack.c.l.b16 %v1101
        %v1113 = vpack.c.b16 %v1112, %v1111
        %vm1115 = vcmask 130048
        %v1117 = vsel %vm1115, %v1099, 0
        %1119 = vmatprep.subr.bf16.mxu0 0
        %1120 = vmatpush1.bf16.msra.mxu0 %v1113
        %1121 = vmatprep.subr.bf16.mxu0 0
        %1122 = vmatpush1.bf16.msra.mxu0 0
        %1123 = vmatprep.subr.bf16.mxu0 0
        %1124 = vmatpush1.bf16.msra.mxu0 0
        %1125 = vmatprep.subr.bf16.mxu0 0
        %1126 = vmatpush1.bf16.msra.mxu0 0
        %1127 = vmatprep.subr.bf16.mxu0 0
        %1128 = vmatpush1.bf16.msra.mxu0 0
        %1129 = vmatprep.subr.bf16.mxu0 0
        %1130 = vmatpush1.bf16.msra.mxu0 0
        %1131 = vmatprep.subr.bf16.mxu0 0
        %1132 = vmatpush1.bf16.msra.mxu0 0
        %1133 = vmatprep.subr.bf16.mxu0 0
        %1134 = vmatpush1.bf16.msra.mxu0 0
        %1135 = vmatprep.subr.bf16.mxu0 0
        %1136 = vmatpush1.bf16.msra.mxu0 0
        %1137 = vmatprep.subr.bf16.mxu0 0
        %1138 = vmatpush1.bf16.msra.mxu0 0
        %1139 = vmatprep.subr.bf16.mxu0 0
        %1140 = vmatpush1.bf16.msra.mxu0 0
        %1141 = vmatprep.subr.bf16.mxu0 0
        %1142 = vmatpush1.bf16.msra.mxu0 0
        %1143 = vmatprep.subr.bf16.mxu0 0
        %1144 = vmatpush1.bf16.msra.mxu0 0
        %1145 = vmatprep.subr.bf16.mxu0 0
        %1146 = vmatpush1.bf16.msra.mxu0 0
        %1147 = vmatprep.subr.bf16.mxu0 0
        %1148 = vmatpush1.bf16.msra.mxu0 0
        %1149 = vmatprep.subr.bf16.mxu0 0
        %1150 = vmatpush1.bf16.msra.mxu0 0
        %1151 = vmatprep.mubr.bf16.mxu0 0
        %1152 = vmatmul.mubr.bf16.gmra.mrb[0].mxu0 %v1117
        %v1153 = vpop.f32.mrb[0].mxu0
        %v1154 = vadd.f32 %v1107, %v1153
        %v1155 = vpop.f32.mrb[0].mxu0
        %v1156 = vpop.f32.mrb[0].mxu0
        %v1157 = vpop.f32.mrb[0].mxu0
        %1158 = vdwg.mxu0
        %v1159 = vld [vmem:[#allocation5] sm:$0xff]
        %v1160 = vadd.f32 %v1154, %v1159
        %v1161 = vpack.c.bf16 %v1160, %v1160
        %v1162 = vld [vmem:[#allocation10] sm:$0xf]
        %v1163 = vld [vmem:[#allocation10 + $0x4] sm:$0xf]
        %v1164 = vld [vmem:[#allocation10 + $0x8] sm:$0xf]
        %v1165 = vld [vmem:[#allocation10 + $0xc] sm:$0xf]
        %v1166 = vld [vmem:[#allocation11] sm:$0x1]
        %v1168 = vlaneseq
        %v1169 = vshrl.u32 %v1168, 7
        %v1170 = vsub.s32 0, %v1169
        %v1171 = vrot.slane %v1166, %v1170
        %v1177 = vunpack.c.l.b16 %v1162
        %v1178 = vunpack.c.l.b16 %v1163
        %v1179 = vunpack.c.l.b16 %v1164
        %v1180 = vunpack.c.l.b16 %v1165
        %v1181 = vpack.c.b16 %v1178, %v1177
        %v1182 = vpack.c.b16 %v1180, %v1179
        %vm1185 = vcmask 261120
        %v1187 = vsel %vm1185, %v1161, 0
        %1189 = vmatprep.subr.bf16.mxu0 0
        %1190 = vmatpush1.bf16.msra.mxu0 %v1181
        %1191 = vmatprep.subr.bf16.mxu0 0
        %1192 = vmatpush1.bf16.msra.mxu0 %v1182
        %1193 = vmatprep.subr.bf16.mxu0 0
        %1194 = vmatpush1.bf16.msra.mxu0 0
        %1195 = vmatprep.subr.bf16.mxu0 0
        %1196 = vmatpush1.bf16.msra.mxu0 0
        %1197 = vmatprep.subr.bf16.mxu0 0
        %1198 = vmatpush1.bf16.msra.mxu0 0
        %1199 = vmatprep.subr.bf16.mxu0 0
        %1200 = vmatpush1.bf16.msra.mxu0 0
        %1201 = vmatprep.subr.bf16.mxu0 0
        %1202 = vmatpush1.bf16.msra.mxu0 0
        %1203 = vmatprep.subr.bf16.mxu0 0
        %1204 = vmatpush1.bf16.msra.mxu0 0
        %1205 = vmatprep.subr.bf16.mxu0 0
        %1206 = vmatpush1.bf16.msra.mxu0 0
        %1207 = vmatprep.subr.bf16.mxu0 0
        %1208 = vmatpush1.bf16.msra.mxu0 0
        %1209 = vmatprep.subr.bf16.mxu0 0
        %1210 = vmatpush1.bf16.msra.mxu0 0
        %1211 = vmatprep.subr.bf16.mxu0 0
        %1212 = vmatpush1.bf16.msra.mxu0 0
        %1213 = vmatprep.subr.bf16.mxu0 0
        %1214 = vmatpush1.bf16.msra.mxu0 0
        %1215 = vmatprep.subr.bf16.mxu0 0
        %1216 = vmatpush1.bf16.msra.mxu0 0
        %1217 = vmatprep.subr.bf16.mxu0 0
        %1218 = vmatpush1.bf16.msra.mxu0 0
        %1219 = vmatprep.subr.bf16.mxu0 0
        %1220 = vmatpush1.bf16.msra.mxu0 0
        %1221 = vmatprep.mubr.bf16.mxu0 0
        %1222 = vmatmul.mubr.bf16.gmra.mrb[0].mxu0 %v1187
        %v1223 = vpop.f32.mrb[0].mxu0
        %v1224 = vadd.f32 %v1171, %v1223
        %v1225 = vpop.f32.mrb[0].mxu0
        %v1226 = vpop.f32.mrb[0].mxu0
        %v1227 = vpop.f32.mrb[0].mxu0
        %1228 = vdwg.mxu0
        %v1229 = vld [vmem:[#allocation13] sm:$0xf]
        %v1230 = vld [vmem:[#allocation13 + $0x4] sm:$0xf]
        %v1231 = vld [vmem:[#allocation13 + $0x8] sm:$0xf]
        %v1232 = vld [vmem:[#allocation13 + $0xc] sm:$0xf]
        %v1233 = vld [vmem:[#allocation14] sm:$0x1]
        %v1235 = vlaneseq
        %v1236 = vshrl.u32 %v1235, 7
        %v1237 = vsub.s32 0, %v1236
        %v1238 = vrot.slane %v1233, %v1237
        %v1244 = vunpack.c.l.b16 %v1229
        %v1245 = vunpack.c.l.b16 %v1230
        %v1246 = vunpack.c.l.b16 %v1231
        %v1247 = vunpack.c.l.b16 %v1232
        %v1248 = vpack.c.b16 %v1245, %v1244
        %v1249 = vpack.c.b16 %v1247, %v1246
        %1252 = vmatprep.subr.bf16.mxu0 0
        %1253 = vmatpush1.bf16.msra.mxu0 %v1248
        %1254 = vmatprep.subr.bf16.mxu0 0
        %1255 = vmatpush1.bf16.msra.mxu0 %v1249
        %1256 = vmatprep.subr.bf16.mxu0 0
        %1257 = vmatpush1.bf16.msra.mxu0 0
        %1258 = vmatprep.subr.bf16.mxu0 0
        %1259 = vmatpush1.bf16.msra.mxu0 0
        %1260 = vmatprep.subr.bf16.mxu0 0
        %1261 = vmatpush1.bf16.msra.mxu0 0
        %1262 = vmatprep.subr.bf16.mxu0 0
        %1263 = vmatpush1.bf16.msra.mxu0 0
        %1264 = vmatprep.subr.bf16.mxu0 0
        %1265 = vmatpush1.bf16.msra.mxu0 0
        %1266 = vmatprep.subr.bf16.mxu0 0
        %1267 = vmatpush1.bf16.msra.mxu0 0
        %1268 = vmatprep.subr.bf16.mxu0 0
        %1269 = vmatpush1.bf16.msra.mxu0 0
        %1270 = vmatprep.subr.bf16.mxu0 0
        %1271 = vmatpush1.bf16.msra.mxu0 0
        %1272 = vmatprep.subr.bf16.mxu0 0
        %1273 = vmatpush1.bf16.msra.mxu0 0
        %1274 = vmatprep.subr.bf16.mxu0 0
        %1275 = vmatpush1.bf16.msra.mxu0 0
        %1276 = vmatprep.subr.bf16.mxu0 0
        %1277 = vmatpush1.bf16.msra.mxu0 0
        %1278 = vmatprep.subr.bf16.mxu0 0
        %1279 = vmatpush1.bf16.msra.mxu0 0
        %1280 = vmatprep.subr.bf16.mxu0 0
        %1281 = vmatpush1.bf16.msra.mxu0 0
        %1282 = vmatprep.subr.bf16.mxu0 0
        %1283 = vmatpush1.bf16.msra.mxu0 0
        %1284 = vmatprep.mubr.bf16.mxu0 0
        %1285 = vmatmul.mubr.bf16.gmra.mrb[0].mxu0 %v1187
        %v1286 = vpop.f32.mrb[0].mxu0
        %v1287 = vadd.f32 %v1238, %v1286
        %v1288 = vpop.f32.mrb[0].mxu0
        %v1289 = vpop.f32.mrb[0].mxu0
        %v1290 = vpop.f32.mrb[0].mxu0
        %1291 = vdwg.mxu0
        %v1292 = vld [vmem:[#allocation16] sm:$0xf]
        %v1293 = vld [vmem:[#allocation16 + $0x4] sm:$0xf]
        %v1294 = vld [vmem:[#allocation16 + $0x8] sm:$0xf]
        %v1295 = vld [vmem:[#allocation16 + $0xc] sm:$0xf]
        %v1296 = vld [vmem:[#allocation17] sm:$0x1]
        %v1298 = vlaneseq
        %v1299 = vshrl.u32 %v1298, 7
        %v1300 = vsub.s32 0, %v1299
        %v1301 = vrot.slane %v1296, %v1300
        %v1307 = vunpack.c.l.b16 %v1292
        %v1308 = vunpack.c.l.b16 %v1293
        %v1309 = vunpack.c.l.b16 %v1294
        %v1310 = vunpack.c.l.b16 %v1295
        %v1311 = vpack.c.b16 %v1308, %v1307
        %v1312 = vpack.c.b16 %v1310, %v1309
        %1315 = vmatprep.subr.bf16.mxu0 0
        %1316 = vmatpush1.bf16.msra.mxu0 %v1311
        %1317 = vmatprep.subr.bf16.mxu0 0
        %1318 = vmatpush1.bf16.msra.mxu0 %v1312
        %1319 = vmatprep.subr.bf16.mxu0 0
        %1320 = vmatpush1.bf16.msra.mxu0 0
        %1321 = vmatprep.subr.bf16.mxu0 0
        %1322 = vmatpush1.bf16.msra.mxu0 0
        %1323 = vmatprep.subr.bf16.mxu0 0
        %1324 = vmatpush1.bf16.msra.mxu0 0
        %1325 = vmatprep.subr.bf16.mxu0 0
        %1326 = vmatpush1.bf16.msra.mxu0 0
        %1327 = vmatprep.subr.bf16.mxu0 0
        %1328 = vmatpush1.bf16.msra.mxu0 0
        %1329 = vmatprep.subr.bf16.mxu0 0
        %1330 = vmatpush1.bf16.msra.mxu0 0
        %1331 = vmatprep.subr.bf16.mxu0 0
        %1332 = vmatpush1.bf16.msra.mxu0 0
        %1333 = vmatprep.subr.bf16.mxu0 0
        %1334 = vmatpush1.bf16.msra.mxu0 0
        %1335 = vmatprep.subr.bf16.mxu0 0
        %1336 = vmatpush1.bf16.msra.mxu0 0
        %1337 = vmatprep.subr.bf16.mxu0 0
        %1338 = vmatpush1.bf16.msra.mxu0 0
        %1339 = vmatprep.subr.bf16.mxu0 0
        %1340 = vmatpush1.bf16.msra.mxu0 0
        %1341 = vmatprep.subr.bf16.mxu0 0
        %1342 = vmatpush1.bf16.msra.mxu0 0
        %1343 = vmatprep.subr.bf16.mxu0 0
        %1344 = vmatpush1.bf16.msra.mxu0 0
        %1345 = vmatprep.subr.bf16.mxu0 0
        %1346 = vmatpush1.bf16.msra.mxu0 0
        %1347 = vmatprep.mubr.bf16.mxu0 0
        %1348 = vmatmul.mubr.bf16.gmra.mrb[0].mxu0 %v1187
        %v1349 = vpop.f32.mrb[0].mxu0
        %v1350 = vadd.f32 %v1301, %v1349
        %v1351 = vpop.f32.mrb[0].mxu0
        %v1352 = vpop.f32.mrb[0].mxu0
        %v1353 = vpop.f32.mrb[0].mxu0
        %1354 = vdwg.mxu0
        %v1355 = vmul.f32 %v1224, 0.17677669
        %v1356 = vpack.c.bf16 %v1355, %v1355
        %v1357 = vpack.c.bf16 %v1287, %v1287
        %v1359 = vsel %vm1185, %v1356, 0
        %v1362 = vsel %vm1185, %v1357, 0
        %1364 = vmatprep.subr.bf16.mxu0 0
        %1365 = vmatpush1.bf16.xpose.msra.mxu0 %v1362
        %1366 = vmatprep.subr.bf16.mxu0 0
        %1367 = vmatpush1.bf16.xpose.msra.mxu0 0
        %1368 = vmatprep.subr.bf16.mxu0 0
        %1369 = vmatpush1.bf16.xpose.msra.mxu0 0
        %1370 = vmatprep.subr.bf16.mxu0 0
        %1371 = vmatpush1.bf16.xpose.msra.mxu0 0
        %1372 = vmatprep.subr.bf16.mxu0 0
        %1373 = vmatpush1.bf16.xpose.msra.mxu0 0
        %1374 = vmatprep.subr.bf16.mxu0 0
        %1375 = vmatpush1.bf16.xpose.msra.mxu0 0
        %1376 = vmatprep.subr.bf16.mxu0 0
        %1377 = vmatpush1.bf16.xpose.msra.mxu0 0
        %1378 = vmatprep.subr.bf16.mxu0 0
        %1379 = vmatpush1.bf16.xpose.msra.mxu0 0
        %1380 = vmatprep.subr.bf16.mxu0 0
        %1381 = vmatpush1.bf16.xpose.msra.mxu0 0
        %1382 = vmatprep.subr.bf16.mxu0 0
        %1383 = vmatpush1.bf16.xpose.msra.mxu0 0
        %1384 = vmatprep.subr.bf16.mxu0 0
        %1385 = vmatpush1.bf16.xpose.msra.mxu0 0
        %1386 = vmatprep.subr.bf16.mxu0 0
        %1387 = vmatpush1.bf16.xpose.msra.mxu0 0
        %1388 = vmatprep.subr.bf16.mxu0 0
        %1389 = vmatpush1.bf16.xpose.msra.mxu0 0
        %1390 = vmatprep.subr.bf16.mxu0 0
        %1391 = vmatpush1.bf16.xpose.msra.mxu0 0
        %1392 = vmatprep.subr.bf16.mxu0 0
        %1393 = vmatpush1.bf16.xpose.msra.mxu0 0
        %1394 = vmatprep.subr.bf16.mxu0 0
        %1395 = vmatpush1.bf16.xpose.msra.mxu0 0
        %1396 = vmatprep.mubr.bf16.mxu0 0
        %1397 = vmatmul.mubr.bf16.gmra.mrb[0].mxu0 %v1359
        %v1398 = vpop.f32.mrb[0].mxu0
        %v1399 = vadd.f32 0.0, %v1398
        %v1400 = vpop.f32.mrb[0].mxu0
        %v1401 = vpop.f32.mrb[0].mxu0
        %v1402 = vpop.f32.mrb[0].mxu0
        %1403 = vdwg.mxu0
        %vm1404 = vcmask 64512
        %v1405 = vsel %vm1404, %v1399, -inf
        %1406 = vmax.xlane.f32.xlu0 %v1405
        %v1407 = vpop.xlane.xlu0 %1406
        %v1408 = vsub.f32 %v1399, %v1407
        %v1409 = vmul.f32 %v1408, 1.442695
        %v1410 = vpow.pop %v1409
        %v1411 = vsel %vm1404, %v1410, 0.0
        %1412 = vadd.xlane.f32.xlu0 %v1411
        %v1413 = vpop.xlane.xlu0 %1412
        %v1414 = vrcp.pop %v1413
        %v1415 = vmul.f32 %v1410, %v1414
        %v1416 = vpack.c.bf16 %v1415, %v1415
        %v1417 = vpack.c.bf16 %v1350, %v1350
        %v1419 = vsel %vm1404, %v1416, 0
        %vm1421 = vcmask 1043456
        %v1423 = vsel %vm1421, %v1417, 0
        %1425 = vmatprep.subr.bf16.mxu0 0
        %1426 = vmatpush1.bf16.msra.mxu0 %v1423
        %1427 = vmatprep.subr.bf16.mxu0 0
        %1428 = vmatpush1.bf16.msra.mxu0 0
        %1429 = vmatprep.subr.bf16.mxu0 0
        %1430 = vmatpush1.bf16.msra.mxu0 0
        %1431 = vmatprep.subr.bf16.mxu0 0
        %1432 = vmatpush1.bf16.msra.mxu0 0
        %1433 = vmatprep.subr.bf16.mxu0 0
        %1434 = vmatpush1.bf16.msra.mxu0 0
        %1435 = vmatprep.subr.bf16.mxu0 0
        %1436 = vmatpush1.bf16.msra.mxu0 0
        %1437 = vmatprep.subr.bf16.mxu0 0
        %1438 = vmatpush1.bf16.msra.mxu0 0
        %1439 = vmatprep.subr.bf16.mxu0 0
        %1440 = vmatpush1.bf16.msra.mxu0 0
        %1441 = vmatprep.subr.bf16.mxu0 0
        %1442 = vmatpush1.bf16.msra.mxu0 0
        %1443 = vmatprep.subr.bf16.mxu0 0
        %1444 = vmatpush1.bf16.msra.mxu0 0
        %1445 = vmatprep.subr.bf16.mxu0 0
        %1446 = vmatpush1.bf16.msra.mxu0 0
        %1447 = vmatprep.subr.bf16.mxu0 0
        %1448 = vmatpush1.bf16.msra.mxu0 0
        %1449 = vmatprep.subr.bf16.mxu0 0
        %1450 = vmatpush1.bf16.msra.mxu0 0
        %1451 = vmatprep.subr.bf16.mxu0 0
        %1452 = vmatpush1.bf16.msra.mxu0 0
        %1453 = vmatprep.subr.bf16.mxu0 0
        %1454 = vmatpush1.bf16.msra.mxu0 0
        %1455 = vmatprep.subr.bf16.mxu0 0
        %1456 = vmatpush1.bf16.msra.mxu0 0
        %1457 = vmatprep.mubr.bf16.mxu0 0
        %1458 = vmatmul.mubr.bf16.gmra.mrb[0].mxu0 %v1419
        %v1459 = vpop.f32.mrb[0].mxu0
        %v1460 = vadd.f32 0.0, %v1459
        %v1461 = vpop.f32.mrb[0].mxu0
        %v1462 = vpop.f32.mrb[0].mxu0
        %v1463 = vpop.f32.mrb[0].mxu0
        %1464 = vdwg.mxu0
        %v1465 = vpack.c.bf16 %v1460, %v1460
        %v1466 = vld [vmem:[#allocation19] sm:$0xf]
        %v1467 = vld [vmem:[#allocation19 + $0x4] sm:$0xf]
        %v1468 = vld [vmem:[#allocation19 + $0x8] sm:$0xf]
        %v1469 = vld [vmem:[#allocation19 + $0xc] sm:$0xf]
        %v1470 = vld [vmem:[#allocation20] sm:$0x1]
        %v1472 = vlaneseq
        %v1473 = vshrl.u32 %v1472, 7
        %v1474 = vsub.s32 0, %v1473
        %v1475 = vrot.slane %v1470, %v1474
        %v1481 = vunpack.c.l.b16 %v1466
        %v1482 = vunpack.c.l.b16 %v1467
        %v1483 = vunpack.c.l.b16 %v1468
        %v1484 = vunpack.c.l.b16 %v1469
        %v1485 = vpack.c.b16 %v1482, %v1481
        %v1486 = vpack.c.b16 %v1484, %v1483
        %v1490 = vsel %vm1185, %v1465, 0
        %1492 = vmatprep.subr.bf16.mxu0 0
        %1493 = vmatpush1.bf16.msra.mxu0 %v1485
        %1494 = vmatprep.subr.bf16.mxu0 0
        %1495 = vmatpush1.bf16.msra.mxu0 %v1486
        %1496 = vmatprep.subr.bf16.mxu0 0
        %1497 = vmatpush1.bf16.msra.mxu0 0
        %1498 = vmatprep.subr.bf16.mxu0 0
        %1499 = vmatpush1.bf16.msra.mxu0 0
        %1500 = vmatprep.subr.bf16.mxu0 0
        %1501 = vmatpush1.bf16.msra.mxu0 0
        %1502 = vmatprep.subr.bf16.mxu0 0
        %1503 = vmatpush1.bf16.msra.mxu0 0
        %1504 = vmatprep.subr.bf16.mxu0 0
        %1505 = vmatpush1.bf16.msra.mxu0 0
        %1506 = vmatprep.subr.bf16.mxu0 0
        %1507 = vmatpush1.bf16.msra.mxu0 0
        %1508 = vmatprep.subr.bf16.mxu0 0
        %1509 = vmatpush1.bf16.msra.mxu0 0
        %1510 = vmatprep.subr.bf16.mxu0 0
        %1511 = vmatpush1.bf16.msra.mxu0 0
        %1512 = vmatprep.subr.bf16.mxu0 0
        %1513 = vmatpush1.bf16.msra.mxu0 0
        %1514 = vmatprep.subr.bf16.mxu0 0
        %1515 = vmatpush1.bf16.msra.mxu0 0
        %1516 = vmatprep.subr.bf16.mxu0 0
        %1517 = vmatpush1.bf16.msra.mxu0 0
        %1518 = vmatprep.subr.bf16.mxu0 0
        %1519 = vmatpush1.bf16.msra.mxu0 0
        %1520 = vmatprep.subr.bf16.mxu0 0
        %1521 = vmatpush1.bf16.msra.mxu0 0
        %1522 = vmatprep.subr.bf16.mxu0 0
        %1523 = vmatpush1.bf16.msra.mxu0 0
        %1524 = vmatprep.mubr.bf16.mxu0 0
        %1525 = vmatmul.mubr.bf16.gmra.mrb[0].mxu0 %v1490
        %v1526 = vpop.f32.mrb[0].mxu0
        %v1527 = vadd.f32 %v1475, %v1526
        %v1528 = vpop.f32.mrb[0].mxu0
        %v1529 = vpop.f32.mrb[0].mxu0
        %v1530 = vpop.f32.mrb[0].mxu0
        %1531 = vdwg.mxu0
        %v1532 = vadd.f32 %v1160, %v1527
        %v1533 = vld [vmem:[#allocation22] sm:$0x1]
        %v1534 = vld [vmem:[#allocation23] sm:$0x1]
        %v1535 = vsel %vm1185, %v1532, 0.0
        %1536 = vadd.xlane.f32.xlu0 %v1535
        %v1537 = vpop.xlane.xlu0 %1536
        %v1538 = vrcp.pop 32.0
        %v1539 = vmul.f32 %v1537, %v1538
        %v1540 = vsub.f32 %v1532, %v1539
        %v1541 = vmul.f32 %v1540, %v1540
        %v1542 = vsel %vm1185, %v1541, 0.0
        %1543 = vadd.xlane.f32.xlu0 %v1542
        %v1544 = vpop.xlane.xlu0 %1543
        %v1545 = vmul.f32 %v1544, %v1538
        %v1546 = vadd.f32 %v1545, 1e-05
        %v1547 = vrsqrt.pop %v1546
        %v1548 = vmul.f32 %v1540, %v1547
        %v1550 = vlaneseq
        %v1551 = vshrl.u32 %v1550, 7
        %v1552 = vsub.s32 0, %v1551
        %v1553 = vrot.slane %v1533, %v1552
        %v1555 = vmul.f32 %v1548, %v1553
        %v1557 = vlaneseq
        %v1558 = vshrl.u32 %v1557, 7
        %v1559 = vsub.s32 0, %v1558
        %v1560 = vrot.slane %v1534, %v1559
        %v1562 = vadd.f32 %v1555, %v1560
        %v1563 = vpack.c.bf16 %v1562, %v1562
        %v1564 = vld [vmem:[#allocation25] sm:$0xf]
        %v1565 = vld [vmem:[#allocation25 + $0x4] sm:$0xf]
        %v1566 = vld [vmem:[#allocation25 + $0x8] sm:$0xf]
        %v1567 = vld [vmem:[#allocation25 + $0xc] sm:$0xf]
        %v1568 = vld [vmem:[#allocation26] sm:$0x1]
        %v1570 = vlaneseq
        %v1571 = vshrl.u32 %v1570, 7
        %v1572 = vsub.s32 0, %v1571
        %v1573 = vrot.slane %v1568, %v1572
        %v1579 = vunpack.c.l.b16 %v1564
        %v1580 = vunpack.c.l.b16 %v1565
        %v1581 = vunpack.c.l.b16 %v1566
        %v1582 = vunpack.c.l.b16 %v1567
        %v1583 = vpack.c.b16 %v1580, %v1579
        %v1584 = vpack.c.b16 %v1582, %v1581
        %v1588 = vsel %vm1185, %v1563, 0
        %1590 = vmatprep.subr.bf16.mxu0 0
        %1591 = vmatpush1.bf16.msra.mxu0 %v1583
        %1592 = vmatprep.subr.bf16.mxu0 0
        %1593 = vmatpush1.bf16.msra.mxu0 %v1584
        %1594 = vmatprep.subr.bf16.mxu0 0
        %1595 = vmatpush1.bf16.msra.mxu0 0
        %1596 = vmatprep.subr.bf16.mxu0 0
        %1597 = vmatpush1.bf16.msra.mxu0 0
        %1598 = vmatprep.subr.bf16.mxu0 0
        %1599 = vmatpush1.bf16.msra.mxu0 0
        %1600 = vmatprep.subr.bf16.mxu0 0
        %1601 = vmatpush1.bf16.msra.mxu0 0
        %1602 = vmatprep.subr.bf16.mxu0 0
        %1603 = vmatpush1.bf16.msra.mxu0 0
        %1604 = vmatprep.subr.bf16.mxu0 0
        %1605 = vmatpush1.bf16.msra.mxu0 0
        %1606 = vmatprep.subr.bf16.mxu0 0
        %1607 = vmatpush1.bf16.msra.mxu0 0
        %1608 = vmatprep.subr.bf16.mxu0 0
        %1609 = vmatpush1.bf16.msra.mxu0 0
        %1610 = vmatprep.subr.bf16.mxu0 0
        %1611 = vmatpush1.bf16.msra.mxu0 0
        %1612 = vmatprep.subr.bf16.mxu0 0
        %1613 = vmatpush1.bf16.msra.mxu0 0
        %1614 = vmatprep.subr.bf16.mxu0 0
        %1615 = vmatpush1.bf16.msra.mxu0 0
        %1616 = vmatprep.subr.bf16.mxu0 0
        %1617 = vmatpush1.bf16.msra.mxu0 0
        %1618 = vmatprep.subr.bf16.mxu0 0
        %1619 = vmatpush1.bf16.msra.mxu0 0
        %1620 = vmatprep.subr.bf16.mxu0 0
        %1621 = vmatpush1.bf16.msra.mxu0 0
        %1622 = vmatprep.mubr.bf16.mxu0 0
        %1623 = vmatmul.mubr.bf16.gmra.mrb[0].mxu0 %v1588
        %v1624 = vpop.f32.mrb[0].mxu0
        %v1625 = vadd.f32 %v1573, %v1624
        %v1626 = vpop.f32.mrb[0].mxu0
        %v1627 = vpop.f32.mrb[0].mxu0
        %v1628 = vpop.f32.mrb[0].mxu0
        %1629 = vdwg.mxu0
        %v1630 = vmax.f32 %v1625, 0.0
        %v1631 = vpack.c.bf16 %v1630, %v1630
        %v1632 = vld [vmem:[#allocation28] sm:$0xf]
        %v1633 = vld [vmem:[#allocation28 + $0x4] sm:$0xf]
        %v1634 = vld [vmem:[#allocation28 + $0x8] sm:$0xf]
        %v1635 = vld [vmem:[#allocation28 + $0xc] sm:$0xf]
        %v1636 = vld [vmem:[#allocation28 + $0x10] sm:$0xf]
        %v1637 = vld [vmem:[#allocation28 + $0x14] sm:$0xf]
        %v1638 = vld [vmem:[#allocation28 + $0x18] sm:$0xf]
        %v1639 = vld [vmem:[#allocation28 + $0x1c] sm:$0xf]
        %v1640 = vld [vmem:[#allocation29] sm:$0x1]
        %v1642 = vlaneseq
        %v1643 = vshrl.u32 %v1642, 7
        %v1644 = vsub.s32 0, %v1643
        %v1645 = vrot.slane %v1640, %v1644
        %v1655 = vunpack.c.l.b16 %v1632
        %v1656 = vunpack.c.l.b16 %v1633
        %v1657 = vunpack.c.l.b16 %v1634
        %v1658 = vunpack.c.l.b16 %v1635
        %v1659 = vunpack.c.l.b16 %v1636
        %v1660 = vunpack.c.l.b16 %v1637
        %v1661 = vunpack.c.l.b16 %v1638
        %v1662 = vunpack.c.l.b16 %v1639
        %v1663 = vpack.c.b16 %v1656, %v1655
        %v1664 = vpack.c.b16 %v1658, %v1657
        %v1665 = vpack.c.b16 %v1660, %v1659
        %v1666 = vpack.c.b16 %v1662, %v1661
        %vm1671 = vcmask 523264
        %v1673 = vsel %vm1671, %v1631, 0
        %1675 = vmatprep.subr.bf16.mxu0 0
        %1676 = vmatpush1.bf16.msra.mxu0 %v1663
        %1677 = vmatprep.subr.bf16.mxu0 0
        %1678 = vmatpush1.bf16.msra.mxu0 %v1664
        %1679 = vmatprep.subr.bf16.mxu0 0
        %1680 = vmatpush1.bf16.msra.mxu0 %v1665
        %1681 = vmatprep.subr.bf16.mxu0 0
        %1682 = vmatpush1.bf16.msra.mxu0 %v1666
        %1683 = vmatprep.subr.bf16.mxu0 0
        %1684 = vmatpush1.bf16.msra.mxu0 0
        %1685 = vmatprep.subr.bf16.mxu0 0
        %1686 = vmatpush1.bf16.msra.mxu0 0
        %1687 = vmatprep.subr.bf16.mxu0 0
        %1688 = vmatpush1.bf16.msra.mxu0 0
        %1689 = vmatprep.subr.bf16.mxu0 0
        %1690 = vmatpush1.bf16.msra.mxu0 0
        %1691 = vmatprep.subr.bf16.mxu0 0
        %1692 = vmatpush1.bf16.msra.mxu0 0
        %1693 = vmatprep.subr.bf16.mxu0 0
        %1694 = vmatpush1.bf16.msra.mxu0 0
        %1695 = vmatprep.subr.bf16.mxu0 0
        %1696 = vmatpush1.bf16.msra.mxu0 0
        %1697 = vmatprep.subr.bf16.mxu0 0
        %1698 = vmatpush1.bf16.msra.mxu0 0
        %1699 = vmatprep.subr.bf16.mxu0 0
        %1700 = vmatpush1.bf16.msra.mxu0 0
        %1701 = vmatprep.subr.bf16.mxu0 0
        %1702 = vmatpush1.bf16.msra.mxu0 0
        %1703 = vmatprep.subr.bf16.mxu0 0
        %1704 = vmatpush1.bf16.msra.mxu0 0
        %1705 = vmatprep.subr.bf16.mxu0 0
        %1706 = vmatpush1.bf16.msra.mxu0 0
        %1707 = vmatprep.mubr.bf16.mxu0 0
        %1708 = vmatmul.mubr.bf16.gmra.mrb[0].mxu0 %v1673
        %v1709 = vpop.f32.mrb[0].mxu0
        %v1710 = vadd.f32 %v1645, %v1709
        %v1711 = vpop.f32.mrb[0].mxu0
        %v1712 = vpop.f32.mrb[0].mxu0
        %v1713 = vpop.f32.mrb[0].mxu0
        %1714 = vdwg.mxu0
        %v1715 = vadd.f32 %v1562, %v1710
        %v1716 = vld [vmem:[#allocation31] sm:$0x1]
        %v1717 = vld [vmem:[#allocation32] sm:$0x1]
        %v1718 = vsel %vm1185, %v1715, 0.0
        %1719 = vadd.xlane.f32.xlu0 %v1718
        %v1720 = vpop.xlane.xlu0 %1719
        %v1721 = vmul.f32 %v1720, %v1538
        %v1722 = vsub.f32 %v1715, %v1721
        %v1723 = vmul.f32 %v1722, %v1722
        %v1724 = vsel %vm1185, %v1723, 0.0
        %1725 = vadd.xlane.f32.xlu0 %v1724
        %v1726 = vpop.xlane.xlu0 %1725
        %v1727 = vmul.f32 %v1726, %v1538
        %v1728 = vadd.f32 %v1727, 1e-05
        %v1729 = vrsqrt.pop %v1728
        %v1730 = vmul.f32 %v1722, %v1729
        %v1732 = vlaneseq
        %v1733 = vshrl.u32 %v1732, 7
        %v1734 = vsub.s32 0, %v1733
        %v1735 = vrot.slane %v1716, %v1734
        %v1737 = vmul.f32 %v1730, %v1735
        %v1739 = vlaneseq
        %v1740 = vshrl.u32 %v1739, 7
        %v1741 = vsub.s32 0, %v1740
        %v1742 = vrot.slane %v1717, %v1741
        %v1744 = vadd.f32 %v1737, %v1742
        %v1745 = vpack.c.bf16 %v1744, %v1744
        %v1746 = vld [vmem:[#allocation34] sm:$0xf]
        %v1747 = vld [vmem:[#allocation34 + $0x4] sm:$0xf]
        %v1748 = vld [vmem:[#allocation34 + $0x8] sm:$0xf]
        %v1749 = vld [vmem:[#allocation34 + $0xc] sm:$0xf]
        %v1750 = vld [vmem:[#allocation35] sm:$0x1]
        %v1752 = vlaneseq
        %v1753 = vshrl.u32 %v1752, 7
        %v1754 = vsub.s32 0, %v1753
        %v1755 = vrot.slane %v1750, %v1754
        %v1761 = vunpack.c.l.b16 %v1746
        %v1762 = vunpack.c.l.b16 %v1747
        %v1763 = vunpack.c.l.b16 %v1748
        %v1764 = vunpack.c.l.b16 %v1749
        %v1765 = vpack.c.b16 %v1762, %v1761
        %v1766 = vpack.c.b16 %v1764, %v1763
        %v1770 = vsel %vm1185, %v1745, 0
        %1772 = vmatprep.subr.bf16.mxu0 0
        %1773 = vmatpush1.bf16.msra.mxu0 %v1765
        %1774 = vmatprep.subr.bf16.mxu0 0
        %1775 = vmatpush1.bf16.msra.mxu0 %v1766
        %1776 = vmatprep.subr.bf16.mxu0 0
        %1777 = vmatpush1.bf16.msra.mxu0 0
        %1778 = vmatprep.subr.bf16.mxu0 0
        %1779 = vmatpush1.bf16.msra.mxu0 0
        %1780 = vmatprep.subr.bf16.mxu0 0
        %1781 = vmatpush1.bf16.msra.mxu0 0
        %1782 = vmatprep.subr.bf16.mxu0 0
        %1783 = vmatpush1.bf16.msra.mxu0 0
        %1784 = vmatprep.subr.bf16.mxu0 0
        %1785 = vmatpush1.bf16.msra.mxu0 0
        %1786 = vmatprep.subr.bf16.mxu0 0
        %1787 = vmatpush1.bf16.msra.mxu0 0
        %1788 = vmatprep.subr.bf16.mxu0 0
        %1789 = vmatpush1.bf16.msra.mxu0 0
        %1790 = vmatprep.subr.bf16.mxu0 0
        %1791 = vmatpush1.bf16.msra.mxu0 0
        %1792 = vmatprep.subr.bf16.mxu0 0
        %1793 = vmatpush1.bf16.msra.mxu0 0
        %1794 = vmatprep.subr.bf16.mxu0 0
        %1795 = vmatpush1.bf16.msra.mxu0 0
        %1796 = vmatprep.subr.bf16.mxu0 0
        %1797 = vmatpush1.bf16.msra.mxu0 0
        %1798 = vmatprep.subr.bf16.mxu0 0
        %1799 = vmatpush1.bf16.msra.mxu0 0
        %1800 = vmatprep.subr.bf16.mxu0 0
        %1801 = vmatpush1.bf16.msra.mxu0 0
        %1802 = vmatprep.subr.bf16.mxu0 0
        %1803 = vmatpush1.bf16.msra.mxu0 0
        %1804 = vmatprep.mubr.bf16.mxu0 0
        %1805 = vmatmul.mubr.bf16.gmra.mrb[0].mxu0 %v1770
        %v1806 = vpop.f32.mrb[0].mxu0
        %v1807 = vadd.f32 %v1755, %v1806
        %v1808 = vpop.f32.mrb[0].mxu0
        %v1809 = vpop.f32.mrb[0].mxu0
        %v1810 = vpop.f32.mrb[0].mxu0
        %1811 = vdwg.mxu0
        %v1812 = vpack.c.bf16 %v1807, %v1807
        %vm1813 = vcmask 257024
        %1814 = vst.msk [vmem:[%s1089] sm:$0xf] %vm1813, %v1812
        %v1815 = vld [vmem:[#allocation37] sm:$0xf]
        %v1816 = vld [vmem:[#allocation37 + $0x4] sm:$0xf]
        %v1817 = vld [vmem:[#allocation37 + $0x8] sm:$0xf]
        %v1818 = vld [vmem:[#allocation37 + $0xc] sm:$0xf]
        %v1819 = vld [vmem:[#allocation38] sm:$0x1]
        %v1821 = vlaneseq
        %v1822 = vshrl.u32 %v1821, 7
        %v1823 = vsub.s32 0, %v1822
        %v1824 = vrot.slane %v1819, %v1823
        %v1830 = vunpack.c.l.b16 %v1815
        %v1831 = vunpack.c.l.b16 %v1816
        %v1832 = vunpack.c.l.b16 %v1817
        %v1833 = vunpack.c.l.b16 %v1818
        %v1834 = vpack.c.b16 %v1831, %v1830
        %v1835 = vpack.c.b16 %v1833, %v1832
        %1838 = vmatprep.subr.bf16.mxu0 0
        %1839 = vmatpush1.bf16.msra.mxu0 %v1834
        %1840 = vmatprep.subr.bf16.mxu0 0
        %1841 = vmatpush1.bf16.msra.mxu0 %v1835
        %1842 = vmatprep.subr.bf16.mxu0 0
        %1843 = vmatpush1.bf16.msra.mxu0 0
        %1844 = vmatprep.subr.bf16.mxu0 0
        %1845 = vmatpush1.bf16.msra.mxu0 0
        %1846 = vmatprep.subr.bf16.mxu0 0
        %1847 = vmatpush1.bf16.msra.mxu0 0
        %1848 = vmatprep.subr.bf16.mxu0 0
        %1849 = vmatpush1.bf16.msra.mxu0 0
        %1850 = vmatprep.subr.bf16.mxu0 0
        %1851 = vmatpush1.bf16.msra.mxu0 0
        %1852 = vmatprep.subr.bf16.mxu0 0
        %1853 = vmatpush1.bf16.msra.mxu0 0
        %1854 = vmatprep.subr.bf16.mxu0 0
        %1855 = vmatpush1.bf16.msra.mxu0 0
        %1856 = vmatprep.subr.bf16.mxu0 0
        %1857 = vmatpush1.bf16.msra.mxu0 0
        %1858 = vmatprep.subr.bf16.mxu0 0
        %1859 = vmatpush1.bf16.msra.mxu0 0
        %1860 = vmatprep.subr.bf16.mxu0 0
        %1861 = vmatpush1.bf16.msra.mxu0 0
        %1862 = vmatprep.subr.bf16.mxu0 0
        %1863 = vmatpush1.bf16.msra.mxu0 0
        %1864 = vmatprep.subr.bf16.mxu0 0
        %1865 = vmatpush1.bf16.msra.mxu0 0
        %1866 = vmatprep.subr.bf16.mxu0 0
        %1867 = vmatpush1.bf16.msra.mxu0 0
        %1868 = vmatprep.subr.bf16.mxu0 0
        %1869 = vmatpush1.bf16.msra.mxu0 0
        %1870 = vmatprep.mubr.bf16.mxu0 0
        %1871 = vmatmul.mubr.bf16.gmra.mrb[0].mxu0 %v1770
        %v1872 = vpop.f32.mrb[0].mxu0
        %v1873 = vadd.f32 %v1824, %v1872
        %v1874 = vpop.f32.mrb[0].mxu0
        %v1875 = vpop.f32.mrb[0].mxu0
        %v1876 = vpop.f32.mrb[0].mxu0
        %1877 = vdwg.mxu0
        %v1878 = vpack.c.bf16 %v1873, %v1873
        %1879 = vst.msk [vmem:[%s1096] sm:$0xf] %vm1813, %v1878
        %s1880 = sand.u32 %s575, 1
        %s1881 = scalar_lea.sflag [#allocation4], %s1880
        %s1882 = sand.u32 %s575, 1
        %s1883 = smul.addr %s1882, 4
        %s1884 = scalar_lea.vmem [#allocation40], %s1883
        %s1885 = sand.u32 %s601, 1
        %s1886 = scalar_lea.sflag [#allocation42], %s1885
        %s1887 = sand.u32 %s601, 1
        %s1888 = smul.addr %s1887, 4
        %s1889 = scalar_lea.vmem [#allocation41], %s1888
        // Predicated region
        $region213: #{model_forward.2} parent=115 // pred_check
          %p1890 = pneg %p585
        $region214: #{model_forward.2} parent=115 // pred_check_branch
          %1892 = sbr.rel (%p1890) target = $region216
        $region215: #{model_forward.2} parent=115 // pred_region
          %s1894 = ssub.s32 64, 64
          %1895 = vsyncadd %s1881, %s1894
          %s1896 = smul.addr %s58, 64
          %s1897 = scalar_lea.hbm %s24, %s1896
          %s1899 = sshll.u32 %s1884, 4
          %s1900 = int_to_ptr.vmem [resolvable:$true] %s1899
          %1902 = dma.vmem_to_hbm [thread:$0]  %s1900, 64, %s1897, %s1881
        $region216: #{model_forward.2} parent=115 // pred_fallthru
          _
        // Predicated region
        $region217: #{model_forward.2} parent=115 // pred_check
          %p1903 = pneg %p611
        $region218: #{model_forward.2} parent=115 // pred_check_branch
          %1905 = sbr.rel (%p1903) target = $region220
        $region219: #{model_forward.2} parent=115 // pred_region
          %s1907 = ssub.s32 64, 64
          %1908 = vsyncadd %s1886, %s1907
          %s1909 = smul.addr %s58, 64
          %s1910 = scalar_lea.hbm %s25, %s1909
          %s1912 = sshll.u32 %s1889, 4
          %s1913 = int_to_ptr.vmem [resolvable:$true] %s1912
          %1915 = dma.vmem_to_hbm [thread:$0]  %s1913, 64, %s1910, %s1886
        $region220: #{model_forward.2} parent=115 // pred_fallthru
          _
      $region116: #{model_forward.2} parent=5 // pred_fallthru
        _
      %p1916 = scmp.le.s32.totalorder 2, %s53
      // Predicated region
      $region221: #{model_forward.2} parent=5 // pred_check
        %p1917 = pneg %p1916
      $region222: #{model_forward.2} parent=5 // pred_check_branch
        %1919 = sbr.rel (%p1917) target = $region224
      $region223: #{model_forward.2} parent=5 // pred_region
        %s1920 = ssub.s32 %s53, 2
        // Predicated region
        $region225: #{model_forward.2} parent=223 // pred_check
          %p1921 = pneg %p591
        $region226: #{model_forward.2} parent=223 // pred_check_branch
          %1923 = sbr.rel (%p1921) target = $region228
        $region227: #{model_forward.2} parent=223 // pred_region
          %s1924 = sand.u32 %s576, 1
          %s1925 = scalar_lea.sflag [#allocation4], %s1924
          %s1926 = sand.u32 %s576, 1
          %s1927 = smul.addr %s1926, 4
          %s1928 = scalar_lea.vmem [#allocation40], %s1927
          %1929 = dma.done %s1925, 64
        $region228: #{model_forward.2} parent=223 // pred_fallthru
          _
        // Predicated region
        $region229: #{model_forward.2} parent=223 // pred_check
          %p1930 = pneg %p617
        $region230: #{model_forward.2} parent=223 // pred_check_branch
          %1932 = sbr.rel (%p1930) target = $region232
        $region231: #{model_forward.2} parent=223 // pred_region
          %s1933 = sand.u32 %s602, 1
          %s1934 = scalar_lea.sflag [#allocation42], %s1933
          %s1935 = sand.u32 %s602, 1
          %s1936 = smul.addr %s1935, 4
          %s1937 = scalar_lea.vmem [#allocation41], %s1936
          %1938 = dma.done %s1934, 64
        $region232: #{model_forward.2} parent=223 // pred_fallthru
          _
      $region224: #{model_forward.2} parent=5 // pred_fallthru
        _
    $region6: #{model_forward.2} parent=1 // loop_footer
      %s57 = sadd.s32 1, %s53
    $region7: #{model_forward.2} parent=1 // loop_footer_branch
      %52 = sbr.rel target = $region3
    $region8: #{model_forward.2} parent=1 // loop_exit
      _
    %1939 = vsyncpa [#allocation3], 1
    %s1940 = scalar_lea.sflag [#allocation3], 1
    %1941 = vsyncpa %s1940, 1
    %1942 = vsyncpa [#allocation6], 1
    %1943 = vsyncpa [#allocation9], 1
    %1944 = vsyncpa [#allocation12], 1
    %1945 = vsyncpa [#allocation15], 1
    %1946 = vsyncpa [#allocation18], 1
    %1947 = vsyncpa [#allocation21], 1
    %1948 = vsyncpa [#allocation24], 1
    %1949 = vsyncpa [#allocation27], 1
    %1950 = vsyncpa [#allocation30], 1
    %1951 = vsyncpa [#allocation33], 1
    %1952 = vsyncpa [#allocation36], 1
    %1953 = vsyncpa [#allocation39], 1
    %1954 = vsyncpa [#allocation4], 1
    %s1955 = scalar_lea.sflag [#allocation4], 1
    %1956 = vsyncpa %s1955, 1
    %1957 = vsyncpa [#allocation42], 1
    %s1958 = scalar_lea.sflag [#allocation42], 1
    %1959 = vsyncpa %s1958, 1

</llo_original>
